<compile_context>
chip_gen: v7x
topology: tpu7x:2x2x1
jax: 0.10.0
libtpu: 0.0.40
codegen_flags: <defaults>
</compile_context>

<pallas_src>
import jax
import jax.numpy as jnp
from jax.experimental import pallas as pl
from jax.experimental.pallas import tpu as pltpu

NUM_GROUPS = 32
EPS = 1e-5
_VMEM_LIMIT = 48 * 1024 * 1024   # below v7x's 64 MiB physical, above default scoped limits


# --------------------------------------------------------------------------------------
# Kernel 1: GroupNorm normalize + K/V projection
# --------------------------------------------------------------------------------------
def _gn_kv_kernel(x_ref, scale_ref, shift_ref,
                  wk_ref, wv_ref, bk_ref, bv_ref,
                  k_ref, v_ref):
    # x_ref block: (1, C, TS) channel-major token tile.
    x_cm = x_ref[0].astype(jnp.float32)                          # (C, TS)
    xhat_cm = x_cm * scale_ref[0] + shift_ref[0]                 # GN normalize (affine folded into W/b)
    xhat_cm_b = xhat_cm.astype(jnp.bfloat16)                     # (C, TS)
    xhat_tok_b = xhat_cm.T.astype(jnp.bfloat16)                  # (TS, C) token-major

    # K channel-major: W_eff (C_out, C_in) @ xhat_cm (C_in, TS) -> (C_out, TS)
    k_cm = jnp.dot(wk_ref[...], xhat_cm_b,
                   preferred_element_type=jnp.float32) + bk_ref[...]
    # V token-major: xhat_tok (TS, C_in) @ W_eff^T (C_in, C_out) -> (TS, C_out)
    v_tok = jnp.dot(xhat_tok_b, wv_ref[...],
                    preferred_element_type=jnp.float32) + bv_ref[...]

    k_ref[0] = k_cm.astype(jnp.bfloat16)
    v_ref[0] = v_tok.astype(jnp.bfloat16)


# --------------------------------------------------------------------------------------
# Kernel 2: fused Q projection + flash attention + output projection + residual
# --------------------------------------------------------------------------------------
def _flash_attn_kernel(xres_ref, scale_ref, shift_ref, k_ref, v_ref,
                       wq_ref, bq_ref, wo_ref, bo_ref,
                       o_ref, q_sc, m_sc, l_sc, acc_sc):
    ki = pl.program_id(2)

    @pl.when(ki == 0)
    def _():
        # Q projection fused here: the residual tile is resident across the whole KV
        # loop, so normalize + project it once per Q row (Q never round-trips HBM).
        xhat = xres_ref[0].astype(jnp.float32) * scale_ref[0] + shift_ref[0]   # (C, TQ)
        q = jnp.dot(xhat.T.astype(jnp.bfloat16), wq_ref[...],
                    preferred_element_type=jnp.float32) + bq_ref[...]          # (TQ, C); 1/sqrt(C) folded
        q_sc[...] = q.astype(jnp.bfloat16)
        m_sc[...] = jnp.full_like(m_sc, -jnp.inf)
        l_sc[...] = jnp.zeros_like(l_sc)
        acc_sc[...] = jnp.zeros_like(acc_sc)

    # Scores: (TQ, C) @ (C, TK) -> (TQ, TK), f32 accumulation on the MXU.
    s = jnp.dot(q_sc[...], k_ref[0], preferred_element_type=jnp.float32)

    m_prev = m_sc[...]
    m_new = jnp.maximum(m_prev, jnp.max(s, axis=-1, keepdims=True))
    alpha = jnp.exp(m_prev - m_new)
    p = jnp.exp(s - m_new)                                        # unnormalized probabilities
    l_sc[...] = alpha * l_sc[...] + jnp.sum(p, axis=-1, keepdims=True)
    acc_sc[...] = alpha * acc_sc[...] + jnp.dot(
        p.astype(jnp.bfloat16), v_ref[0], preferred_element_type=jnp.float32)
    m_sc[...] = m_new

    @pl.when(ki == pl.num_programs(2) - 1)
    def _():
        # Deferred softmax normalization (reciprocal on the EUP slot), out-proj, residual.
        out = acc_sc[...] * pl.reciprocal(l_sc[...], approx=True)              # (TQ, C) f32
        proj = jnp.dot(out.astype(jnp.bfloat16), wo_ref[...],
                       preferred_element_type=jnp.float32) + bo_ref[...]
        o_ref[0] = (proj.T + xres_ref[0].astype(jnp.float32)).astype(o_ref.dtype)


# --------------------------------------------------------------------------------------
# Wrapper
# --------------------------------------------------------------------------------------
def _pick_tile(total, preferred):
    """Largest multiple of 128 that divides `total` and is <= preferred; else `total`."""
    if total <= preferred:
        return total
    t = (preferred // 128) * 128
    while t >= 128:
        if total % t == 0:
            return t
        t -= 128
    return total


def vae_attention_block(x_nchw, params, *, tq=256, tk=512, ts=512):
    """x_nchw: (B, C, H, W).  Returns (B, C, H, W), matching the PyTorch module."""
    B, C, H, W = x_nchw.shape
    assert C % NUM_GROUPS == 0, "channels must be divisible by 32 for GroupNorm(32, C)"
    HW = H * W
    gs = C // NUM_GROUPS
    TS = _pick_tile(HW, ts)
    TQ = _pick_tile(HW, tq)
    TK = _pick_tile(HW, tk)

    x_cm = x_nchw.reshape(B, C, HW)          # channel-major tokens; free view, no HBM transpose

    # ---- GroupNorm statistics (tiny pure-JAX pre-pass; biased variance as in nn.GroupNorm) ----
    xg = x_cm.astype(jnp.float32).reshape(B, NUM_GROUPS, gs * HW)
    mean_g = jnp.mean(xg, axis=-1)
    var_g = jnp.var(xg, axis=-1)
    inv_g = jax.lax.rsqrt(var_g + EPS)
    inv_c = jnp.repeat(inv_g, gs, axis=-1)                # (B, C)
    mean_c = jnp.repeat(mean_g, gs, axis=-1)
    scale_bc = inv_c[:, :, None]                          # (B, C, 1): xhat = x*scale + shift
    shift_bc = (-mean_c * inv_c)[:, :, None]

    # ---- Fold GN affine (gamma, beta) and the 1/sqrt(C) scale into the projections ----
    gamma = params["gn_weight"].astype(jnp.float32)
    beta = params["gn_bias"].astype(jnp.float32)
    sm_scale = 1.0 / float(C) ** 0.5                      # n_heads=1 -> d_head = C

    def fold_rowmajor(w, b, extra=1.0):
        # token-major projection: xhat_tok @ W_eff^T ; returns W_eff^T (C_in, C_out), bias (1, C)
        w32 = w.astype(jnp.float32)
        w_t = (w32.T * gamma[:, None]) * extra
        b_eff = (b.astype(jnp.float32) + beta @ w32.T) * extra
        return w_t.astype(jnp.bfloat16), b_eff.reshape(1, C)

    def fold_colmajor(w, b):
        # channel-major projection: W_eff @ xhat_cm ; returns W_eff (C_out, C_in), bias (C, 1)
        w32 = w.astype(jnp.float32)
        w_eff = w32 * gamma[None, :]
        b_eff = b.astype(jnp.float32) + w32 @ beta
        return w_eff.astype(jnp.bfloat16), b_eff.reshape(C, 1)

    wq_t, bq = fold_rowmajor(params["wq"], params["bq"], sm_scale)
    wk_cm, bk_col = fold_colmajor(params["wk"], params["bk"])
    wv_t, bv = fold_rowmajor(params["wv"], params["bv"])
    wo_t = params["wo"].astype(jnp.float32).T.astype(jnp.bfloat16)
    bo = params["bo"].astype(jnp.float32).reshape(1, C)

    # ---- Kernel 1: GroupNorm-normalize + K/V projection ----
    full_w2 = pl.BlockSpec((C, C), lambda b, s: (0, 0))
    k_cm, v_tok = pl.pallas_call(
        _gn_kv_kernel,
        out_shape=(jax.ShapeDtypeStruct((B, C, HW), jnp.bfloat16),    # K channel-major
                   jax.ShapeDtypeStruct((B, HW, C), jnp.bfloat16)),   # V token-major
        grid_spec=pltpu.PrefetchScalarGridSpec(
            num_scalar_prefetch=0,
            grid=(B, HW // TS),
            in_specs=[
                pl.BlockSpec((1, C, TS), lambda b, s: (b, 0, s)),     # x (channel-major token tile)
                pl.BlockSpec((1, C, 1), lambda b, s: (b, 0, 0)),      # GN scale (per batch/channel)
                pl.BlockSpec((1, C, 1), lambda b, s: (b, 0, 0)),      # GN shift
                full_w2, full_w2,                                     # Wk_eff, Wv_eff^T (bf16)
                pl.BlockSpec((C, 1), lambda b, s: (0, 0)),            # bk (column)
                pl.BlockSpec((1, C), lambda b, s: (0, 0)),            # bv (row)
            ],
            out_specs=[
                pl.BlockSpec((1, C, TS), lambda b, s: (b, 0, s)),
                pl.BlockSpec((1, TS, C), lambda b, s: (b, s, 0)),
            ],
        ),
        compiler_params=pltpu.CompilerParams(
            dimension_semantics=("parallel", "parallel"),
            vmem_limit_bytes=_VMEM_LIMIT),
    )(x_cm, scale_bc, shift_bc, wk_cm, wv_t, bk_col, bv)

    # ---- Kernel 2: fused Q proj + flash attention + output projection + residual ----
    full_w3 = pl.BlockSpec((C, C), lambda b, qi, ki: (0, 0))
    full_b3 = pl.BlockSpec((1, C), lambda b, qi, ki: (0, 0))
    out_cm = pl.pallas_call(
        _flash_attn_kernel,
        out_shape=jax.ShapeDtypeStruct((B, C, HW), x_nchw.dtype),
        grid_spec=pltpu.PrefetchScalarGridSpec(
            num_scalar_prefetch=0,
            grid=(B, HW // TQ, HW // TK),
            in_specs=[
                pl.BlockSpec((1, C, TQ), lambda b, qi, ki: (b, 0, qi)),   # residual / Q source tile
                pl.BlockSpec((1, C, 1), lambda b, qi, ki: (b, 0, 0)),     # GN scale
                pl.BlockSpec((1, C, 1), lambda b, qi, ki: (b, 0, 0)),     # GN shift
                pl.BlockSpec((1, C, TK), lambda b, qi, ki: (b, 0, ki)),   # K tile (channel-major)
                pl.BlockSpec((1, TK, C), lambda b, qi, ki: (b, ki, 0)),   # V tile (token-major)
                full_w3, full_b3,                                         # Wq', bq' (GN + 1/sqrt(C) folded)
                full_w3, full_b3,                                         # Wo^T, bo
            ],
            out_specs=pl.BlockSpec((1, C, TQ), lambda b, qi, ki: (b, 0, qi)),
            scratch_shapes=[
                pltpu.VMEM((TQ, C), jnp.bfloat16),   # Q tile (computed at ki==0)
                pltpu.VMEM((TQ, 1), jnp.float32),    # running max m
                pltpu.VMEM((TQ, 1), jnp.float32),    # running denom l
                pltpu.VMEM((TQ, C), jnp.float32),    # output accumulator
            ],
        ),
        compiler_params=pltpu.CompilerParams(
            dimension_semantics=("parallel", "parallel", "arbitrary"),
            vmem_limit_bytes=_VMEM_LIMIT),
    )(x_cm, scale_bc, shift_bc, k_cm, v_tok, wq_t, bq, wo_t, bo)

    return out_cm.reshape(B, C, H, W)


# --------------------------------------------------------------------------------------
# Pure-JAX reference + test harness
# --------------------------------------------------------------------------------------
def _reference(x, params):
    """Pure-JAX f32 reference mirroring the PyTorch module."""
    B, C, H, W = x.shape
    gs = C // NUM_GROUPS
    xr = x.reshape(B, NUM_GROUPS, gs, H, W)
    mean = xr.mean(axis=(2, 3, 4), keepdims=True)
    var = xr.var(axis=(2, 3, 4), keepdims=True)
    xn = (xr - mean) / jnp.sqrt(var + EPS)
    xn = xn.reshape(B, C, H, W)
    xn = xn * params["gn_weight"][None, :, None, None] + params["gn_bias"][None, :, None, None]

    t = jnp.transpose(xn.reshape(B, C, H * W), (0, 2, 1))          # (B, HW, C)
    q = t @ params["wq"].T + params["bq"]
    k = t @ params["wk"].T + params["bk"]
    v = t @ params["wv"].T + params["bv"]
    s = jnp.einsum("bqc,bkc->bqk", q, k) / jnp.sqrt(jnp.float32(C))
    a = jax.nn.softmax(s, axis=-1)
    o = jnp.einsum("bqk,bkc->bqc", a, v)
    o = o @ params["wo"].T + params["bo"]
    o = jnp.transpose(o, (0, 2, 1)).reshape(B, C, H, W)
    return o + x


def _init_params(key, C):
    ks = jax.random.split(key, 8)
    # in_proj: Linear(C, 3C) -> weight (3C, C), bias (3C,); split into q/k/v
    w_in = 0.05 * jax.random.normal(ks[0], (3 * C, C), jnp.float32)
    b_in = 0.05 * jax.random.normal(ks[1], (3 * C,), jnp.float32)
    w_out = 0.05 * jax.random.normal(ks[2], (C, C), jnp.float32)
    b_out = 0.05 * jax.random.normal(ks[3], (C,), jnp.float32)
    gn_w = 1.0 + 0.1 * jax.random.normal(ks[4], (C,), jnp.float32)
    gn_b = 0.1 * jax.random.normal(ks[5], (C,), jnp.float32)
    return {
        "gn_weight": gn_w, "gn_bias": gn_b,
        "wq": w_in[0:C], "wk": w_in[C:2 * C], "wv": w_in[2 * C:3 * C],
        "bq": b_in[0:C], "bk": b_in[C:2 * C], "bv": b_in[2 * C:3 * C],
        "wo": w_out, "bo": b_out,
    }


if __name__ == "__main__":
    key = jax.random.PRNGKey(0)
    kx, kp = jax.random.split(key)

    # C must be a multiple of 32 (GroupNorm(32, C)); HW=256 with 128-wide tiles gives
    # 2 Q-tiles x 2 KV-tiles so the online-softmax init/accumulate/finalize path is exercised.
    B, C, H, W = 2, 64, 16, 16
    x = jax.random.normal(kx, (B, C, H, W), jnp.float32)
    params = _init_params(kp, C)

    fwd = jax.jit(lambda xx, pp: vae_attention_block(xx, pp, tq=128, tk=128, ts=128))
    y = jax.block_until_ready(fwd(x, params))
    y_ref = jax.block_until_ready(_reference(x, params))

    assert y.shape == (B, C, H, W)
    max_diff = float(jnp.max(jnp.abs(y - y_ref)))
    # bf16 MXU operands + approx reciprocal -> loosened tolerance vs the f32 reference
    assert jnp.allclose(y, y_ref, atol=2e-2, rtol=2e-2), f"max abs diff = {max_diff}"
    print("KERNEL_OK")
</pallas_src>

<mosaic_0001>
module attributes {stable_mosaic.version = 11 : i64} {
  func.func @_gn_kv_kernel(%arg0: i32, %arg1: i32, %arg2: memref<1x64x128xf32, #tpu.memory_space<vmem>>, %arg3: memref<1x64x1xf32, #tpu.memory_space<vmem>>, %arg4: memref<1x64x1xf32, #tpu.memory_space<vmem>>, %arg5: memref<64x64xbf16, #tpu.memory_space<vmem>>, %arg6: memref<64x64xbf16, #tpu.memory_space<vmem>>, %arg7: memref<64x1xf32, #tpu.memory_space<vmem>>, %arg8: memref<1x64xf32, #tpu.memory_space<vmem>>, %arg9: memref<1x64x128xbf16, #tpu.memory_space<vmem>>, %arg10: memref<1x128x64xbf16, #tpu.memory_space<vmem>>) attributes {dimension_semantics = [#tpu.dimension_semantics<parallel>, #tpu.dimension_semantics<parallel>], iteration_bounds = array<i64: 2, 2>, scalar_prefetch = 0 : i64, scratch_operands = 0 : i64, tpu.core_type = #tpu.core_type<tc>, window_params = [{transform_indices = @transform_0, window_bounds = array<i64: 1, 64, 128>}, {transform_indices = @transform_1, window_bounds = array<i64: 1, 64, 1>}, {transform_indices = @transform_2, window_bounds = array<i64: 1, 64, 1>}, {pipeline_mode = #tpu.pipeline_mode<synchronous>, transform_indices = @transform_3, window_bounds = array<i64: 64, 64>}, {pipeline_mode = #tpu.pipeline_mode<synchronous>, transform_indices = @transform_4, window_bounds = array<i64: 64, 64>}, {pipeline_mode = #tpu.pipeline_mode<synchronous>, transform_indices = @transform_5, window_bounds = array<i64: 64, 1>}, {pipeline_mode = #tpu.pipeline_mode<synchronous>, transform_indices = @transform_6, window_bounds = array<i64: 1, 64>}, {transform_indices = @transform_7, window_bounds = array<i64: 1, 64, 128>}, {transform_indices = @transform_8, window_bounds = array<i64: 1, 128, 64>}]} {
    %c0 = arith.constant 0 : index
    %c0_0 = arith.constant 0 : index
    %c0_1 = arith.constant 0 : index
    %0 = vector.load %arg2[%c0, %c0_0, %c0_1] : memref<1x64x128xf32, #tpu.memory_space<vmem>>, vector<1x64x128xf32>
    %1 = vector.shape_cast %0 : vector<1x64x128xf32> to vector<64x128xf32>
    %c0_2 = arith.constant 0 : index
    %c0_3 = arith.constant 0 : index
    %c0_4 = arith.constant 0 : index
    %2 = vector.load %arg3[%c0_2, %c0_3, %c0_4] : memref<1x64x1xf32, #tpu.memory_space<vmem>>, vector<1x64x1xf32>
    %3 = vector.shape_cast %2 : vector<1x64x1xf32> to vector<64x1xf32>
    %4 = vector.broadcast %3 : vector<64x1xf32> to vector<64x128xf32>
    %5 = arith.mulf %1, %4 : vector<64x128xf32>
    %c0_5 = arith.constant 0 : index
    %c0_6 = arith.constant 0 : index
    %c0_7 = arith.constant 0 : index
    %6 = vector.load %arg4[%c0_5, %c0_6, %c0_7] : memref<1x64x1xf32, #tpu.memory_space<vmem>>, vector<1x64x1xf32>
    %7 = vector.shape_cast %6 : vector<1x64x1xf32> to vector<64x1xf32>
    %8 = vector.broadcast %7 : vector<64x1xf32> to vector<64x128xf32>
    %9 = arith.addf %5, %8 : vector<64x128xf32>
    %10 = arith.truncf %9 : vector<64x128xf32> to vector<64x128xbf16>
    %11 = tpu.transpose %9, [1, 0] : vector<64x128xf32> -> vector<128x64xf32>
    %12 = arith.truncf %11 : vector<128x64xf32> to vector<128x64xbf16>
    %c0_8 = arith.constant 0 : index
    %c0_9 = arith.constant 0 : index
    %13 = vector.load %arg5[%c0_8, %c0_9] : memref<64x64xbf16, #tpu.memory_space<vmem>>, vector<64x64xbf16>
    %cst = arith.constant dense<0.000000e+00> : vector<64x128xf32>
    %14 = tpu.matmul %13, %10, %cst {dimension_numbers = #tpu.dot_dimension_numbers<[1], [0], [0], [1], [0, 0, 1, 1], [], []>} : vector<64x64xbf16>, vector<64x128xbf16>, vector<64x128xf32> -> vector<64x128xf32>
    %c0_10 = arith.constant 0 : index
    %c0_11 = arith.constant 0 : index
    %15 = vector.load %arg7[%c0_10, %c0_11] : memref<64x1xf32, #tpu.memory_space<vmem>>, vector<64x1xf32>
    %16 = vector.broadcast %15 : vector<64x1xf32> to vector<64x128xf32>
    %17 = arith.addf %14, %16 : vector<64x128xf32>
    %c0_12 = arith.constant 0 : index
    %c0_13 = arith.constant 0 : index
    %18 = vector.load %arg6[%c0_12, %c0_13] : memref<64x64xbf16, #tpu.memory_space<vmem>>, vector<64x64xbf16>
    %cst_14 = arith.constant dense<0.000000e+00> : vector<128x64xf32>
    %19 = tpu.matmul %12, %18, %cst_14 {dimension_numbers = #tpu.dot_dimension_numbers<[1], [0], [0], [1], [0, 0, 1, 1], [], []>} : vector<128x64xbf16>, vector<64x64xbf16>, vector<128x64xf32> -> vector<128x64xf32>
    %c0_15 = arith.constant 0 : index
    %c0_16 = arith.constant 0 : index
    %20 = vector.load %arg8[%c0_15, %c0_16] : memref<1x64xf32, #tpu.memory_space<vmem>>, vector<1x64xf32>
    %21 = vector.broadcast %20 : vector<1x64xf32> to vector<128x64xf32>
    %22 = arith.addf %19, %21 : vector<128x64xf32>
    %23 = arith.truncf %17 : vector<64x128xf32> to vector<64x128xbf16>
    %c0_17 = arith.constant 0 : index
    %c0_18 = arith.constant 0 : index
    %c0_19 = arith.constant 0 : index
    %24 = vector.load %arg9[%c0_17, %c0_18, %c0_19] : memref<1x64x128xbf16, #tpu.memory_space<vmem>>, vector<1x64x128xbf16>
    %25 = vector.shape_cast %24 : vector<1x64x128xbf16> to vector<64x128xbf16>
    %26 = vector.shape_cast %23 : vector<64x128xbf16> to vector<1x64x128xbf16>
    tpu.vector_store %arg9[%c0_17, %c0_18, %c0_19], %26 {strides = array<i32>} : memref<1x64x128xbf16, #tpu.memory_space<vmem>>, vector<1x64x128xbf16>,
    %27 = arith.truncf %22 : vector<128x64xf32> to vector<128x64xbf16>
    %c0_20 = arith.constant 0 : index
    %c0_21 = arith.constant 0 : index
    %c0_22 = arith.constant 0 : index
    %28 = vector.load %arg10[%c0_20, %c0_21, %c0_22] : memref<1x128x64xbf16, #tpu.memory_space<vmem>>, vector<1x128x64xbf16>
    %29 = vector.shape_cast %28 : vector<1x128x64xbf16> to vector<128x64xbf16>
    %30 = vector.shape_cast %27 : vector<128x64xbf16> to vector<1x128x64xbf16>
    tpu.vector_store %arg10[%c0_20, %c0_21, %c0_22], %30 {strides = array<i32>} : memref<1x128x64xbf16, #tpu.memory_space<vmem>>, vector<1x128x64xbf16>,
    return
  }
  func.func @transform_0(%arg0: i32, %arg1: i32) -> (i32, i32, i32) {
    %c0_i32 = arith.constant 0 : i32
    %c0_i32_0 = arith.constant 0 : i32
    return %arg0, %c0_i32, %arg1 : i32, i32, i32
  }
  func.func @transform_1(%arg0: i32, %arg1: i32) -> (i32, i32, i32) {
    %c0_i32 = arith.constant 0 : i32
    %c0_i32_0 = arith.constant 0 : i32
    %c0_i32_1 = arith.constant 0 : i32
    return %arg0, %c0_i32, %c0_i32_0 : i32, i32, i32
  }
  func.func @transform_2(%arg0: i32, %arg1: i32) -> (i32, i32, i32) {
    %c0_i32 = arith.constant 0 : i32
    %c0_i32_0 = arith.constant 0 : i32
    %c0_i32_1 = arith.constant 0 : i32
    return %arg0, %c0_i32, %c0_i32_0 : i32, i32, i32
  }
  func.func @transform_3(%arg0: i32, %arg1: i32) -> (i32, i32) {
    %c0_i32 = arith.constant 0 : i32
    %c0_i32_0 = arith.constant 0 : i32
    %c0_i32_1 = arith.constant 0 : i32
    return %c0_i32, %c0_i32_0 : i32, i32
  }
  func.func @transform_4(%arg0: i32, %arg1: i32) -> (i32, i32) {
    %c0_i32 = arith.constant 0 : i32
    %c0_i32_0 = arith.constant 0 : i32
    %c0_i32_1 = arith.constant 0 : i32
    return %c0_i32, %c0_i32_0 : i32, i32
  }
  func.func @transform_5(%arg0: i32, %arg1: i32) -> (i32, i32) {
    %c0_i32 = arith.constant 0 : i32
    %c0_i32_0 = arith.constant 0 : i32
    %c0_i32_1 = arith.constant 0 : i32
    return %c0_i32, %c0_i32_0 : i32, i32
  }
  func.func @transform_6(%arg0: i32, %arg1: i32) -> (i32, i32) {
    %c0_i32 = arith.constant 0 : i32
    %c0_i32_0 = arith.constant 0 : i32
    %c0_i32_1 = arith.constant 0 : i32
    return %c0_i32, %c0_i32_0 : i32, i32
  }
  func.func @transform_7(%arg0: i32, %arg1: i32) -> (i32, i32, i32) {
    %c0_i32 = arith.constant 0 : i32
    %c0_i32_0 = arith.constant 0 : i32
    return %arg0, %c0_i32, %arg1 : i32, i32, i32
  }
  func.func @transform_8(%arg0: i32, %arg1: i32) -> (i32, i32, i32) {
    %c0_i32 = arith.constant 0 : i32
    %c0_i32_0 = arith.constant 0 : i32
    return %arg0, %arg1, %c0_i32 : i32, i32, i32
  }
}

module attributes {stable_mosaic.version = 11 : i64} {
  func.func @_flash_attn_kernel(%arg0: i32, %arg1: i32, %arg2: i32, %arg3: memref<1x64x128xf32, #tpu.memory_space<vmem>>, %arg4: memref<1x64x1xf32, #tpu.memory_space<vmem>>, %arg5: memref<1x64x1xf32, #tpu.memory_space<vmem>>, %arg6: memref<1x64x128xbf16, #tpu.memory_space<vmem>>, %arg7: memref<1x128x64xbf16, #tpu.memory_space<vmem>>, %arg8: memref<64x64xbf16, #tpu.memory_space<vmem>>, %arg9: memref<1x64xf32, #tpu.memory_space<vmem>>, %arg10: memref<64x64xbf16, #tpu.memory_space<vmem>>, %arg11: memref<1x64xf32, #tpu.memory_space<vmem>>, %arg12: memref<1x64x128xf32, #tpu.memory_space<vmem>>, %arg13: memref<128x64xbf16, #tpu.memory_space<vmem>>, %arg14: memref<128x1xf32, #tpu.memory_space<vmem>>, %arg15: memref<128x1xf32, #tpu.memory_space<vmem>>, %arg16: memref<128x64xf32, #tpu.memory_space<vmem>>) attributes {dimension_semantics = [#tpu.dimension_semantics<parallel>, #tpu.dimension_semantics<parallel>, #tpu.dimension_semantics<arbitrary>], iteration_bounds = array<i64: 2, 2, 2>, scalar_prefetch = 0 : i64, scratch_operands = 4 : i64, tpu.core_type = #tpu.core_type<tc>, window_params = [{transform_indices = @transform_0, window_bounds = array<i64: 1, 64, 128>}, {transform_indices = @transform_1, window_bounds = array<i64: 1, 64, 1>}, {transform_indices = @transform_2, window_bounds = array<i64: 1, 64, 1>}, {transform_indices = @transform_3, window_bounds = array<i64: 1, 64, 128>}, {transform_indices = @transform_4, window_bounds = array<i64: 1, 128, 64>}, {pipeline_mode = #tpu.pipeline_mode<synchronous>, transform_indices = @transform_5, window_bounds = array<i64: 64, 64>}, {pipeline_mode = #tpu.pipeline_mode<synchronous>, transform_indices = @transform_6, window_bounds = array<i64: 1, 64>}, {pipeline_mode = #tpu.pipeline_mode<synchronous>, transform_indices = @transform_7, window_bounds = array<i64: 64, 64>}, {pipeline_mode = #tpu.pipeline_mode<synchronous>, transform_indices = @transform_8, window_bounds = array<i64: 1, 64>}, {transform_indices = @transform_9, window_bounds = array<i64: 1, 64, 128>}]} {
    %c0_i32 = arith.constant 0 : i32
    %0 = arith.cmpi eq, %arg2, %c0_i32 : i32
    %1 = arith.extui %0 : i1 to i32
    %c0_i32_0 = arith.constant 0 : i32
    %2 = arith.cmpi ne, %1, %c0_i32_0 : i32
    scf.if %2 {
      %c0_24 = arith.constant 0 : index
      %c0_25 = arith.constant 0 : index
      %c0_26 = arith.constant 0 : index
      %35 = vector.load %arg3[%c0_24, %c0_25, %c0_26] : memref<1x64x128xf32, #tpu.memory_space<vmem>>, vector<1x64x128xf32>
      %36 = vector.shape_cast %35 : vector<1x64x128xf32> to vector<64x128xf32>
      %c0_27 = arith.constant 0 : index
      %c0_28 = arith.constant 0 : index
      %c0_29 = arith.constant 0 : index
      %37 = vector.load %arg4[%c0_27, %c0_28, %c0_29] : memref<1x64x1xf32, #tpu.memory_space<vmem>>, vector<1x64x1xf32>
      %38 = vector.shape_cast %37 : vector<1x64x1xf32> to vector<64x1xf32>
      %39 = vector.broadcast %38 : vector<64x1xf32> to vector<64x128xf32>
      %40 = arith.mulf %36, %39 : vector<64x128xf32>
      %c0_30 = arith.constant 0 : index
      %c0_31 = arith.constant 0 : index
      %c0_32 = arith.constant 0 : index
      %41 = vector.load %arg5[%c0_30, %c0_31, %c0_32] : memref<1x64x1xf32, #tpu.memory_space<vmem>>, vector<1x64x1xf32>
      %42 = vector.shape_cast %41 : vector<1x64x1xf32> to vector<64x1xf32>
      %43 = vector.broadcast %42 : vector<64x1xf32> to vector<64x128xf32>
      %44 = arith.addf %40, %43 : vector<64x128xf32>
      %45 = tpu.transpose %44, [1, 0] : vector<64x128xf32> -> vector<128x64xf32>
      %46 = arith.truncf %45 : vector<128x64xf32> to vector<128x64xbf16>
      %c0_33 = arith.constant 0 : index
      %c0_34 = arith.constant 0 : index
      %47 = vector.load %arg8[%c0_33, %c0_34] : memref<64x64xbf16, #tpu.memory_space<vmem>>, vector<64x64xbf16>
      %cst_35 = arith.constant dense<0.000000e+00> : vector<128x64xf32>
      %48 = tpu.matmul %46, %47, %cst_35 {dimension_numbers = #tpu.dot_dimension_numbers<[1], [0], [0], [1], [0, 0, 1, 1], [], []>} : vector<128x64xbf16>, vector<64x64xbf16>, vector<128x64xf32> -> vector<128x64xf32>
      %c0_36 = arith.constant 0 : index
      %c0_37 = arith.constant 0 : index
      %49 = vector.load %arg9[%c0_36, %c0_37] : memref<1x64xf32, #tpu.memory_space<vmem>>, vector<1x64xf32>
      %50 = vector.broadcast %49 : vector<1x64xf32> to vector<128x64xf32>
      %51 = arith.addf %48, %50 : vector<128x64xf32>
      %52 = arith.truncf %51 : vector<128x64xf32> to vector<128x64xbf16>
      %c0_38 = arith.constant 0 : index
      %c0_39 = arith.constant 0 : index
      %53 = vector.load %arg13[%c0_38, %c0_39] : memref<128x64xbf16, #tpu.memory_space<vmem>>, vector<128x64xbf16>
      tpu.vector_store %arg13[%c0_38, %c0_39], %52 {strides = array<i32>} : memref<128x64xbf16, #tpu.memory_space<vmem>>, vector<128x64xbf16>,
      %cst_40 = arith.constant 0xFF800000 : f32
      %54 = vector.broadcast %cst_40 : f32 to vector<128x1xf32>
      %c0_41 = arith.constant 0 : index
      %c0_42 = arith.constant 0 : index
      %55 = vector.load %arg14[%c0_41, %c0_42] : memref<128x1xf32, #tpu.memory_space<vmem>>, vector<128x1xf32>
      tpu.vector_store %arg14[%c0_41, %c0_42], %54 {strides = array<i32>} : memref<128x1xf32, #tpu.memory_space<vmem>>, vector<128x1xf32>,
      %cst_43 = arith.constant 0.000000e+00 : f32
      %56 = vector.broadcast %cst_43 : f32 to vector<128x1xf32>
      %c0_44 = arith.constant 0 : index
      %c0_45 = arith.constant 0 : index
      %57 = vector.load %arg15[%c0_44, %c0_45] : memref<128x1xf32, #tpu.memory_space<vmem>>, vector<128x1xf32>
      tpu.vector_store %arg15[%c0_44, %c0_45], %56 {strides = array<i32>} : memref<128x1xf32, #tpu.memory_space<vmem>>, vector<128x1xf32>,
      %cst_46 = arith.constant 0.000000e+00 : f32
      %58 = vector.broadcast %cst_46 : f32 to vector<128x64xf32>
      %c0_47 = arith.constant 0 : index
      %c0_48 = arith.constant 0 : index
      %59 = vector.load %arg16[%c0_47, %c0_48] : memref<128x64xf32, #tpu.memory_space<vmem>>, vector<128x64xf32>
      tpu.vector_store %arg16[%c0_47, %c0_48], %58 {strides = array<i32>} : memref<128x64xf32, #tpu.memory_space<vmem>>, vector<128x64xf32>,
    } else {
    }
    %c0 = arith.constant 0 : index
    %c0_1 = arith.constant 0 : index
    %3 = vector.load %arg13[%c0, %c0_1] : memref<128x64xbf16, #tpu.memory_space<vmem>>, vector<128x64xbf16>
    %c0_2 = arith.constant 0 : index
    %c0_3 = arith.constant 0 : index
    %c0_4 = arith.constant 0 : index
    %4 = vector.load %arg6[%c0_2, %c0_3, %c0_4] : memref<1x64x128xbf16, #tpu.memory_space<vmem>>, vector<1x64x128xbf16>
    %5 = vector.shape_cast %4 : vector<1x64x128xbf16> to vector<64x128xbf16>
    %cst = arith.constant dense<0.000000e+00> : vector<128x128xf32>
    %6 = tpu.matmul %3, %5, %cst {dimension_numbers = #tpu.dot_dimension_numbers<[1], [0], [0], [1], [0, 0, 1, 1], [], []>} : vector<128x64xbf16>, vector<64x128xbf16>, vector<128x128xf32> -> vector<128x128xf32>
    %c0_5 = arith.constant 0 : index
    %c0_6 = arith.constant 0 : index
    %7 = vector.load %arg14[%c0_5, %c0_6] : memref<128x1xf32, #tpu.memory_space<vmem>>, vector<128x1xf32>
    %cst_7 = arith.constant dense<0xFF800000> : vector<128xf32>
    %8 = vector.multi_reduction <maximumf>, %6, %cst_7 [1] : vector<128x128xf32> to vector<128xf32>
    %9 = vector.shape_cast %8 : vector<128xf32> to vector<128x1xf32>
    %10 = arith.maximumf %7, %9 : vector<128x1xf32>
    %11 = arith.subf %7, %10 : vector<128x1xf32>
    %12 = math.exp %11 : vector<128x1xf32>
    %13 = vector.broadcast %10 : vector<128x1xf32> to vector<128x128xf32>
    %14 = arith.subf %6, %13 : vector<128x128xf32>
    %15 = math.exp %14 : vector<128x128xf32>
    %c0_8 = arith.constant 0 : index
    %c0_9 = arith.constant 0 : index
    %16 = vector.load %arg15[%c0_8, %c0_9] : memref<128x1xf32, #tpu.memory_space<vmem>>, vector<128x1xf32>
    %17 = arith.mulf %12, %16 : vector<128x1xf32>
    %cst_10 = arith.constant dense<0.000000e+00> : vector<128xf32>
    %18 = vector.multi_reduction <add>, %15, %cst_10 [1] : vector<128x128xf32> to vector<128xf32>
    %19 = vector.shape_cast %18 : vector<128xf32> to vector<128x1xf32>
    %20 = arith.addf %17, %19 : vector<128x1xf32>
    %c0_11 = arith.constant 0 : index
    %c0_12 = arith.constant 0 : index
    %21 = vector.load %arg15[%c0_11, %c0_12] : memref<128x1xf32, #tpu.memory_space<vmem>>, vector<128x1xf32>
    tpu.vector_store %arg15[%c0_11, %c0_12], %20 {strides = array<i32>} : memref<128x1xf32, #tpu.memory_space<vmem>>, vector<128x1xf32>,
    %c0_13 = arith.constant 0 : index
    %c0_14 = arith.constant 0 : index
    %22 = vector.load %arg16[%c0_13, %c0_14] : memref<128x64xf32, #tpu.memory_space<vmem>>, vector<128x64xf32>
    %23 = vector.broadcast %12 : vector<128x1xf32> to vector<128x64xf32>
    %24 = arith.mulf %23, %22 : vector<128x64xf32>
    %25 = arith.truncf %15 : vector<128x128xf32> to vector<128x128xbf16>
    %c0_15 = arith.constant 0 : index
    %c0_16 = arith.constant 0 : index
    %c0_17 = arith.constant 0 : index
    %26 = vector.load %arg7[%c0_15, %c0_16, %c0_17] : memref<1x128x64xbf16, #tpu.memory_space<vmem>>, vector<1x128x64xbf16>
    %27 = vector.shape_cast %26 : vector<1x128x64xbf16> to vector<128x64xbf16>
    %cst_18 = arith.constant dense<0.000000e+00> : vector<128x64xf32>
    %28 = tpu.matmul %25, %27, %cst_18 {dimension_numbers = #tpu.dot_dimension_numbers<[1], [0], [0], [1], [0, 0, 1, 1], [], []>} : vector<128x128xbf16>, vector<128x64xbf16>, vector<128x64xf32> -> vector<128x64xf32>
    %29 = arith.addf %24, %28 : vector<128x64xf32>
    %c0_19 = arith.constant 0 : index
    %c0_20 = arith.constant 0 : index
    %30 = vector.load %arg16[%c0_19, %c0_20] : memref<128x64xf32, #tpu.memory_space<vmem>>, vector<128x64xf32>
    tpu.vector_store %arg16[%c0_19, %c0_20], %29 {strides = array<i32>} : memref<128x64xf32, #tpu.memory_space<vmem>>, vector<128x64xf32>,
    %c0_21 = arith.constant 0 : index
    %c0_22 = arith.constant 0 : index
    %31 = vector.load %arg14[%c0_21, %c0_22] : memref<128x1xf32, #tpu.memory_space<vmem>>, vector<128x1xf32>
    tpu.vector_store %arg14[%c0_21, %c0_22], %10 {strides = array<i32>} : memref<128x1xf32, #tpu.memory_space<vmem>>, vector<128x1xf32>,
    %c1_i32 = arith.constant 1 : i32
    %32 = arith.cmpi eq, %arg2, %c1_i32 : i32
    %33 = arith.extui %32 : i1 to i32
    %c0_i32_23 = arith.constant 0 : i32
    %34 = arith.cmpi ne, %33, %c0_i32_23 : i32
    scf.if %34 {
      %c0_24 = arith.constant 0 : index
      %c0_25 = arith.constant 0 : index
      %35 = vector.load %arg16[%c0_24, %c0_25] : memref<128x64xf32, #tpu.memory_space<vmem>>, vector<128x64xf32>
      %c0_26 = arith.constant 0 : index
      %c0_27 = arith.constant 0 : index
      %36 = vector.load %arg15[%c0_26, %c0_27] : memref<128x1xf32, #tpu.memory_space<vmem>>, vector<128x1xf32>
      %37 = tpu.reciprocal %36 {approx = true} : vector<128x1xf32> -> vector<128x1xf32>
      %38 = vector.broadcast %37 : vector<128x1xf32> to vector<128x64xf32>
      %39 = arith.mulf %35, %38 : vector<128x64xf32>
      %40 = arith.truncf %39 : vector<128x64xf32> to vector<128x64xbf16>
      %c0_28 = arith.constant 0 : index
      %c0_29 = arith.constant 0 : index
      %41 = vector.load %arg10[%c0_28, %c0_29] : memref<64x64xbf16, #tpu.memory_space<vmem>>, vector<64x64xbf16>
      %cst_30 = arith.constant dense<0.000000e+00> : vector<128x64xf32>
      %42 = tpu.matmul %40, %41, %cst_30 {dimension_numbers = #tpu.dot_dimension_numbers<[1], [0], [0], [1], [0, 0, 1, 1], [], []>} : vector<128x64xbf16>, vector<64x64xbf16>, vector<128x64xf32> -> vector<128x64xf32>
      %c0_31 = arith.constant 0 : index
      %c0_32 = arith.constant 0 : index
      %43 = vector.load %arg11[%c0_31, %c0_32] : memref<1x64xf32, #tpu.memory_space<vmem>>, vector<1x64xf32>
      %44 = vector.broadcast %43 : vector<1x64xf32> to vector<128x64xf32>
      %45 = arith.addf %42, %44 : vector<128x64xf32>
      %46 = tpu.transpose %45, [1, 0] : vector<128x64xf32> -> vector<64x128xf32>
      %c0_33 = arith.constant 0 : index
      %c0_34 = arith.constant 0 : index
      %c0_35 = arith.constant 0 : index
      %47 = vector.load %arg3[%c0_33, %c0_34, %c0_35] : memref<1x64x128xf32, #tpu.memory_space<vmem>>, vector<1x64x128xf32>
      %48 = vector.shape_cast %47 : vector<1x64x128xf32> to vector<64x128xf32>
      %49 = arith.addf %46, %48 : vector<64x128xf32>
      %c0_36 = arith.constant 0 : index
      %c0_37 = arith.constant 0 : index
      %c0_38 = arith.constant 0 : index
      %50 = vector.load %arg12[%c0_36, %c0_37, %c0_38] : memref<1x64x128xf32, #tpu.memory_space<vmem>>, vector<1x64x128xf32>
      %51 = vector.shape_cast %50 : vector<1x64x128xf32> to vector<64x128xf32>
      %52 = vector.shape_cast %49 : vector<64x128xf32> to vector<1x64x128xf32>
      tpu.vector_store %arg12[%c0_36, %c0_37, %c0_38], %52 {strides = array<i32>} : memref<1x64x128xf32, #tpu.memory_space<vmem>>, vector<1x64x128xf32>,
    } else {
    }
    return
  }
  func.func @transform_0(%arg0: i32, %arg1: i32, %arg2: i32) -> (i32, i32, i32) {
    %c0_i32 = arith.constant 0 : i32
    %c0_i32_0 = arith.constant 0 : i32
    return %arg0, %c0_i32, %arg1 : i32, i32, i32
  }
  func.func @transform_1(%arg0: i32, %arg1: i32, %arg2: i32) -> (i32, i32, i32) {
    %c0_i32 = arith.constant 0 : i32
    %c0_i32_0 = arith.constant 0 : i32
    %c0_i32_1 = arith.constant 0 : i32
    return %arg0, %c0_i32, %c0_i32_0 : i32, i32, i32
  }
  func.func @transform_2(%arg0: i32, %arg1: i32, %arg2: i32) -> (i32, i32, i32) {
    %c0_i32 = arith.constant 0 : i32
    %c0_i32_0 = arith.constant 0 : i32
    %c0_i32_1 = arith.constant 0 : i32
    return %arg0, %c0_i32, %c0_i32_0 : i32, i32, i32
  }
  func.func @transform_3(%arg0: i32, %arg1: i32, %arg2: i32) -> (i32, i32, i32) {
    %c0_i32 = arith.constant 0 : i32
    %c0_i32_0 = arith.constant 0 : i32
    return %arg0, %c0_i32, %arg2 : i32, i32, i32
  }
  func.func @transform_4(%arg0: i32, %arg1: i32, %arg2: i32) -> (i32, i32, i32) {
    %c0_i32 = arith.constant 0 : i32
    %c0_i32_0 = arith.constant 0 : i32
    return %arg0, %arg2, %c0_i32 : i32, i32, i32
  }
  func.func @transform_5(%arg0: i32, %arg1: i32, %arg2: i32) -> (i32, i32) {
    %c0_i32 = arith.constant 0 : i32
    %c0_i32_0 = arith.constant 0 : i32
    %c0_i32_1 = arith.constant 0 : i32
    return %c0_i32, %c0_i32_0 : i32, i32
  }
  func.func @transform_6(%arg0: i32, %arg1: i32, %arg2: i32) -> (i32, i32) {
    %c0_i32 = arith.constant 0 : i32
    %c0_i32_0 = arith.constant 0 : i32
    %c0_i32_1 = arith.constant 0 : i32
    return %c0_i32, %c0_i32_0 : i32, i32
  }
  func.func @transform_7(%arg0: i32, %arg1: i32, %arg2: i32) -> (i32, i32) {
    %c0_i32 = arith.constant 0 : i32
    %c0_i32_0 = arith.constant 0 : i32
    %c0_i32_1 = arith.constant 0 : i32
    return %c0_i32, %c0_i32_0 : i32, i32
  }
  func.func @transform_8(%arg0: i32, %arg1: i32, %arg2: i32) -> (i32, i32) {
    %c0_i32 = arith.constant 0 : i32
    %c0_i32_0 = arith.constant 0 : i32
    %c0_i32_1 = arith.constant 0 : i32
    return %c0_i32, %c0_i32_0 : i32, i32
  }
  func.func @transform_9(%arg0: i32, %arg1: i32, %arg2: i32) -> (i32, i32, i32) {
    %c0_i32 = arith.constant 0 : i32
    %c0_i32_0 = arith.constant 0 : i32
    return %arg0, %c0_i32, %arg1 : i32, i32, i32
  }
}

</mosaic_0001>

<llo_original>
// kernel: mul.6
$region0: #{mul.6}
  #allocation0 [shape = 's32[1]{0}', space=sflag, size = 0x4, scoped, tag = 'scoped memory for mul.6']
  %s0 = inlined_call_operand.vmem [shape: f32[2,64,1], index: 0, kind: input, shape index: {}]
  %s1 = inlined_call_operand.vmem [shape: f32[2,64,1], index: 1, kind: input, shape index: {}]
  %s2 = inlined_call_operand.vmem [shape: f32[2,64,1], index: 2, kind: output, shape index: {}]
  %v3 = vld [vmem:[%s0] sm:$0x3]
  %v4 = vld [vmem:[%s1] sm:$0x3]
  %5 = xla_tuple %v3, %v4
  %6 = xla_tuple %5
  %v7 = vmul.f32 %v3, %v4
  %8 = xla_tuple %v7
  %9 = vst [vmem:[%s2] sm:$0x3] %v7

// kernel: _lambda_.2
$region0: #{_lambda_.2}
  #allocation0 [shape = 'u32[]', space=smem, size = 0x4, offset = 0x4, fixed_abs, tag = 'smem constant byte address 0x4 - core index']
  #allocation1 [shape = 'u32[144,128]{1,0:T(1,128)}', space=vmem, size = 0x12000, scoped, tag = 'internal scratch']
  %s0 = inlined_call_operand.vmem [shape: f32[2,64,256], index: 0, kind: input, shape index: {}]
  %s1 = inlined_call_operand.vmem [shape: f32[2,64,1], index: 1, kind: input, shape index: {}]
  %s2 = inlined_call_operand.vmem [shape: f32[2,64,1], index: 2, kind: input, shape index: {}]
  %s3 = inlined_call_operand.vmem [shape: bf16[64,64], index: 3, kind: input, shape index: {}]
  %s4 = inlined_call_operand.vmem [shape: bf16[64,64], index: 4, kind: input, shape index: {}]
  %s5 = inlined_call_operand.vmem [shape: f32[64,1], index: 5, kind: input, shape index: {}]
  %s6 = inlined_call_operand.vmem [shape: f32[1,64], index: 6, kind: input, shape index: {}]
  %s7 = inlined_call_operand.vmem [shape: bf16[2,64,256], index: 7, kind: output, shape index: {0}]
  %s8 = inlined_call_operand.vmem [shape: bf16[2,256,64], index: 8, kind: output, shape index: {1}]
  %9 = xla_tuple %s7, %s8
  %s10 = sld [smem:[#allocation0]]
  $region144: #{_lambda_.2} parent=0
    _
  %s12 = ssub.s32 1, %s10
  %s13 = scalar_select 0, %s12, %s10
  $region1: #{_lambda_.2} parent=0
    #allocation2 [shape = 'u8[65536]{0}', space=vmem, size = 0x10000, scoped, tag = 'input window, operand 0']
    #allocation3 [shape = 'u8[32768]{0}', space=vmem, size = 0x8000, scoped, tag = 'output window, operand 0']
    loop: start=0, step=1, limit=6
    $region2: #{_lambda_.2} parent=1 // loop_pre_header
      _
    $region3: #{_lambda_.2} parent=1 // loop_header
      %s15 = sphi 0, %s19
      %p16 = scmp.ge.s32.totalorder %s15, 6
      %s22 = sphi 0, %s34
      %s23 = sphi 0, %s30
      %s24 = sphi 0, %s22
      %s25 = sphi 0, %s23
      %s26 = sphi 0, %s24
      %s27 = sphi 0, %s25
      %s39 = sphi 0, %s41
      %s42 = sphi 0, %s39
      %s43 = sphi 0, %s42
      %s59 = sphi 0, %s43
      %s65 = sphi 0, %s67
      %s68 = sphi 0, %s65
      %s69 = sphi 0, %s68
      %s85 = sphi 0, %s69
      %s91 = sphi 0, %s93
      %s94 = sphi 0, %s91
      %s95 = sphi 0, %s94
      %s111 = sphi 0, %s95
      %s115 = sphi 0, %s115
      %s117 = sphi 0, %s115
      %s118 = sphi 0, %s117
      %s132 = sphi 0, %s118
      %s136 = sphi 0, %s136
      %s138 = sphi 0, %s136
      %s139 = sphi 0, %s138
      %s153 = sphi 0, %s139
      %s157 = sphi 0, %s157
      %s159 = sphi 0, %s157
      %s160 = sphi 0, %s159
      %s174 = sphi 0, %s160
      %s178 = sphi 0, %s178
      %s180 = sphi 0, %s178
      %s181 = sphi 0, %s180
      %s195 = sphi 0, %s181
      %s203 = sphi 0, %s205
      %s206 = sphi 0, %s203
      %s207 = sphi 0, %s206
      %s223 = sphi 0, %s207
      %s231 = sphi 0, %s233
      %s234 = sphi 0, %s231
      %s235 = sphi 0, %s234
      %s251 = sphi 0, %s235
    $region4: #{_lambda_.2} parent=1 // loop_header_branch
      %18 = sbr.rel (%p16) target = $region8
    $region5: #{_lambda_.2} parent=1 // loop_body
      %s20 = ssub.s32 %s15, 1
      %s21 = ssub.s32 %s15, 2
      %s28 = sadd.s32 1, %s23
      %p29 = scmp.ge.s32.totalorder %s28, 2
      %s30 = scalar_select %p29, 0, %s28
      %s31 = sadd.s32 1, %s22
      %s32 = scalar_select %p29, %s31, %s22
      %p33 = scmp.ge.s32.totalorder %s32, 2
      %s34 = scalar_select %p33, 0, %s32
      %s35 = ssub.s32 %s22, %s34
      %s36 = ssub.s32 %s23, %s30
      %s37 = sor.u32 %s35, %s36
      %p38 = scmp.eq.s32.totalorder %s37, 0
      %s40 = sadd.s32 %s39, 1
      %s41 = scalar_select %p38, %s39, %s40
      %p44 = pneg %p38
      %p45 = scmp.eq.s32.totalorder %s15, 3
      %p46 = por %p44, %p45
      %p47 = scmp.ne.s32.totalorder %s39, %s42
      %p48 = scmp.eq.s32.totalorder %s15, 0
      %p49 = por %p47, %p48
      %p50 = scmp.ne.s32.totalorder %s39, %s42
      %p51 = scmp.eq.s32.totalorder %s20, 3
      %p52 = por %p50, %p51
      %p53 = scmp.ne.s32.totalorder %s42, %s43
      %p54 = scmp.eq.s32.totalorder %s20, 0
      %p55 = por %p53, %p54
      %p56 = scmp.ne.s32.totalorder %s42, %s43
      %p57 = scmp.eq.s32.totalorder %s21, 3
      %p58 = por %p56, %p57
      %p60 = scmp.ne.s32.totalorder %s43, %s59
      %p61 = scmp.eq.s32.totalorder %s21, 0
      %p62 = por %p60, %p61
      %s63 = ssub.s32 %s22, %s34
      %p64 = scmp.eq.s32.totalorder %s63, 0
      %s66 = sadd.s32 %s65, 1
      %s67 = scalar_select %p64, %s65, %s66
      %p70 = pneg %p64
      %p71 = scmp.eq.s32.totalorder %s15, 3
      %p72 = por %p70, %p71
      %p73 = scmp.ne.s32.totalorder %s65, %s68
      %p74 = scmp.eq.s32.totalorder %s15, 0
      %p75 = por %p73, %p74
      %p76 = scmp.ne.s32.totalorder %s65, %s68
      %p77 = scmp.eq.s32.totalorder %s20, 3
      %p78 = por %p76, %p77
      %p79 = scmp.ne.s32.totalorder %s68, %s69
      %p80 = scmp.eq.s32.totalorder %s20, 0
      %p81 = por %p79, %p80
      %p82 = scmp.ne.s32.totalorder %s68, %s69
      %p83 = scmp.eq.s32.totalorder %s21, 3
      %p84 = por %p82, %p83
      %p86 = scmp.ne.s32.totalorder %s69, %s85
      %p87 = scmp.eq.s32.totalorder %s21, 0
      %p88 = por %p86, %p87
      %s89 = ssub.s32 %s22, %s34
      %p90 = scmp.eq.s32.totalorder %s89, 0
      %s92 = sadd.s32 %s91, 1
      %s93 = scalar_select %p90, %s91, %s92
      %p96 = pneg %p90
      %p97 = scmp.eq.s32.totalorder %s15, 3
      %p98 = por %p96, %p97
      %p99 = scmp.ne.s32.totalorder %s91, %s94
      %p100 = scmp.eq.s32.totalorder %s15, 0
      %p101 = por %p99, %p100
      %p102 = scmp.ne.s32.totalorder %s91, %s94
      %p103 = scmp.eq.s32.totalorder %s20, 3
      %p104 = por %p102, %p103
      %p105 = scmp.ne.s32.totalorder %s94, %s95
      %p106 = scmp.eq.s32.totalorder %s20, 0
      %p107 = por %p105, %p106
      %p108 = scmp.ne.s32.totalorder %s94, %s95
      %p109 = scmp.eq.s32.totalorder %s21, 3
      %p110 = por %p108, %p109
      %p112 = scmp.ne.s32.totalorder %s95, %s111
      %p113 = scmp.eq.s32.totalorder %s21, 0
      %p114 = por %p112, %p113
      %s116 = sadd.s32 %s115, 1
      %p119 = scmp.eq.s32.totalorder %s15, 3
      %p120 = scmp.ne.s32.totalorder %s115, %s117
      %p121 = scmp.eq.s32.totalorder %s15, 0
      %p122 = por %p120, %p121
      %p123 = scmp.ne.s32.totalorder %s115, %s117
      %p124 = scmp.eq.s32.totalorder %s20, 3
      %p125 = por %p123, %p124
      %p126 = scmp.ne.s32.totalorder %s117, %s118
      %p127 = scmp.eq.s32.totalorder %s20, 0
      %p128 = por %p126, %p127
      %p129 = scmp.ne.s32.totalorder %s117, %s118
      %p130 = scmp.eq.s32.totalorder %s21, 3
      %p131 = por %p129, %p130
      %p133 = scmp.ne.s32.totalorder %s118, %s132
      %p134 = scmp.eq.s32.totalorder %s21, 0
      %p135 = por %p133, %p134
      %s137 = sadd.s32 %s136, 1
      %p140 = scmp.eq.s32.totalorder %s15, 3
      %p141 = scmp.ne.s32.totalorder %s136, %s138
      %p142 = scmp.eq.s32.totalorder %s15, 0
      %p143 = por %p141, %p142
      %p144 = scmp.ne.s32.totalorder %s136, %s138
      %p145 = scmp.eq.s32.totalorder %s20, 3
      %p146 = por %p144, %p145
      %p147 = scmp.ne.s32.totalorder %s138, %s139
      %p148 = scmp.eq.s32.totalorder %s20, 0
      %p149 = por %p147, %p148
      %p150 = scmp.ne.s32.totalorder %s138, %s139
      %p151 = scmp.eq.s32.totalorder %s21, 3
      %p152 = por %p150, %p151
      %p154 = scmp.ne.s32.totalorder %s139, %s153
      %p155 = scmp.eq.s32.totalorder %s21, 0
      %p156 = por %p154, %p155
      %s158 = sadd.s32 %s157, 1
      %p161 = scmp.eq.s32.totalorder %s15, 3
      %p162 = scmp.ne.s32.totalorder %s157, %s159
      %p163 = scmp.eq.s32.totalorder %s15, 0
      %p164 = por %p162, %p163
      %p165 = scmp.ne.s32.totalorder %s157, %s159
      %p166 = scmp.eq.s32.totalorder %s20, 3
      %p167 = por %p165, %p166
      %p168 = scmp.ne.s32.totalorder %s159, %s160
      %p169 = scmp.eq.s32.totalorder %s20, 0
      %p170 = por %p168, %p169
      %p171 = scmp.ne.s32.totalorder %s159, %s160
      %p172 = scmp.eq.s32.totalorder %s21, 3
      %p173 = por %p171, %p172
      %p175 = scmp.ne.s32.totalorder %s160, %s174
      %p176 = scmp.eq.s32.totalorder %s21, 0
      %p177 = por %p175, %p176
      %s179 = sadd.s32 %s178, 1
      %p182 = scmp.eq.s32.totalorder %s15, 3
      %p183 = scmp.ne.s32.totalorder %s178, %s180
      %p184 = scmp.eq.s32.totalorder %s15, 0
      %p185 = por %p183, %p184
      %p186 = scmp.ne.s32.totalorder %s178, %s180
      %p187 = scmp.eq.s32.totalorder %s20, 3
      %p188 = por %p186, %p187
      %p189 = scmp.ne.s32.totalorder %s180, %s181
      %p190 = scmp.eq.s32.totalorder %s20, 0
      %p191 = por %p189, %p190
      %p192 = scmp.ne.s32.totalorder %s180, %s181
      %p193 = scmp.eq.s32.totalorder %s21, 3
      %p194 = por %p192, %p193
      %p196 = scmp.ne.s32.totalorder %s181, %s195
      %p197 = scmp.eq.s32.totalorder %s21, 0
      %p198 = por %p196, %p197
      %s199 = ssub.s32 %s22, %s34
      %s200 = ssub.s32 %s23, %s30
      %s201 = sor.u32 %s199, %s200
      %p202 = scmp.eq.s32.totalorder %s201, 0
      %s204 = sadd.s32 %s203, 1
      %s205 = scalar_select %p202, %s203, %s204
      %p208 = pneg %p202
      %p209 = scmp.eq.s32.totalorder %s15, 3
      %p210 = por %p208, %p209
      %p211 = scmp.ne.s32.totalorder %s203, %s206
      %p212 = scmp.eq.s32.totalorder %s15, 0
      %p213 = por %p211, %p212
      %p214 = scmp.ne.s32.totalorder %s203, %s206
      %p215 = scmp.eq.s32.totalorder %s20, 3
      %p216 = por %p214, %p215
      %p217 = scmp.ne.s32.totalorder %s206, %s207
      %p218 = scmp.eq.s32.totalorder %s20, 0
      %p219 = por %p217, %p218
      %p220 = scmp.ne.s32.totalorder %s206, %s207
      %p221 = scmp.eq.s32.totalorder %s21, 3
      %p222 = por %p220, %p221
      %p224 = scmp.ne.s32.totalorder %s207, %s223
      %p225 = scmp.eq.s32.totalorder %s21, 0
      %p226 = por %p224, %p225
      %s227 = ssub.s32 %s22, %s34
      %s228 = ssub.s32 %s23, %s30
      %s229 = sor.u32 %s227, %s228
      %p230 = scmp.eq.s32.totalorder %s229, 0
      %s232 = sadd.s32 %s231, 1
      %s233 = scalar_select %p230, %s231, %s232
      %p236 = pneg %p230
      %p237 = scmp.eq.s32.totalorder %s15, 3
      %p238 = por %p236, %p237
      %p239 = scmp.ne.s32.totalorder %s231, %s234
      %p240 = scmp.eq.s32.totalorder %s15, 0
      %p241 = por %p239, %p240
      %p242 = scmp.ne.s32.totalorder %s231, %s234
      %p243 = scmp.eq.s32.totalorder %s20, 3
      %p244 = por %p242, %p243
      %p245 = scmp.ne.s32.totalorder %s234, %s235
      %p246 = scmp.eq.s32.totalorder %s20, 0
      %p247 = por %p245, %p246
      %p248 = scmp.ne.s32.totalorder %s234, %s235
      %p249 = scmp.eq.s32.totalorder %s21, 3
      %p250 = por %p248, %p249
      %p252 = scmp.ne.s32.totalorder %s235, %s251
      %p253 = scmp.eq.s32.totalorder %s21, 0
      %p254 = por %p252, %p253
      %p255 = scmp.le.s32.totalorder 1, %s15
      %p256 = scmp.lt.s32.totalorder %s15, 5
      %p257 = pnand %p255, %p256
      %p258 = pneg %p257
      // Predicated region
      $region9: #{_lambda_.2} parent=5 // pred_check
        _
      $region10: #{_lambda_.2} parent=5 // pred_check_branch
        %260 = sbr.rel (%p257) target = $region12
      $region11: #{_lambda_.2} parent=5 // pred_region
        %s261 = ssub.s32 %s15, 1
        // Predicated region
        $region13: #{_lambda_.2} parent=11 // pred_check
          %p262 = pneg %p128
        $region14: #{_lambda_.2} parent=11 // pred_check_branch
          %264 = sbr.rel (%p262) target = $region16
        $region15: #{_lambda_.2} parent=11 // pred_region
          _
        $region16: #{_lambda_.2} parent=11 // pred_fallthru
          _
        // Predicated region
        $region17: #{_lambda_.2} parent=11 // pred_check
          %p265 = pneg %p149
        $region18: #{_lambda_.2} parent=11 // pred_check_branch
          %267 = sbr.rel (%p265) target = $region20
        $region19: #{_lambda_.2} parent=11 // pred_region
          _
        $region20: #{_lambda_.2} parent=11 // pred_fallthru
          _
        // Predicated region
        $region21: #{_lambda_.2} parent=11 // pred_check
          %p268 = pneg %p170
        $region22: #{_lambda_.2} parent=11 // pred_check_branch
          %270 = sbr.rel (%p268) target = $region24
        $region23: #{_lambda_.2} parent=11 // pred_region
          _
        $region24: #{_lambda_.2} parent=11 // pred_fallthru
          _
        // Predicated region
        $region25: #{_lambda_.2} parent=11 // pred_check
          %p271 = pneg %p191
        $region26: #{_lambda_.2} parent=11 // pred_check_branch
          %273 = sbr.rel (%p271) target = $region28
        $region27: #{_lambda_.2} parent=11 // pred_region
          _
        $region28: #{_lambda_.2} parent=11 // pred_fallthru
          _
      $region12: #{_lambda_.2} parent=5 // pred_fallthru
        _
      %p274 = scmp.lt.s32.totalorder %s15, 4
      // Predicated region
      $region29: #{_lambda_.2} parent=5 // pred_check
        %p275 = pneg %p274
      $region30: #{_lambda_.2} parent=5 // pred_check_branch
        %277 = sbr.rel (%p275) target = $region32
      $region31: #{_lambda_.2} parent=5 // pred_region
        // Predicated region
        $region33: #{_lambda_.2} parent=31 // pred_check
          %p278 = pneg %p49
        $region34: #{_lambda_.2} parent=31 // pred_check_branch
          %280 = sbr.rel (%p278) target = $region36
        $region35: #{_lambda_.2} parent=31 // pred_region
          %s281 = sand.u32 %s39, 1
          %s282 = sand.u32 %s39, 1
          %s283 = smul.addr %s282, 64
          %s284 = scalar_lea.vmem [#allocation2], %s283
          %s285 = smul.addr %s22, 16
          %s286 = sadd.s32 %s23, %s285
          %s287 = smul.addr %s286, 8
          %s288 = scalar_lea.vmem %s0, %s287
          // Predicated region
          $region37: #{_lambda_.2} parent=35 // pred_check
            _
          $region38: #{_lambda_.2} parent=35 // pred_check_branch
            %290 = sbr.rel (0) target = $region40
          $region39: #{_lambda_.2} parent=35 // pred_region
            // Predicated region
            $region41: #{_lambda_.2} parent=39 // pred_check
              _
            $region42: #{_lambda_.2} parent=39 // pred_check_branch
              %292 = sbr.rel (0) target = $region44
            $region43: #{_lambda_.2} parent=39 // pred_region
              // Predicated region
              $region56: #{_lambda_.2} parent=43 // pred_check
                _
              $region57: #{_lambda_.2} parent=43 // pred_check_branch
                %321 = sbr.rel (0) target = $region59
              $region58: #{_lambda_.2} parent=43 // pred_region
                loop: start=0, step=1, limit=1
                $region60: #{_lambda_.2} parent=58 // loop_pre_header
                  _
                $region61: #{_lambda_.2} parent=58 // loop_header
                  %s323 = sphi 0, %s327
                  %p324 = scmp.ge.s32.totalorder %s323, 1
                  %s328 = sphi %s288, %s288
                  %s329 = sphi %s284, %s284
                $region62: #{_lambda_.2} parent=58 // loop_header_branch
                  %326 = sbr.rel (%p324) target = $region66
                $region63: #{_lambda_.2} parent=58 // loop_body
                  %v330 = vld [vmem:[%s328] sm:$0xff]
                  %331 = vst [vmem:[%s329] sm:$0xff] %v330
                  %v332 = vld [vmem:[%s328 + $0x10] sm:$0xff]
                  %333 = vst [vmem:[%s329 + $0x8] sm:$0xff] %v332
                  %v334 = vld [vmem:[%s328 + $0x20] sm:$0xff]
                  %335 = vst [vmem:[%s329 + $0x10] sm:$0xff] %v334
                  %v336 = vld [vmem:[%s328 + $0x30] sm:$0xff]
                  %337 = vst [vmem:[%s329 + $0x18] sm:$0xff] %v336
                  %v338 = vld [vmem:[%s328 + $0x40] sm:$0xff]
                  %339 = vst [vmem:[%s329 + $0x20] sm:$0xff] %v338
                  %v340 = vld [vmem:[%s328 + $0x50] sm:$0xff]
                  %341 = vst [vmem:[%s329 + $0x28] sm:$0xff] %v340
                  %v342 = vld [vmem:[%s328 + $0x60] sm:$0xff]
                  %343 = vst [vmem:[%s329 + $0x30] sm:$0xff] %v342
                  %v344 = vld [vmem:[%s328 + $0x70] sm:$0xff]
                  %345 = vst [vmem:[%s329 + $0x38] sm:$0xff] %v344
                $region64: #{_lambda_.2} parent=58 // loop_footer
                  %s327 = sadd.s32 1, %s323
                $region65: #{_lambda_.2} parent=58 // loop_footer_branch
                  %322 = sbr.rel target = $region61
                $region66: #{_lambda_.2} parent=58 // loop_exit
                  _
              $region59: #{_lambda_.2} parent=43 // pred_fallthru
                _
              // Predicated region
              $region67: #{_lambda_.2} parent=43 // pred_check
                _
              $region68: #{_lambda_.2} parent=43 // pred_check_branch
                %347 = sbr.rel target = $region70
              $region69: #{_lambda_.2} parent=43 // pred_region
                _
              $region70: #{_lambda_.2} parent=43 // pred_fallthru
                _
            $region44: #{_lambda_.2} parent=39 // pred_fallthru
              _
            // Predicated region
            $region45: #{_lambda_.2} parent=39 // pred_check
              _
            $region46: #{_lambda_.2} parent=39 // pred_check_branch
              %294 = sbr.rel target = $region48
            $region47: #{_lambda_.2} parent=39 // pred_region
              loop: start=0, step=1, limit=1
              $region49: #{_lambda_.2} parent=47 // loop_pre_header
                _
              $region50: #{_lambda_.2} parent=47 // loop_header
                %s297 = sphi 0, %s301
                %p298 = scmp.ge.s32.totalorder %s297, 1
                %s302 = sphi %s288, %s288
                %s303 = sphi %s284, %s284
              $region51: #{_lambda_.2} parent=47 // loop_header_branch
                %300 = sbr.rel (%p298) target = $region55
              $region52: #{_lambda_.2} parent=47 // loop_body
                %v304 = vld [vmem:[%s302] sm:$0xff]
                %305 = vst [vmem:[%s303] sm:$0xff] %v304
                %v306 = vld [vmem:[%s302 + $0x10] sm:$0xff]
                %307 = vst [vmem:[%s303 + $0x8] sm:$0xff] %v306
                %v308 = vld [vmem:[%s302 + $0x20] sm:$0xff]
                %309 = vst [vmem:[%s303 + $0x10] sm:$0xff] %v308
                %v310 = vld [vmem:[%s302 + $0x30] sm:$0xff]
                %311 = vst [vmem:[%s303 + $0x18] sm:$0xff] %v310
                %v312 = vld [vmem:[%s302 + $0x40] sm:$0xff]
                %313 = vst [vmem:[%s303 + $0x20] sm:$0xff] %v312
                %v314 = vld [vmem:[%s302 + $0x50] sm:$0xff]
                %315 = vst [vmem:[%s303 + $0x28] sm:$0xff] %v314
                %v316 = vld [vmem:[%s302 + $0x60] sm:$0xff]
                %317 = vst [vmem:[%s303 + $0x30] sm:$0xff] %v316
                %v318 = vld [vmem:[%s302 + $0x70] sm:$0xff]
                %319 = vst [vmem:[%s303 + $0x38] sm:$0xff] %v318
              $region53: #{_lambda_.2} parent=47 // loop_footer
                %s301 = sadd.s32 1, %s297
              $region54: #{_lambda_.2} parent=47 // loop_footer_branch
                %296 = sbr.rel target = $region50
              $region55: #{_lambda_.2} parent=47 // loop_exit
                _
            $region48: #{_lambda_.2} parent=39 // pred_fallthru
              _
          $region40: #{_lambda_.2} parent=35 // pred_fallthru
            _
          %348 = vnop
        $region36: #{_lambda_.2} parent=31 // pred_fallthru
          _
        // Predicated region
        $region71: #{_lambda_.2} parent=31 // pred_check
          %p349 = pneg %p75
        $region72: #{_lambda_.2} parent=31 // pred_check_branch
          %351 = sbr.rel (%p349) target = $region74
        $region73: #{_lambda_.2} parent=31 // pred_region
          %p352 = scmp.lt.s32.totalorder %s22, 1
          %s353 = scalar_select %p352, %s22, 1
          %s354 = smul.addr %s353, 8
          %s355 = smul.addr %s354, 8
          %s356 = scalar_lea.vmem %s1, %s355
        $region74: #{_lambda_.2} parent=31 // pred_fallthru
          _
        // Predicated region
        $region75: #{_lambda_.2} parent=31 // pred_check
          %p357 = pneg %p101
        $region76: #{_lambda_.2} parent=31 // pred_check_branch
          %359 = sbr.rel (%p357) target = $region78
        $region77: #{_lambda_.2} parent=31 // pred_region
          %p360 = scmp.lt.s32.totalorder %s22, 1
          %s361 = scalar_select %p360, %s22, 1
          %s362 = smul.addr %s361, 8
          %s363 = smul.addr %s362, 8
          %s364 = scalar_lea.vmem %s2, %s363
        $region78: #{_lambda_.2} parent=31 // pred_fallthru
          _
      $region32: #{_lambda_.2} parent=5 // pred_fallthru
        _
      %p365 = scmp.le.s32.totalorder 1, %s15
      %p366 = scmp.lt.s32.totalorder %s15, 5
      %p367 = pnand %p365, %p366
      %p368 = pneg %p367
      // Predicated region
      $region79: #{_lambda_.2} parent=5 // pred_check
        _
      $region80: #{_lambda_.2} parent=5 // pred_check_branch
        %370 = sbr.rel (%p367) target = $region82
      $region81: #{_lambda_.2} parent=5 // pred_region
        %s371 = ssub.s32 %s15, 1
        %s372 = sand.u32 %s42, 1
        %s373 = sand.u32 %s42, 1
        %s374 = smul.addr %s373, 64
        %s375 = scalar_lea.vmem [#allocation2], %s374
        // Predicated region
        $region83: #{_lambda_.2} parent=81 // pred_check
          %p376 = pneg %p55
        $region84: #{_lambda_.2} parent=81 // pred_check_branch
          %378 = sbr.rel (%p376) target = $region86
        $region85: #{_lambda_.2} parent=81 // pred_region
          _
        $region86: #{_lambda_.2} parent=81 // pred_fallthru
          _
        %s379 = sand.u32 %s42, 1
        %s380 = sand.u32 %s42, 1
        %s381 = smul.addr %s380, 64
        %s382 = scalar_lea.vmem [#allocation2], %s381
        %p383 = pneg %p55
        %p384 = pneg %p52
        %p385 = scmp.lt.s32.totalorder %s24, 1
        %s386 = scalar_select %p385, %s24, 1
        %s387 = smul.addr %s386, 8
        %s388 = smul.addr %s387, 8
        %s389 = scalar_lea.vmem %s1, %s388
        %p390 = pneg %p81
        %p391 = pneg %p78
        %p392 = scmp.lt.s32.totalorder %s24, 1
        %s393 = scalar_select %p392, %s24, 1
        %s394 = smul.addr %s393, 8
        %s395 = smul.addr %s394, 8
        %s396 = scalar_lea.vmem %s2, %s395
        %p397 = pneg %p107
        %p398 = pneg %p104
        %p399 = pneg %p128
        %p400 = pneg %p125
        %p401 = pneg %p149
        %p402 = pneg %p146
        %p403 = pneg %p170
        %p404 = pneg %p167
        %p405 = pneg %p191
        %p406 = pneg %p188
        %p407 = pneg %p219
        %p408 = pneg %p216
        %s409 = sand.u32 %s206, 1
        %s410 = sand.u32 %s206, 1
        %s411 = smul.addr %s410, 32
        %s412 = scalar_lea.vmem [#allocation3], %s411
        %p413 = pneg %p247
        %p414 = pneg %p244
        %s415 = smul.u32 16, %s25
        %p416 = scmp.lt.s32.totalorder %s24, 1
        %s417 = scalar_select %p416, %s24, 1
        %p418 = scmp.lt.s32.totalorder %s415, 31
        %s419 = scalar_select %p418, %s415, 31
        %s420 = smul.addr %s417, 32
        %s421 = sadd.s32 %s419, %s420
        %s422 = smul.addr %s421, 4
        %s423 = scalar_lea.vmem %s8, %s422
        %p424 = scmp.lt.s32.totalorder %s24, 1
        %s425 = scalar_select %p424, %s24, 1
        %s426 = smul.addr %s425, 8
        %s427 = smul.addr %s426, 8
        %s428 = scalar_lea.vmem %s1, %s427
        %p429 = scmp.lt.s32.totalorder %s24, 1
        %s430 = scalar_select %p429, %s24, 1
        %s431 = smul.addr %s430, 8
        %s432 = smul.addr %s431, 8
        %s433 = scalar_lea.vmem %s2, %s432
        %s434 = smul.u32 16, %s25
        %p435 = scmp.lt.s32.totalorder %s24, 1
        %s436 = scalar_select %p435, %s24, 1
        %p437 = scmp.lt.s32.totalorder %s434, 31
        %s438 = scalar_select %p437, %s434, 31
        %s439 = smul.addr %s436, 32
        %s440 = sadd.s32 %s438, %s439
        %s441 = smul.addr %s440, 4
        %s442 = scalar_lea.vmem %s8, %s441
        %s443 = smul.u32 16, %s25
        %v445 = vld [vmem:[%s375] sm:$0xff]
        %v446 = vld [vmem:[%s375 + $0x8] sm:$0xff]
        %v447 = vld [vmem:[%s375 + $0x10] sm:$0xff]
        %v448 = vld [vmem:[%s375 + $0x18] sm:$0xff]
        %v449 = vld [vmem:[%s375 + $0x20] sm:$0xff]
        %v450 = vld [vmem:[%s375 + $0x28] sm:$0xff]
        %v451 = vld [vmem:[%s375 + $0x30] sm:$0xff]
        %v452 = vld [vmem:[%s375 + $0x38] sm:$0xff]
        %v453 = vld [vmem:[%s428] sm:$0xff]
        %v454 = vld [vmem:[%s428 + $0x8] sm:$0xff]
        %v455 = vld [vmem:[%s428 + $0x10] sm:$0xff]
        %v456 = vld [vmem:[%s428 + $0x18] sm:$0xff]
        %v457 = vld [vmem:[%s428 + $0x20] sm:$0xff]
        %v458 = vld [vmem:[%s428 + $0x28] sm:$0xff]
        %v459 = vld [vmem:[%s428 + $0x30] sm:$0xff]
        %v460 = vld [vmem:[%s428 + $0x38] sm:$0xff]
        %462 = vset.pattern.permute.xlu0 0
        %463 = vperm.xlu0 %462, %v453
        %v464 = vpop.permute.xlu0 %463
        %467 = vset.pattern.permute.xlu0 0
        %468 = vperm.xlu0 %467, %v454
        %v469 = vpop.permute.xlu0 %468
        %472 = vset.pattern.permute.xlu0 0
        %473 = vperm.xlu0 %472, %v455
        %v474 = vpop.permute.xlu0 %473
        %477 = vset.pattern.permute.xlu0 0
        %478 = vperm.xlu0 %477, %v456
        %v479 = vpop.permute.xlu0 %478
        %482 = vset.pattern.permute.xlu0 0
        %483 = vperm.xlu0 %482, %v457
        %v484 = vpop.permute.xlu0 %483
        %487 = vset.pattern.permute.xlu0 0
        %488 = vperm.xlu0 %487, %v458
        %v489 = vpop.permute.xlu0 %488
        %492 = vset.pattern.permute.xlu0 0
        %493 = vperm.xlu0 %492, %v459
        %v494 = vpop.permute.xlu0 %493
        %497 = vset.pattern.permute.xlu0 0
        %498 = vperm.xlu0 %497, %v460
        %v499 = vpop.permute.xlu0 %498
        %v501 = vmul.f32 %v445, %v464
        %v502 = vmul.f32 %v446, %v469
        %v503 = vmul.f32 %v447, %v474
        %v504 = vmul.f32 %v448, %v479
        %v505 = vmul.f32 %v449, %v484
        %v506 = vmul.f32 %v450, %v489
        %v507 = vmul.f32 %v451, %v494
        %v508 = vmul.f32 %v452, %v499
        %v509 = vld [vmem:[%s433] sm:$0xff]
        %v510 = vld [vmem:[%s433 + $0x8] sm:$0xff]
        %v511 = vld [vmem:[%s433 + $0x10] sm:$0xff]
        %v512 = vld [vmem:[%s433 + $0x18] sm:$0xff]
        %v513 = vld [vmem:[%s433 + $0x20] sm:$0xff]
        %v514 = vld [vmem:[%s433 + $0x28] sm:$0xff]
        %v515 = vld [vmem:[%s433 + $0x30] sm:$0xff]
        %v516 = vld [vmem:[%s433 + $0x38] sm:$0xff]
        %518 = vset.pattern.permute.xlu0 0
        %519 = vperm.xlu0 %518, %v509
        %v520 = vpop.permute.xlu0 %519
        %523 = vset.pattern.permute.xlu0 0
        %524 = vperm.xlu0 %523, %v510
        %v525 = vpop.permute.xlu0 %524
        %528 = vset.pattern.permute.xlu0 0
        %529 = vperm.xlu0 %528, %v511
        %v530 = vpop.permute.xlu0 %529
        %533 = vset.pattern.permute.xlu0 0
        %534 = vperm.xlu0 %533, %v512
        %v535 = vpop.permute.xlu0 %534
        %538 = vset.pattern.permute.xlu0 0
        %539 = vperm.xlu0 %538, %v513
        %v540 = vpop.permute.xlu0 %539
        %543 = vset.pattern.permute.xlu0 0
        %544 = vperm.xlu0 %543, %v514
        %v545 = vpop.permute.xlu0 %544
        %548 = vset.pattern.permute.xlu0 0
        %549 = vperm.xlu0 %548, %v515
        %v550 = vpop.permute.xlu0 %549
        %553 = vset.pattern.permute.xlu0 0
        %554 = vperm.xlu0 %553, %v516
        %v555 = vpop.permute.xlu0 %554
        %v557 = vadd.f32 %v501, %v520
        %v558 = vadd.f32 %v502, %v525
        %v559 = vadd.f32 %v503, %v530
        %v560 = vadd.f32 %v504, %v535
        %v561 = vadd.f32 %v505, %v540
        %v562 = vadd.f32 %v506, %v545
        %v563 = vadd.f32 %v507, %v550
        %v564 = vadd.f32 %v508, %v555
        %v565 = vpack.c.bf16 %v558, %v557
        %v566 = vpack.c.bf16 %v560, %v559
        %v567 = vpack.c.bf16 %v562, %v561
        %v568 = vpack.c.bf16 %v564, %v563
        %569 = vxpose.xlu0.b32.start [1/16] %v557, 128
        %570 = vxpose.xlu0.b32.cont [2/16] %v558, 128
        %571 = vxpose.xlu0.b32.cont [3/16] %v559, 128
        %572 = vxpose.xlu0.b32.cont [4/16] %v560, 128
        %573 = vxpose.xlu0.b32.cont [5/16] %v561, 128
        %574 = vxpose.xlu0.b32.cont [6/16] %v562, 128
        %575 = vxpose.xlu0.b32.cont [7/16] %v563, 128
        %576 = vxpose.xlu0.b32.cont [8/16] %v564, 128
        %577 = vxpose.xlu0.b32.cont [9/16] 0.0, 128
        %578 = vxpose.xlu0.b32.cont [10/16] 0.0, 128
        %579 = vxpose.xlu0.b32.cont [11/16] 0.0, 128
        %580 = vxpose.xlu0.b32.cont [12/16] 0.0, 128
        %581 = vxpose.xlu0.b32.cont [13/16] 0.0, 128
        %582 = vxpose.xlu0.b32.cont [14/16] 0.0, 128
        %583 = vxpose.xlu0.b32.cont [15/16] 0.0, 128
        %584 = vxpose.xlu0.b32.end [16/16] 0.0, 128
        %v585 = vpop.trf.xlu0
        %v586 = vpop.trf.xlu0
        %v587 = vpop.trf.xlu0
        %v588 = vpop.trf.xlu0
        %v589 = vpop.trf.xlu0
        %v590 = vpop.trf.xlu0
        %v591 = vpop.trf.xlu0
        %v592 = vpop.trf.xlu0
        %v593 = vpop.trf.xlu0
        %v594 = vpop.trf.xlu0
        %v595 = vpop.trf.xlu0
        %v596 = vpop.trf.xlu0
        %v597 = vpop.trf.xlu0
        %v598 = vpop.trf.xlu0
        %v599 = vpop.trf.xlu0
        %v600 = vpop.trf.xlu0
        %v601 = vpack.c.bf16 %v586, %v585
        %v602 = vpack.c.bf16 %v588, %v587
        %v603 = vpack.c.bf16 %v590, %v589
        %v604 = vpack.c.bf16 %v592, %v591
        %v605 = vpack.c.bf16 %v594, %v593
        %v606 = vpack.c.bf16 %v596, %v595
        %v607 = vpack.c.bf16 %v598, %v597
        %v608 = vpack.c.bf16 %v600, %v599
        %v609 = vld [vmem:[%s3] sm:$0xf]
        %v610 = vld [vmem:[%s3 + $0x4] sm:$0xf]
        %v611 = vld [vmem:[%s3 + $0x8] sm:$0xf]
        %v612 = vld [vmem:[%s3 + $0xc] sm:$0xf]
        %v613 = vld [vmem:[%s3 + $0x10] sm:$0xf]
        %v614 = vld [vmem:[%s3 + $0x14] sm:$0xf]
        %v615 = vld [vmem:[%s3 + $0x18] sm:$0xf]
        %v616 = vld [vmem:[%s3 + $0x1c] sm:$0xf]
        %v617 = vld [vmem:[%s5] sm:$0xff]
        %v618 = vld [vmem:[%s5 + $0x8] sm:$0xff]
        %v619 = vld [vmem:[%s5 + $0x10] sm:$0xff]
        %v620 = vld [vmem:[%s5 + $0x18] sm:$0xff]
        %v621 = vld [vmem:[%s5 + $0x20] sm:$0xff]
        %v622 = vld [vmem:[%s5 + $0x28] sm:$0xff]
        %v623 = vld [vmem:[%s5 + $0x30] sm:$0xff]
        %v624 = vld [vmem:[%s5 + $0x38] sm:$0xff]
        %626 = vset.pattern.permute.xlu0 0
        %627 = vperm.xlu0 %626, %v617
        %v628 = vpop.permute.xlu0 %627
        %631 = vset.pattern.permute.xlu0 0
        %632 = vperm.xlu0 %631, %v618
        %v633 = vpop.permute.xlu0 %632
        %636 = vset.pattern.permute.xlu0 0
        %637 = vperm.xlu0 %636, %v619
        %v638 = vpop.permute.xlu0 %637
        %641 = vset.pattern.permute.xlu0 0
        %642 = vperm.xlu0 %641, %v620
        %v643 = vpop.permute.xlu0 %642
        %646 = vset.pattern.permute.xlu0 0
        %647 = vperm.xlu0 %646, %v621
        %v648 = vpop.permute.xlu0 %647
        %651 = vset.pattern.permute.xlu0 0
        %652 = vperm.xlu0 %651, %v622
        %v653 = vpop.permute.xlu0 %652
        %656 = vset.pattern.permute.xlu0 0
        %657 = vperm.xlu0 %656, %v623
        %v658 = vpop.permute.xlu0 %657
        %661 = vset.pattern.permute.xlu0 0
        %662 = vperm.xlu0 %661, %v624
        %v663 = vpop.permute.xlu0 %662
        %v673 = vunpack.c.l.b16 %v609
        %v674 = vunpack.c.l.b16 %v610
        %v675 = vunpack.c.l.b16 %v611
        %v676 = vunpack.c.l.b16 %v612
        %v677 = vunpack.c.l.b16 %v613
        %v678 = vunpack.c.l.b16 %v614
        %v679 = vunpack.c.l.b16 %v615
        %v680 = vunpack.c.l.b16 %v616
        %v681 = vpack.c.b16 %v674, %v673
        %v682 = vpack.c.b16 %v676, %v675
        %v683 = vpack.c.b16 %v678, %v677
        %v684 = vpack.c.b16 %v680, %v679
        %vm685 = vcmask 523264
        %v687 = vsel %vm685, %v681, 0
        %v690 = vsel %vm685, %v682, 0
        %v693 = vsel %vm685, %v683, 0
        %v696 = vsel %vm685, %v684, 0
        %698 = vmatprep.subr.bf16.mxu0 0
        %699 = vmatpush1.bf16.msra.mxu0 %v565
        %700 = vmatprep.subr.bf16.mxu0 0
        %701 = vmatpush1.bf16.msra.mxu0 %v566
        %702 = vmatprep.subr.bf16.mxu0 0
        %703 = vmatpush1.bf16.msra.mxu0 %v567
        %704 = vmatprep.subr.bf16.mxu0 0
        %705 = vmatpush1.bf16.msra.mxu0 %v568
        %706 = vmatprep.subr.bf16.mxu0 0
        %707 = vmatpush1.bf16.msra.mxu0 0
        %708 = vmatprep.subr.bf16.mxu0 0
        %709 = vmatpush1.bf16.msra.mxu0 0
        %710 = vmatprep.subr.bf16.mxu0 0
        %711 = vmatpush1.bf16.msra.mxu0 0
        %712 = vmatprep.subr.bf16.mxu0 0
        %713 = vmatpush1.bf16.msra.mxu0 0
        %714 = vmatprep.subr.bf16.mxu0 0
        %715 = vmatpush1.bf16.msra.mxu0 0
        %716 = vmatprep.subr.bf16.mxu0 0
        %717 = vmatpush1.bf16.msra.mxu0 0
        %718 = vmatprep.subr.bf16.mxu0 0
        %719 = vmatpush1.bf16.msra.mxu0 0
        %720 = vmatprep.subr.bf16.mxu0 0
        %721 = vmatpush1.bf16.msra.mxu0 0
        %722 = vmatprep.subr.bf16.mxu0 0
        %723 = vmatpush1.bf16.msra.mxu0 0
        %724 = vmatprep.subr.bf16.mxu0 0
        %725 = vmatpush1.bf16.msra.mxu0 0
        %726 = vmatprep.subr.bf16.mxu0 0
        %727 = vmatpush1.bf16.msra.mxu0 0
        %728 = vmatprep.subr.bf16.mxu0 0
        %729 = vmatpush1.bf16.msra.mxu0 0
        %730 = vmatprep.mubr.bf16.mxu0 0
        %731 = vmatmul.mubr.bf16.gmra.mrb[0].mxu0 %v687
        %v732 = vpop.f32.mrb[0].mxu0
        %v733 = vadd.f32 %v628, %v732
        %v734 = vpop.f32.mrb[0].mxu0
        %v735 = vpop.f32.mrb[0].mxu0
        %v736 = vadd.f32 %v633, %v735
        %v737 = vpop.f32.mrb[0].mxu0
        %738 = vmatprep.mubr.bf16.mxu0 0
        %739 = vmatmul.mubr.bf16.gmra.mrb[0].mxu0 %v690
        %v740 = vpop.f32.mrb[0].mxu0
        %v741 = vadd.f32 %v638, %v740
        %v742 = vpop.f32.mrb[0].mxu0
        %v743 = vpop.f32.mrb[0].mxu0
        %v744 = vadd.f32 %v643, %v743
        %v745 = vpop.f32.mrb[0].mxu0
        %746 = vmatprep.mubr.bf16.mxu0 0
        %747 = vmatmul.mubr.bf16.gmra.mrb[0].mxu0 %v693
        %v748 = vpop.f32.mrb[0].mxu0
        %v749 = vadd.f32 %v648, %v748
        %v750 = vpop.f32.mrb[0].mxu0
        %v751 = vpop.f32.mrb[0].mxu0
        %v752 = vadd.f32 %v653, %v751
        %v753 = vpop.f32.mrb[0].mxu0
        %754 = vmatprep.mubr.bf16.mxu0 0
        %755 = vmatmul.mubr.bf16.gmra.mrb[0].mxu0 %v696
        %v756 = vpop.f32.mrb[0].mxu0
        %v757 = vadd.f32 %v658, %v756
        %v758 = vpop.f32.mrb[0].mxu0
        %v759 = vpop.f32.mrb[0].mxu0
        %v760 = vadd.f32 %v663, %v759
        %v761 = vpop.f32.mrb[0].mxu0
        %762 = vdwg.mxu0
        %v763 = vld [vmem:[%s4] sm:$0xf]
        %v764 = vld [vmem:[%s4 + $0x4] sm:$0xf]
        %v765 = vld [vmem:[%s4 + $0x8] sm:$0xf]
        %v766 = vld [vmem:[%s4 + $0xc] sm:$0xf]
        %v767 = vld [vmem:[%s4 + $0x10] sm:$0xf]
        %v768 = vld [vmem:[%s4 + $0x14] sm:$0xf]
        %v769 = vld [vmem:[%s4 + $0x18] sm:$0xf]
        %v770 = vld [vmem:[%s4 + $0x1c] sm:$0xf]
        %v771 = vld [vmem:[%s6] sm:$0x1]
        %v773 = vlaneseq
        %v774 = vshrl.u32 %v773, 7
        %v775 = vsub.s32 0, %v774
        %v776 = vrot.slane %v771, %v775
        %v786 = vunpack.c.l.b16 %v763
        %v787 = vunpack.c.l.b16 %v764
        %v788 = vunpack.c.l.b16 %v765
        %v789 = vunpack.c.l.b16 %v766
        %v790 = vunpack.c.l.b16 %v767
        %v791 = vunpack.c.l.b16 %v768
        %v792 = vunpack.c.l.b16 %v769
        %v793 = vunpack.c.l.b16 %v770
        %v794 = vpack.c.b16 %v787, %v786
        %v795 = vpack.c.b16 %v789, %v788
        %v796 = vpack.c.b16 %v791, %v790
        %v797 = vpack.c.b16 %v793, %v792
        %v803 = vsel %vm685, %v601, 0
        %v806 = vsel %vm685, %v602, 0
        %v809 = vsel %vm685, %v603, 0
        %v812 = vsel %vm685, %v604, 0
        %v815 = vsel %vm685, %v605, 0
        %v818 = vsel %vm685, %v606, 0
        %v821 = vsel %vm685, %v607, 0
        %v824 = vsel %vm685, %v608, 0
        %826 = vmatprep.subr.bf16.mxu0 0
        %827 = vmatpush1.bf16.msra.mxu0 %v794
        %828 = vmatprep.subr.bf16.mxu0 0
        %829 = vmatpush1.bf16.msra.mxu0 %v795
        %830 = vmatprep.subr.bf16.mxu0 0
        %831 = vmatpush1.bf16.msra.mxu0 %v796
        %832 = vmatprep.subr.bf16.mxu0 0
        %833 = vmatpush1.bf16.msra.mxu0 %v797
        %834 = vmatprep.subr.bf16.mxu0 0
        %835 = vmatpush1.bf16.msra.mxu0 0
        %836 = vmatprep.subr.bf16.mxu0 0
        %837 = vmatpush1.bf16.msra.mxu0 0
        %838 = vmatprep.subr.bf16.mxu0 0
        %839 = vmatpush1.bf16.msra.mxu0 0
        %840 = vmatprep.subr.bf16.mxu0 0
        %841 = vmatpush1.bf16.msra.mxu0 0
        %842 = vmatprep.subr.bf16.mxu0 0
        %843 = vmatpush1.bf16.msra.mxu0 0
        %844 = vmatprep.subr.bf16.mxu0 0
        %845 = vmatpush1.bf16.msra.mxu0 0
        %846 = vmatprep.subr.bf16.mxu0 0
        %847 = vmatpush1.bf16.msra.mxu0 0
        %848 = vmatprep.subr.bf16.mxu0 0
        %849 = vmatpush1.bf16.msra.mxu0 0
        %850 = vmatprep.subr.bf16.mxu0 0
        %851 = vmatpush1.bf16.msra.mxu0 0
        %852 = vmatprep.subr.bf16.mxu0 0
        %853 = vmatpush1.bf16.msra.mxu0 0
        %854 = vmatprep.subr.bf16.mxu0 0
        %855 = vmatpush1.bf16.msra.mxu0 0
        %856 = vmatprep.subr.bf16.mxu0 0
        %857 = vmatpush1.bf16.msra.mxu0 0
        %858 = vmatprep.mubr.bf16.mxu0 0
        %859 = vmatmul.mubr.bf16.gmra.mrb[0].mxu0 %v803
        %v860 = vpop.f32.mrb[0].mxu0
        %v861 = vadd.f32 %v776, %v860
        %v862 = vpop.f32.mrb[0].mxu0
        %v863 = vpop.f32.mrb[0].mxu0
        %v864 = vadd.f32 %v776, %v863
        %v865 = vpop.f32.mrb[0].mxu0
        %866 = vmatprep.mubr.bf16.mxu0 0
        %867 = vmatmul.mubr.bf16.gmra.mrb[0].mxu0 %v806
        %v868 = vpop.f32.mrb[0].mxu0
        %v869 = vadd.f32 %v776, %v868
        %v870 = vpop.f32.mrb[0].mxu0
        %v871 = vpop.f32.mrb[0].mxu0
        %v872 = vadd.f32 %v776, %v871
        %v873 = vpop.f32.mrb[0].mxu0
        %874 = vmatprep.mubr.bf16.mxu0 0
        %875 = vmatmul.mubr.bf16.gmra.mrb[0].mxu0 %v809
        %v876 = vpop.f32.mrb[0].mxu0
        %v877 = vadd.f32 %v776, %v876
        %v878 = vpop.f32.mrb[0].mxu0
        %v879 = vpop.f32.mrb[0].mxu0
        %v880 = vadd.f32 %v776, %v879
        %v881 = vpop.f32.mrb[0].mxu0
        %882 = vmatprep.mubr.bf16.mxu0 0
        %883 = vmatmul.mubr.bf16.gmra.mrb[0].mxu0 %v812
        %v884 = vpop.f32.mrb[0].mxu0
        %v885 = vadd.f32 %v776, %v884
        %v886 = vpop.f32.mrb[0].mxu0
        %v887 = vpop.f32.mrb[0].mxu0
        %v888 = vadd.f32 %v776, %v887
        %v889 = vpop.f32.mrb[0].mxu0
        %890 = vmatprep.mubr.bf16.mxu0 0
        %891 = vmatmul.mubr.bf16.gmra.mrb[0].mxu0 %v815
        %v892 = vpop.f32.mrb[0].mxu0
        %v893 = vadd.f32 %v776, %v892
        %v894 = vpop.f32.mrb[0].mxu0
        %v895 = vpop.f32.mrb[0].mxu0
        %v896 = vadd.f32 %v776, %v895
        %v897 = vpop.f32.mrb[0].mxu0
        %898 = vmatprep.mubr.bf16.mxu0 0
        %899 = vmatmul.mubr.bf16.gmra.mrb[0].mxu0 %v818
        %v900 = vpop.f32.mrb[0].mxu0
        %v901 = vadd.f32 %v776, %v900
        %v902 = vpop.f32.mrb[0].mxu0
        %v903 = vpop.f32.mrb[0].mxu0
        %v904 = vadd.f32 %v776, %v903
        %v905 = vpop.f32.mrb[0].mxu0
        %906 = vmatprep.mubr.bf16.mxu0 0
        %907 = vmatmul.mubr.bf16.gmra.mrb[0].mxu0 %v821
        %v908 = vpop.f32.mrb[0].mxu0
        %v909 = vadd.f32 %v776, %v908
        %v910 = vpop.f32.mrb[0].mxu0
        %v911 = vpop.f32.mrb[0].mxu0
        %v912 = vadd.f32 %v776, %v911
        %v913 = vpop.f32.mrb[0].mxu0
        %914 = vmatprep.mubr.bf16.mxu0 0
        %915 = vmatmul.mubr.bf16.gmra.mrb[0].mxu0 %v824
        %v916 = vpop.f32.mrb[0].mxu0
        %v917 = vadd.f32 %v776, %v916
        %v918 = vpop.f32.mrb[0].mxu0
        %v919 = vpop.f32.mrb[0].mxu0
        %v920 = vadd.f32 %v776, %v919
        %v921 = vpop.f32.mrb[0].mxu0
        %922 = vdwg.mxu0
        %v923 = vpack.c.bf16 %v736, %v733
        %v924 = vpack.c.bf16 %v744, %v741
        %v925 = vpack.c.bf16 %v752, %v749
        %v926 = vpack.c.bf16 %v760, %v757
        %v931 = vunpack.c.l.b16 %v923
        %v932 = vunpack.c.h.b16 %v923
        %v933 = vunpack.c.l.b16 %v924
        %v934 = vunpack.c.h.b16 %v924
        %v935 = vunpack.c.l.b16 %v925
        %v936 = vunpack.c.h.b16 %v925
        %v937 = vunpack.c.l.b16 %v926
        %v938 = vunpack.c.h.b16 %v926
        %v939 = vpack.c.b16 %v931, %v931
        %v940 = vpack.c.b16 %v932, %v932
        %v941 = vpack.c.b16 %v933, %v933
        %v942 = vpack.c.b16 %v934, %v934
        %v943 = vpack.c.b16 %v935, %v935
        %v944 = vpack.c.b16 %v936, %v936
        %v945 = vpack.c.b16 %v937, %v937
        %v946 = vpack.c.b16 %v938, %v938
        %955 = vst [vmem:[%s412] sm:$0xf] %v939
        %956 = vst [vmem:[%s412 + $0x4] sm:$0xf] %v940
        %957 = vst [vmem:[%s412 + $0x8] sm:$0xf] %v941
        %958 = vst [vmem:[%s412 + $0xc] sm:$0xf] %v942
        %959 = vst [vmem:[%s412 + $0x10] sm:$0xf] %v943
        %960 = vst [vmem:[%s412 + $0x14] sm:$0xf] %v944
        %961 = vst [vmem:[%s412 + $0x18] sm:$0xf] %v945
        %962 = vst [vmem:[%s412 + $0x1c] sm:$0xf] %v946
        %v963 = vpack.c.bf16 %v864, %v861
        %v964 = vpack.c.bf16 %v872, %v869
        %v965 = vpack.c.bf16 %v880, %v877
        %v966 = vpack.c.bf16 %v888, %v885
        %v967 = vpack.c.bf16 %v896, %v893
        %v968 = vpack.c.bf16 %v904, %v901
        %v969 = vpack.c.bf16 %v912, %v909
        %v970 = vpack.c.bf16 %v920, %v917
        %v979 = vunpack.c.l.b16 %v963
        %v980 = vunpack.c.h.b16 %v963
        %v981 = vunpack.c.l.b16 %v964
        %v982 = vunpack.c.h.b16 %v964
        %v983 = vunpack.c.l.b16 %v965
        %v984 = vunpack.c.h.b16 %v965
        %v985 = vunpack.c.l.b16 %v966
        %v986 = vunpack.c.h.b16 %v966
        %v987 = vunpack.c.l.b16 %v967
        %v988 = vunpack.c.h.b16 %v967
        %v989 = vunpack.c.l.b16 %v968
        %v990 = vunpack.c.h.b16 %v968
        %v991 = vunpack.c.l.b16 %v969
        %v992 = vunpack.c.h.b16 %v969
        %v993 = vunpack.c.l.b16 %v970
        %v994 = vunpack.c.h.b16 %v970
        %v995 = vpack.c.b16 %v979, %v979
        %v996 = vpack.c.b16 %v980, %v980
        %v997 = vpack.c.b16 %v981, %v981
        %v998 = vpack.c.b16 %v982, %v982
        %v999 = vpack.c.b16 %v983, %v983
        %v1000 = vpack.c.b16 %v984, %v984
        %v1001 = vpack.c.b16 %v985, %v985
        %v1002 = vpack.c.b16 %v986, %v986
        %v1003 = vpack.c.b16 %v987, %v987
        %v1004 = vpack.c.b16 %v988, %v988
        %v1005 = vpack.c.b16 %v989, %v989
        %v1006 = vpack.c.b16 %v990, %v990
        %v1007 = vpack.c.b16 %v991, %v991
        %v1008 = vpack.c.b16 %v992, %v992
        %v1009 = vpack.c.b16 %v993, %v993
        %v1010 = vpack.c.b16 %v994, %v994
        %vm1027 = vcmask 519168
        %1028 = vst.msk [vmem:[%s442] sm:$0xf] %vm1027, %v995
        %1029 = vst.msk [vmem:[%s442 + $0x4] sm:$0xf] %vm1027, %v996
        %1030 = vst.msk [vmem:[%s442 + $0x8] sm:$0xf] %vm1027, %v997
        %1031 = vst.msk [vmem:[%s442 + $0xc] sm:$0xf] %vm1027, %v998
        %1032 = vst.msk [vmem:[%s442 + $0x10] sm:$0xf] %vm1027, %v999
        %1033 = vst.msk [vmem:[%s442 + $0x14] sm:$0xf] %vm1027, %v1000
        %1034 = vst.msk [vmem:[%s442 + $0x18] sm:$0xf] %vm1027, %v1001
        %1035 = vst.msk [vmem:[%s442 + $0x1c] sm:$0xf] %vm1027, %v1002
        %1036 = vst.msk [vmem:[%s442 + $0x20] sm:$0xf] %vm1027, %v1003
        %1037 = vst.msk [vmem:[%s442 + $0x24] sm:$0xf] %vm1027, %v1004
        %1038 = vst.msk [vmem:[%s442 + $0x28] sm:$0xf] %vm1027, %v1005
        %1039 = vst.msk [vmem:[%s442 + $0x2c] sm:$0xf] %vm1027, %v1006
        %1040 = vst.msk [vmem:[%s442 + $0x30] sm:$0xf] %vm1027, %v1007
        %1041 = vst.msk [vmem:[%s442 + $0x34] sm:$0xf] %vm1027, %v1008
        %1042 = vst.msk [vmem:[%s442 + $0x38] sm:$0xf] %vm1027, %v1009
        %1043 = vst.msk [vmem:[%s442 + $0x3c] sm:$0xf] %vm1027, %v1010
        %s1044 = sand.u32 %s206, 1
        %s1045 = sand.u32 %s206, 1
        %s1046 = smul.addr %s1045, 32
        %s1047 = scalar_lea.vmem [#allocation3], %s1046
        %s1048 = smul.u32 16, %s25
        %p1049 = scmp.lt.s32.totalorder %s24, 1
        %s1050 = scalar_select %p1049, %s24, 1
        %p1051 = scmp.lt.s32.totalorder %s1048, 31
        %s1052 = scalar_select %p1051, %s1048, 31
        %s1053 = smul.addr %s1050, 32
        %s1054 = sadd.s32 %s1052, %s1053
        %s1055 = smul.addr %s1054, 4
        %s1056 = scalar_lea.vmem %s8, %s1055
        // Predicated region
        $region87: #{_lambda_.2} parent=81 // pred_check
          %p1057 = pneg %p216
        $region88: #{_lambda_.2} parent=81 // pred_check_branch
          %1059 = sbr.rel (%p1057) target = $region90
        $region89: #{_lambda_.2} parent=81 // pred_region
          %s1060 = smul.addr %s24, 16
          %s1061 = sadd.s32 %s25, %s1060
          %s1062 = smul.addr %s1061, 4
          %s1063 = scalar_lea.vmem %s7, %s1062
          // Predicated region
          $region91: #{_lambda_.2} parent=89 // pred_check
            _
          $region92: #{_lambda_.2} parent=89 // pred_check_branch
            %1065 = sbr.rel (0) target = $region94
          $region93: #{_lambda_.2} parent=89 // pred_region
            // Predicated region
            $region95: #{_lambda_.2} parent=93 // pred_check
              _
            $region96: #{_lambda_.2} parent=93 // pred_check_branch
              %1067 = sbr.rel target = $region98
            $region97: #{_lambda_.2} parent=93 // pred_region
              // Predicated region
              $region110: #{_lambda_.2} parent=97 // pred_check
                _
              $region111: #{_lambda_.2} parent=97 // pred_check_branch
                %1096 = sbr.rel (0) target = $region113
              $region112: #{_lambda_.2} parent=97 // pred_region
                loop: start=0, step=1, limit=1
                $region114: #{_lambda_.2} parent=112 // loop_pre_header
                  _
                $region115: #{_lambda_.2} parent=112 // loop_header
                  %s1098 = sphi 0, %s1102
                  %p1099 = scmp.ge.s32.totalorder %s1098, 1
                  %s1103 = sphi %s1047, %s1047
                  %s1104 = sphi %s1063, %s1063
                $region116: #{_lambda_.2} parent=112 // loop_header_branch
                  %1101 = sbr.rel (%p1099) target = $region120
                $region117: #{_lambda_.2} parent=112 // loop_body
                  _
                $region118: #{_lambda_.2} parent=112 // loop_footer
                  %s1102 = sadd.s32 1, %s1098
                $region119: #{_lambda_.2} parent=112 // loop_footer_branch
                  %1097 = sbr.rel target = $region115
                $region120: #{_lambda_.2} parent=112 // loop_exit
                  _
                loop: start=0, step=1, limit=1
                $region121: #{_lambda_.2} parent=112 // loop_pre_header
                  _
                $region122: #{_lambda_.2} parent=112 // loop_header
                  %s1107 = sphi 0, %s1111
                  %p1108 = scmp.ge.s32.totalorder %s1107, 1
                  %s1112 = sphi %s1047, %s1047
                  %s1113 = sphi %s1063, %s1063
                $region123: #{_lambda_.2} parent=112 // loop_header_branch
                  %1110 = sbr.rel (%p1108) target = $region127
                $region124: #{_lambda_.2} parent=112 // loop_body
                  %v1114 = vld [vmem:[%s1112] sm:$0xf]
                  %1115 = vst [vmem:[%s1113] sm:$0xf] %v1114
                  %v1116 = vld [vmem:[%s1112 + $0x4] sm:$0xf]
                  %1117 = vst [vmem:[%s1113 + $0x8] sm:$0xf] %v1116
                  %v1118 = vld [vmem:[%s1112 + $0x8] sm:$0xf]
                  %1119 = vst [vmem:[%s1113 + $0x10] sm:$0xf] %v1118
                  %v1120 = vld [vmem:[%s1112 + $0xc] sm:$0xf]
                  %1121 = vst [vmem:[%s1113 + $0x18] sm:$0xf] %v1120
                  %v1122 = vld [vmem:[%s1112 + $0x10] sm:$0xf]
                  %1123 = vst [vmem:[%s1113 + $0x20] sm:$0xf] %v1122
                  %v1124 = vld [vmem:[%s1112 + $0x14] sm:$0xf]
                  %1125 = vst [vmem:[%s1113 + $0x28] sm:$0xf] %v1124
                  %v1126 = vld [vmem:[%s1112 + $0x18] sm:$0xf]
                  %1127 = vst [vmem:[%s1113 + $0x30] sm:$0xf] %v1126
                  %v1128 = vld [vmem:[%s1112 + $0x1c] sm:$0xf]
                  %1129 = vst [vmem:[%s1113 + $0x38] sm:$0xf] %v1128
                $region125: #{_lambda_.2} parent=112 // loop_footer
                  %s1111 = sadd.s32 1, %s1107
                $region126: #{_lambda_.2} parent=112 // loop_footer_branch
                  %1106 = sbr.rel target = $region122
                $region127: #{_lambda_.2} parent=112 // loop_exit
                  _
              $region113: #{_lambda_.2} parent=97 // pred_fallthru
                _
            $region98: #{_lambda_.2} parent=93 // pred_fallthru
              _
            // Predicated region
            $region99: #{_lambda_.2} parent=93 // pred_check
              _
            $region100: #{_lambda_.2} parent=93 // pred_check_branch
              %1069 = sbr.rel (0) target = $region102
            $region101: #{_lambda_.2} parent=93 // pred_region
              loop: start=0, step=1, limit=1
              $region103: #{_lambda_.2} parent=101 // loop_pre_header
                _
              $region104: #{_lambda_.2} parent=101 // loop_header
                %s1072 = sphi 0, %s1076
                %p1073 = scmp.ge.s32.totalorder %s1072, 1
                %s1077 = sphi %s1047, %s1047
                %s1078 = sphi %s1063, %s1063
              $region105: #{_lambda_.2} parent=101 // loop_header_branch
                %1075 = sbr.rel (%p1073) target = $region109
              $region106: #{_lambda_.2} parent=101 // loop_body
                %v1079 = vld [vmem:[%s1077] sm:$0xf]
                %1080 = vst [vmem:[%s1078] sm:$0xf] %v1079
                %v1081 = vld [vmem:[%s1077 + $0x4] sm:$0xf]
                %1082 = vst [vmem:[%s1078 + $0x8] sm:$0xf] %v1081
                %v1083 = vld [vmem:[%s1077 + $0x8] sm:$0xf]
                %1084 = vst [vmem:[%s1078 + $0x10] sm:$0xf] %v1083
                %v1085 = vld [vmem:[%s1077 + $0xc] sm:$0xf]
                %1086 = vst [vmem:[%s1078 + $0x18] sm:$0xf] %v1085
                %v1087 = vld [vmem:[%s1077 + $0x10] sm:$0xf]
                %1088 = vst [vmem:[%s1078 + $0x20] sm:$0xf] %v1087
                %v1089 = vld [vmem:[%s1077 + $0x14] sm:$0xf]
                %1090 = vst [vmem:[%s1078 + $0x28] sm:$0xf] %v1089
                %v1091 = vld [vmem:[%s1077 + $0x18] sm:$0xf]
                %1092 = vst [vmem:[%s1078 + $0x30] sm:$0xf] %v1091
                %v1093 = vld [vmem:[%s1077 + $0x1c] sm:$0xf]
                %1094 = vst [vmem:[%s1078 + $0x38] sm:$0xf] %v1093
              $region107: #{_lambda_.2} parent=101 // loop_footer
                %s1076 = sadd.s32 1, %s1072
              $region108: #{_lambda_.2} parent=101 // loop_footer_branch
                %1071 = sbr.rel target = $region104
              $region109: #{_lambda_.2} parent=101 // loop_exit
                _
            $region102: #{_lambda_.2} parent=93 // pred_fallthru
              _
          $region94: #{_lambda_.2} parent=89 // pred_fallthru
            _
          %1130 = vnop
        $region90: #{_lambda_.2} parent=81 // pred_fallthru
          _
        // Predicated region
        $region128: #{_lambda_.2} parent=81 // pred_check
          %p1131 = pneg %p244
        $region129: #{_lambda_.2} parent=81 // pred_check_branch
          %1133 = sbr.rel (%p1131) target = $region131
        $region130: #{_lambda_.2} parent=81 // pred_region
          %s1134 = smul.u32 16, %s25
        $region131: #{_lambda_.2} parent=81 // pred_fallthru
          _
      $region82: #{_lambda_.2} parent=5 // pred_fallthru
        _
      %p1135 = scmp.le.s32.totalorder 2, %s15
      // Predicated region
      $region132: #{_lambda_.2} parent=5 // pred_check
        %p1136 = pneg %p1135
      $region133: #{_lambda_.2} parent=5 // pred_check_branch
        %1138 = sbr.rel (%p1136) target = $region135
      $region134: #{_lambda_.2} parent=5 // pred_region
        %s1139 = ssub.s32 %s15, 2
        // Predicated region
        $region136: #{_lambda_.2} parent=134 // pred_check
          %p1140 = pneg %p222
        $region137: #{_lambda_.2} parent=134 // pred_check_branch
          %1142 = sbr.rel (%p1140) target = $region139
        $region138: #{_lambda_.2} parent=134 // pred_region
          %s1143 = sand.u32 %s207, 1
          %s1144 = sand.u32 %s207, 1
          %s1145 = smul.addr %s1144, 32
          %s1146 = scalar_lea.vmem [#allocation3], %s1145
        $region139: #{_lambda_.2} parent=134 // pred_fallthru
          _
        // Predicated region
        $region140: #{_lambda_.2} parent=134 // pred_check
          %p1147 = pneg %p250
        $region141: #{_lambda_.2} parent=134 // pred_check_branch
          %1149 = sbr.rel (%p1147) target = $region143
        $region142: #{_lambda_.2} parent=134 // pred_region
          %s1150 = smul.u32 16, %s27
          %p1151 = scmp.lt.s32.totalorder %s26, 1
          %s1152 = scalar_select %p1151, %s26, 1
          %p1153 = scmp.lt.s32.totalorder %s1150, 31
          %s1154 = scalar_select %p1153, %s1150, 31
          %s1155 = smul.addr %s1152, 32
          %s1156 = sadd.s32 %s1154, %s1155
          %s1157 = smul.addr %s1156, 4
          %s1158 = scalar_lea.vmem %s8, %s1157
        $region143: #{_lambda_.2} parent=134 // pred_fallthru
          _
      $region135: #{_lambda_.2} parent=5 // pred_fallthru
        _
    $region6: #{_lambda_.2} parent=1 // loop_footer
      %s19 = sadd.s32 1, %s15
    $region7: #{_lambda_.2} parent=1 // loop_footer_branch
      %14 = sbr.rel target = $region3
    $region8: #{_lambda_.2} parent=1 // loop_exit
      _

// kernel: _lambda_.3
$region0: #{_lambda_.3}
  #allocation0 [shape = 'u32[]', space=smem, size = 0x4, offset = 0x4, fixed_abs, tag = 'smem constant byte address 0x4 - core index']
  #allocation1 [shape = 'u32[144,128]{1,0:T(1,128)}', space=vmem, size = 0x12000, scoped, tag = 'internal scratch']
  #allocation2 [shape = 'bf16[128,64]{1,0:T(16,128)(2,1)}', space=vmem, size = 0x8000, scoped, tag = 'scratch operand']
  #allocation3 [shape = 'f32[128,1]{1,0:T(8,128)}', space=vmem, size = 0x10000, scoped, tag = 'scratch operand']
  #allocation4 [shape = 'f32[128,1]{1,0:T(8,128)}', space=vmem, size = 0x10000, scoped, tag = 'scratch operand']
  #allocation5 [shape = 'f32[128,64]{1,0:T(8,128)}', space=vmem, size = 0x10000, scoped, tag = 'scratch operand']
  %s0 = inlined_call_operand.vmem [shape: f32[2,64,256], index: 0, kind: input, shape index: {}]
  %s1 = inlined_call_operand.vmem [shape: f32[2,64,1], index: 1, kind: input, shape index: {}]
  %s2 = inlined_call_operand.vmem [shape: f32[2,64,1], index: 2, kind: input, shape index: {}]
  %s3 = inlined_call_operand.vmem [shape: bf16[2,64,256], index: 3, kind: input, shape index: {}]
  %s4 = inlined_call_operand.vmem [shape: bf16[2,256,64], index: 4, kind: input, shape index: {}]
  %s5 = inlined_call_operand.vmem [shape: bf16[64,64], index: 5, kind: input, shape index: {}]
  %s6 = inlined_call_operand.vmem [shape: f32[1,64], index: 6, kind: input, shape index: {}]
  %s7 = inlined_call_operand.vmem [shape: bf16[64,64], index: 7, kind: input, shape index: {}]
  %s8 = inlined_call_operand.vmem [shape: f32[1,64], index: 8, kind: input, shape index: {}]
  %s9 = inlined_call_operand.vmem [shape: f32[2,64,256], index: 9, kind: output, shape index: {}]
  %s10 = sld [smem:[#allocation0]]
  $region190: #{_lambda_.3} parent=0
    _
  %s12 = ssub.s32 1, %s10
  %s13 = scalar_select 0, %s12, %s10
  $region1: #{_lambda_.3} parent=0
    #allocation6 [shape = 'u8[65536]{0}', space=vmem, size = 0x10000, scoped, tag = 'input window, operand 0']
    #allocation7 [shape = 'u8[32768]{0}', space=vmem, size = 0x8000, scoped, tag = 'input window, operand 3']
    #allocation8 [shape = 'u8[65536]{0}', space=vmem, size = 0x10000, scoped, tag = 'output window, operand 0']
    loop: start=0, step=1, limit=10
    $region2: #{_lambda_.3} parent=1 // loop_pre_header
      _
    $region3: #{_lambda_.3} parent=1 // loop_header
      %s15 = sphi 0, %s19
      %p16 = scmp.ge.s32.totalorder %s15, 10
      %s22 = sphi 0, %s41
      %s23 = sphi 0, %s37
      %s24 = sphi 0, %s33
      %s25 = sphi 0, %s22
      %s26 = sphi 0, %s23
      %s27 = sphi 0, %s24
      %s28 = sphi 0, %s25
      %s29 = sphi 0, %s26
      %s30 = sphi 0, %s27
      %s46 = sphi 0, %s48
      %s49 = sphi 0, %s46
      %s50 = sphi 0, %s49
      %s66 = sphi 0, %s50
      %s72 = sphi 0, %s74
      %s75 = sphi 0, %s72
      %s76 = sphi 0, %s75
      %s92 = sphi 0, %s76
      %s98 = sphi 0, %s100
      %s101 = sphi 0, %s98
      %s102 = sphi 0, %s101
      %s118 = sphi 0, %s102
      %s126 = sphi 0, %s128
      %s129 = sphi 0, %s126
      %s130 = sphi 0, %s129
      %s146 = sphi 0, %s130
      %s154 = sphi 0, %s156
      %s157 = sphi 0, %s154
      %s158 = sphi 0, %s157
      %s174 = sphi 0, %s158
      %s178 = sphi 0, %s178
      %s180 = sphi 0, %s178
      %s181 = sphi 0, %s180
      %s195 = sphi 0, %s181
      %s199 = sphi 0, %s199
      %s201 = sphi 0, %s199
      %s202 = sphi 0, %s201
      %s216 = sphi 0, %s202
      %s220 = sphi 0, %s220
      %s222 = sphi 0, %s220
      %s223 = sphi 0, %s222
      %s237 = sphi 0, %s223
      %s241 = sphi 0, %s241
      %s243 = sphi 0, %s241
      %s244 = sphi 0, %s243
      %s258 = sphi 0, %s244
      %s266 = sphi 0, %s268
      %s269 = sphi 0, %s266
      %s270 = sphi 0, %s269
      %s286 = sphi 0, %s270
    $region4: #{_lambda_.3} parent=1 // loop_header_branch
      %18 = sbr.rel (%p16) target = $region8
    $region5: #{_lambda_.3} parent=1 // loop_body
      %s20 = ssub.s32 %s15, 1
      %s21 = ssub.s32 %s15, 2
      %s31 = sadd.s32 1, %s24
      %p32 = scmp.ge.s32.totalorder %s31, 2
      %s33 = scalar_select %p32, 0, %s31
      %s34 = sadd.s32 1, %s23
      %s35 = scalar_select %p32, %s34, %s23
      %p36 = scmp.ge.s32.totalorder %s35, 2
      %s37 = scalar_select %p36, 0, %s35
      %s38 = sadd.s32 1, %s22
      %s39 = scalar_select %p36, %s38, %s22
      %p40 = scmp.ge.s32.totalorder %s39, 2
      %s41 = scalar_select %p40, 0, %s39
      %s42 = ssub.s32 %s22, %s41
      %s43 = ssub.s32 %s23, %s37
      %s44 = sor.u32 %s42, %s43
      %p45 = scmp.eq.s32.totalorder %s44, 0
      %s47 = sadd.s32 %s46, 1
      %s48 = scalar_select %p45, %s46, %s47
      %p51 = pneg %p45
      %p52 = scmp.eq.s32.totalorder %s15, 7
      %p53 = por %p51, %p52
      %p54 = scmp.ne.s32.totalorder %s46, %s49
      %p55 = scmp.eq.s32.totalorder %s15, 0
      %p56 = por %p54, %p55
      %p57 = scmp.ne.s32.totalorder %s46, %s49
      %p58 = scmp.eq.s32.totalorder %s20, 7
      %p59 = por %p57, %p58
      %p60 = scmp.ne.s32.totalorder %s49, %s50
      %p61 = scmp.eq.s32.totalorder %s20, 0
      %p62 = por %p60, %p61
      %p63 = scmp.ne.s32.totalorder %s49, %s50
      %p64 = scmp.eq.s32.totalorder %s21, 7
      %p65 = por %p63, %p64
      %p67 = scmp.ne.s32.totalorder %s50, %s66
      %p68 = scmp.eq.s32.totalorder %s21, 0
      %p69 = por %p67, %p68
      %s70 = ssub.s32 %s22, %s41
      %p71 = scmp.eq.s32.totalorder %s70, 0
      %s73 = sadd.s32 %s72, 1
      %s74 = scalar_select %p71, %s72, %s73
      %p77 = pneg %p71
      %p78 = scmp.eq.s32.totalorder %s15, 7
      %p79 = por %p77, %p78
      %p80 = scmp.ne.s32.totalorder %s72, %s75
      %p81 = scmp.eq.s32.totalorder %s15, 0
      %p82 = por %p80, %p81
      %p83 = scmp.ne.s32.totalorder %s72, %s75
      %p84 = scmp.eq.s32.totalorder %s20, 7
      %p85 = por %p83, %p84
      %p86 = scmp.ne.s32.totalorder %s75, %s76
      %p87 = scmp.eq.s32.totalorder %s20, 0
      %p88 = por %p86, %p87
      %p89 = scmp.ne.s32.totalorder %s75, %s76
      %p90 = scmp.eq.s32.totalorder %s21, 7
      %p91 = por %p89, %p90
      %p93 = scmp.ne.s32.totalorder %s76, %s92
      %p94 = scmp.eq.s32.totalorder %s21, 0
      %p95 = por %p93, %p94
      %s96 = ssub.s32 %s22, %s41
      %p97 = scmp.eq.s32.totalorder %s96, 0
      %s99 = sadd.s32 %s98, 1
      %s100 = scalar_select %p97, %s98, %s99
      %p103 = pneg %p97
      %p104 = scmp.eq.s32.totalorder %s15, 7
      %p105 = por %p103, %p104
      %p106 = scmp.ne.s32.totalorder %s98, %s101
      %p107 = scmp.eq.s32.totalorder %s15, 0
      %p108 = por %p106, %p107
      %p109 = scmp.ne.s32.totalorder %s98, %s101
      %p110 = scmp.eq.s32.totalorder %s20, 7
      %p111 = por %p109, %p110
      %p112 = scmp.ne.s32.totalorder %s101, %s102
      %p113 = scmp.eq.s32.totalorder %s20, 0
      %p114 = por %p112, %p113
      %p115 = scmp.ne.s32.totalorder %s101, %s102
      %p116 = scmp.eq.s32.totalorder %s21, 7
      %p117 = por %p115, %p116
      %p119 = scmp.ne.s32.totalorder %s102, %s118
      %p120 = scmp.eq.s32.totalorder %s21, 0
      %p121 = por %p119, %p120
      %s122 = ssub.s32 %s22, %s41
      %s123 = ssub.s32 %s24, %s33
      %s124 = sor.u32 %s122, %s123
      %p125 = scmp.eq.s32.totalorder %s124, 0
      %s127 = sadd.s32 %s126, 1
      %s128 = scalar_select %p125, %s126, %s127
      %p131 = pneg %p125
      %p132 = scmp.eq.s32.totalorder %s15, 7
      %p133 = por %p131, %p132
      %p134 = scmp.ne.s32.totalorder %s126, %s129
      %p135 = scmp.eq.s32.totalorder %s15, 0
      %p136 = por %p134, %p135
      %p137 = scmp.ne.s32.totalorder %s126, %s129
      %p138 = scmp.eq.s32.totalorder %s20, 7
      %p139 = por %p137, %p138
      %p140 = scmp.ne.s32.totalorder %s129, %s130
      %p141 = scmp.eq.s32.totalorder %s20, 0
      %p142 = por %p140, %p141
      %p143 = scmp.ne.s32.totalorder %s129, %s130
      %p144 = scmp.eq.s32.totalorder %s21, 7
      %p145 = por %p143, %p144
      %p147 = scmp.ne.s32.totalorder %s130, %s146
      %p148 = scmp.eq.s32.totalorder %s21, 0
      %p149 = por %p147, %p148
      %s150 = ssub.s32 %s22, %s41
      %s151 = ssub.s32 %s24, %s33
      %s152 = sor.u32 %s150, %s151
      %p153 = scmp.eq.s32.totalorder %s152, 0
      %s155 = sadd.s32 %s154, 1
      %s156 = scalar_select %p153, %s154, %s155
      %p159 = pneg %p153
      %p160 = scmp.eq.s32.totalorder %s15, 7
      %p161 = por %p159, %p160
      %p162 = scmp.ne.s32.totalorder %s154, %s157
      %p163 = scmp.eq.s32.totalorder %s15, 0
      %p164 = por %p162, %p163
      %p165 = scmp.ne.s32.totalorder %s154, %s157
      %p166 = scmp.eq.s32.totalorder %s20, 7
      %p167 = por %p165, %p166
      %p168 = scmp.ne.s32.totalorder %s157, %s158
      %p169 = scmp.eq.s32.totalorder %s20, 0
      %p170 = por %p168, %p169
      %p171 = scmp.ne.s32.totalorder %s157, %s158
      %p172 = scmp.eq.s32.totalorder %s21, 7
      %p173 = por %p171, %p172
      %p175 = scmp.ne.s32.totalorder %s158, %s174
      %p176 = scmp.eq.s32.totalorder %s21, 0
      %p177 = por %p175, %p176
      %s179 = sadd.s32 %s178, 1
      %p182 = scmp.eq.s32.totalorder %s15, 7
      %p183 = scmp.ne.s32.totalorder %s178, %s180
      %p184 = scmp.eq.s32.totalorder %s15, 0
      %p185 = por %p183, %p184
      %p186 = scmp.ne.s32.totalorder %s178, %s180
      %p187 = scmp.eq.s32.totalorder %s20, 7
      %p188 = por %p186, %p187
      %p189 = scmp.ne.s32.totalorder %s180, %s181
      %p190 = scmp.eq.s32.totalorder %s20, 0
      %p191 = por %p189, %p190
      %p192 = scmp.ne.s32.totalorder %s180, %s181
      %p193 = scmp.eq.s32.totalorder %s21, 7
      %p194 = por %p192, %p193
      %p196 = scmp.ne.s32.totalorder %s181, %s195
      %p197 = scmp.eq.s32.totalorder %s21, 0
      %p198 = por %p196, %p197
      %s200 = sadd.s32 %s199, 1
      %p203 = scmp.eq.s32.totalorder %s15, 7
      %p204 = scmp.ne.s32.totalorder %s199, %s201
      %p205 = scmp.eq.s32.totalorder %s15, 0
      %p206 = por %p204, %p205
      %p207 = scmp.ne.s32.totalorder %s199, %s201
      %p208 = scmp.eq.s32.totalorder %s20, 7
      %p209 = por %p207, %p208
      %p210 = scmp.ne.s32.totalorder %s201, %s202
      %p211 = scmp.eq.s32.totalorder %s20, 0
      %p212 = por %p210, %p211
      %p213 = scmp.ne.s32.totalorder %s201, %s202
      %p214 = scmp.eq.s32.totalorder %s21, 7
      %p215 = por %p213, %p214
      %p217 = scmp.ne.s32.totalorder %s202, %s216
      %p218 = scmp.eq.s32.totalorder %s21, 0
      %p219 = por %p217, %p218
      %s221 = sadd.s32 %s220, 1
      %p224 = scmp.eq.s32.totalorder %s15, 7
      %p225 = scmp.ne.s32.totalorder %s220, %s222
      %p226 = scmp.eq.s32.totalorder %s15, 0
      %p227 = por %p225, %p226
      %p228 = scmp.ne.s32.totalorder %s220, %s222
      %p229 = scmp.eq.s32.totalorder %s20, 7
      %p230 = por %p228, %p229
      %p231 = scmp.ne.s32.totalorder %s222, %s223
      %p232 = scmp.eq.s32.totalorder %s20, 0
      %p233 = por %p231, %p232
      %p234 = scmp.ne.s32.totalorder %s222, %s223
      %p235 = scmp.eq.s32.totalorder %s21, 7
      %p236 = por %p234, %p235
      %p238 = scmp.ne.s32.totalorder %s223, %s237
      %p239 = scmp.eq.s32.totalorder %s21, 0
      %p240 = por %p238, %p239
      %s242 = sadd.s32 %s241, 1
      %p245 = scmp.eq.s32.totalorder %s15, 7
      %p246 = scmp.ne.s32.totalorder %s241, %s243
      %p247 = scmp.eq.s32.totalorder %s15, 0
      %p248 = por %p246, %p247
      %p249 = scmp.ne.s32.totalorder %s241, %s243
      %p250 = scmp.eq.s32.totalorder %s20, 7
      %p251 = por %p249, %p250
      %p252 = scmp.ne.s32.totalorder %s243, %s244
      %p253 = scmp.eq.s32.totalorder %s20, 0
      %p254 = por %p252, %p253
      %p255 = scmp.ne.s32.totalorder %s243, %s244
      %p256 = scmp.eq.s32.totalorder %s21, 7
      %p257 = por %p255, %p256
      %p259 = scmp.ne.s32.totalorder %s244, %s258
      %p260 = scmp.eq.s32.totalorder %s21, 0
      %p261 = por %p259, %p260
      %s262 = ssub.s32 %s22, %s41
      %s263 = ssub.s32 %s23, %s37
      %s264 = sor.u32 %s262, %s263
      %p265 = scmp.eq.s32.totalorder %s264, 0
      %s267 = sadd.s32 %s266, 1
      %s268 = scalar_select %p265, %s266, %s267
      %p271 = pneg %p265
      %p272 = scmp.eq.s32.totalorder %s15, 7
      %p273 = por %p271, %p272
      %p274 = scmp.ne.s32.totalorder %s266, %s269
      %p275 = scmp.eq.s32.totalorder %s15, 0
      %p276 = por %p274, %p275
      %p277 = scmp.ne.s32.totalorder %s266, %s269
      %p278 = scmp.eq.s32.totalorder %s20, 7
      %p279 = por %p277, %p278
      %p280 = scmp.ne.s32.totalorder %s269, %s270
      %p281 = scmp.eq.s32.totalorder %s20, 0
      %p282 = por %p280, %p281
      %p283 = scmp.ne.s32.totalorder %s269, %s270
      %p284 = scmp.eq.s32.totalorder %s21, 7
      %p285 = por %p283, %p284
      %p287 = scmp.ne.s32.totalorder %s270, %s286
      %p288 = scmp.eq.s32.totalorder %s21, 0
      %p289 = por %p287, %p288
      %p290 = scmp.le.s32.totalorder 1, %s15
      %p291 = scmp.lt.s32.totalorder %s15, 9
      %p292 = pnand %p290, %p291
      %p293 = pneg %p292
      // Predicated region
      $region9: #{_lambda_.3} parent=5 // pred_check
        _
      $region10: #{_lambda_.3} parent=5 // pred_check_branch
        %295 = sbr.rel (%p292) target = $region12
      $region11: #{_lambda_.3} parent=5 // pred_region
        %s296 = ssub.s32 %s15, 1
        // Predicated region
        $region13: #{_lambda_.3} parent=11 // pred_check
          %p297 = pneg %p191
        $region14: #{_lambda_.3} parent=11 // pred_check_branch
          %299 = sbr.rel (%p297) target = $region16
        $region15: #{_lambda_.3} parent=11 // pred_region
          _
        $region16: #{_lambda_.3} parent=11 // pred_fallthru
          _
        // Predicated region
        $region17: #{_lambda_.3} parent=11 // pred_check
          %p300 = pneg %p212
        $region18: #{_lambda_.3} parent=11 // pred_check_branch
          %302 = sbr.rel (%p300) target = $region20
        $region19: #{_lambda_.3} parent=11 // pred_region
          _
        $region20: #{_lambda_.3} parent=11 // pred_fallthru
          _
        // Predicated region
        $region21: #{_lambda_.3} parent=11 // pred_check
          %p303 = pneg %p233
        $region22: #{_lambda_.3} parent=11 // pred_check_branch
          %305 = sbr.rel (%p303) target = $region24
        $region23: #{_lambda_.3} parent=11 // pred_region
          _
        $region24: #{_lambda_.3} parent=11 // pred_fallthru
          _
        // Predicated region
        $region25: #{_lambda_.3} parent=11 // pred_check
          %p306 = pneg %p254
        $region26: #{_lambda_.3} parent=11 // pred_check_branch
          %308 = sbr.rel (%p306) target = $region28
        $region27: #{_lambda_.3} parent=11 // pred_region
          _
        $region28: #{_lambda_.3} parent=11 // pred_fallthru
          _
      $region12: #{_lambda_.3} parent=5 // pred_fallthru
        _
      %p309 = scmp.lt.s32.totalorder %s15, 8
      // Predicated region
      $region29: #{_lambda_.3} parent=5 // pred_check
        %p310 = pneg %p309
      $region30: #{_lambda_.3} parent=5 // pred_check_branch
        %312 = sbr.rel (%p310) target = $region32
      $region31: #{_lambda_.3} parent=5 // pred_region
        // Predicated region
        $region33: #{_lambda_.3} parent=31 // pred_check
          %p313 = pneg %p56
        $region34: #{_lambda_.3} parent=31 // pred_check_branch
          %315 = sbr.rel (%p313) target = $region36
        $region35: #{_lambda_.3} parent=31 // pred_region
          %s316 = sand.u32 %s46, 1
          %s317 = sand.u32 %s46, 1
          %s318 = smul.addr %s317, 64
          %s319 = scalar_lea.vmem [#allocation6], %s318
          %s320 = smul.addr %s22, 16
          %s321 = sadd.s32 %s23, %s320
          %s322 = smul.addr %s321, 8
          %s323 = scalar_lea.vmem %s0, %s322
          // Predicated region
          $region37: #{_lambda_.3} parent=35 // pred_check
            _
          $region38: #{_lambda_.3} parent=35 // pred_check_branch
            %325 = sbr.rel (0) target = $region40
          $region39: #{_lambda_.3} parent=35 // pred_region
            // Predicated region
            $region41: #{_lambda_.3} parent=39 // pred_check
              _
            $region42: #{_lambda_.3} parent=39 // pred_check_branch
              %327 = sbr.rel (0) target = $region44
            $region43: #{_lambda_.3} parent=39 // pred_region
              // Predicated region
              $region56: #{_lambda_.3} parent=43 // pred_check
                _
              $region57: #{_lambda_.3} parent=43 // pred_check_branch
                %356 = sbr.rel (0) target = $region59
              $region58: #{_lambda_.3} parent=43 // pred_region
                loop: start=0, step=1, limit=1
                $region60: #{_lambda_.3} parent=58 // loop_pre_header
                  _
                $region61: #{_lambda_.3} parent=58 // loop_header
                  %s358 = sphi 0, %s362
                  %p359 = scmp.ge.s32.totalorder %s358, 1
                  %s363 = sphi %s323, %s323
                  %s364 = sphi %s319, %s319
                $region62: #{_lambda_.3} parent=58 // loop_header_branch
                  %361 = sbr.rel (%p359) target = $region66
                $region63: #{_lambda_.3} parent=58 // loop_body
                  %v365 = vld [vmem:[%s363] sm:$0xff]
                  %366 = vst [vmem:[%s364] sm:$0xff] %v365
                  %v367 = vld [vmem:[%s363 + $0x10] sm:$0xff]
                  %368 = vst [vmem:[%s364 + $0x8] sm:$0xff] %v367
                  %v369 = vld [vmem:[%s363 + $0x20] sm:$0xff]
                  %370 = vst [vmem:[%s364 + $0x10] sm:$0xff] %v369
                  %v371 = vld [vmem:[%s363 + $0x30] sm:$0xff]
                  %372 = vst [vmem:[%s364 + $0x18] sm:$0xff] %v371
                  %v373 = vld [vmem:[%s363 + $0x40] sm:$0xff]
                  %374 = vst [vmem:[%s364 + $0x20] sm:$0xff] %v373
                  %v375 = vld [vmem:[%s363 + $0x50] sm:$0xff]
                  %376 = vst [vmem:[%s364 + $0x28] sm:$0xff] %v375
                  %v377 = vld [vmem:[%s363 + $0x60] sm:$0xff]
                  %378 = vst [vmem:[%s364 + $0x30] sm:$0xff] %v377
                  %v379 = vld [vmem:[%s363 + $0x70] sm:$0xff]
                  %380 = vst [vmem:[%s364 + $0x38] sm:$0xff] %v379
                $region64: #{_lambda_.3} parent=58 // loop_footer
                  %s362 = sadd.s32 1, %s358
                $region65: #{_lambda_.3} parent=58 // loop_footer_branch
                  %357 = sbr.rel target = $region61
                $region66: #{_lambda_.3} parent=58 // loop_exit
                  _
              $region59: #{_lambda_.3} parent=43 // pred_fallthru
                _
              // Predicated region
              $region67: #{_lambda_.3} parent=43 // pred_check
                _
              $region68: #{_lambda_.3} parent=43 // pred_check_branch
                %382 = sbr.rel target = $region70
              $region69: #{_lambda_.3} parent=43 // pred_region
                _
              $region70: #{_lambda_.3} parent=43 // pred_fallthru
                _
            $region44: #{_lambda_.3} parent=39 // pred_fallthru
              _
            // Predicated region
            $region45: #{_lambda_.3} parent=39 // pred_check
              _
            $region46: #{_lambda_.3} parent=39 // pred_check_branch
              %329 = sbr.rel target = $region48
            $region47: #{_lambda_.3} parent=39 // pred_region
              loop: start=0, step=1, limit=1
              $region49: #{_lambda_.3} parent=47 // loop_pre_header
                _
              $region50: #{_lambda_.3} parent=47 // loop_header
                %s332 = sphi 0, %s336
                %p333 = scmp.ge.s32.totalorder %s332, 1
                %s337 = sphi %s323, %s323
                %s338 = sphi %s319, %s319
              $region51: #{_lambda_.3} parent=47 // loop_header_branch
                %335 = sbr.rel (%p333) target = $region55
              $region52: #{_lambda_.3} parent=47 // loop_body
                %v339 = vld [vmem:[%s337] sm:$0xff]
                %340 = vst [vmem:[%s338] sm:$0xff] %v339
                %v341 = vld [vmem:[%s337 + $0x10] sm:$0xff]
                %342 = vst [vmem:[%s338 + $0x8] sm:$0xff] %v341
                %v343 = vld [vmem:[%s337 + $0x20] sm:$0xff]
                %344 = vst [vmem:[%s338 + $0x10] sm:$0xff] %v343
                %v345 = vld [vmem:[%s337 + $0x30] sm:$0xff]
                %346 = vst [vmem:[%s338 + $0x18] sm:$0xff] %v345
                %v347 = vld [vmem:[%s337 + $0x40] sm:$0xff]
                %348 = vst [vmem:[%s338 + $0x20] sm:$0xff] %v347
                %v349 = vld [vmem:[%s337 + $0x50] sm:$0xff]
                %350 = vst [vmem:[%s338 + $0x28] sm:$0xff] %v349
                %v351 = vld [vmem:[%s337 + $0x60] sm:$0xff]
                %352 = vst [vmem:[%s338 + $0x30] sm:$0xff] %v351
                %v353 = vld [vmem:[%s337 + $0x70] sm:$0xff]
                %354 = vst [vmem:[%s338 + $0x38] sm:$0xff] %v353
              $region53: #{_lambda_.3} parent=47 // loop_footer
                %s336 = sadd.s32 1, %s332
              $region54: #{_lambda_.3} parent=47 // loop_footer_branch
                %331 = sbr.rel target = $region50
              $region55: #{_lambda_.3} parent=47 // loop_exit
                _
            $region48: #{_lambda_.3} parent=39 // pred_fallthru
              _
          $region40: #{_lambda_.3} parent=35 // pred_fallthru
            _
          %383 = vnop
        $region36: #{_lambda_.3} parent=31 // pred_fallthru
          _
        // Predicated region
        $region71: #{_lambda_.3} parent=31 // pred_check
          %p384 = pneg %p82
        $region72: #{_lambda_.3} parent=31 // pred_check_branch
          %386 = sbr.rel (%p384) target = $region74
        $region73: #{_lambda_.3} parent=31 // pred_region
          %p387 = scmp.lt.s32.totalorder %s22, 1
          %s388 = scalar_select %p387, %s22, 1
          %s389 = smul.addr %s388, 8
          %s390 = smul.addr %s389, 8
          %s391 = scalar_lea.vmem %s1, %s390
        $region74: #{_lambda_.3} parent=31 // pred_fallthru
          _
        // Predicated region
        $region75: #{_lambda_.3} parent=31 // pred_check
          %p392 = pneg %p108
        $region76: #{_lambda_.3} parent=31 // pred_check_branch
          %394 = sbr.rel (%p392) target = $region78
        $region77: #{_lambda_.3} parent=31 // pred_region
          %p395 = scmp.lt.s32.totalorder %s22, 1
          %s396 = scalar_select %p395, %s22, 1
          %s397 = smul.addr %s396, 8
          %s398 = smul.addr %s397, 8
          %s399 = scalar_lea.vmem %s2, %s398
        $region78: #{_lambda_.3} parent=31 // pred_fallthru
          _
        // Predicated region
        $region79: #{_lambda_.3} parent=31 // pred_check
          %p400 = pneg %p136
        $region80: #{_lambda_.3} parent=31 // pred_check_branch
          %402 = sbr.rel (%p400) target = $region82
        $region81: #{_lambda_.3} parent=31 // pred_region
          %s403 = sand.u32 %s126, 1
          %s404 = sand.u32 %s126, 1
          %s405 = smul.addr %s404, 32
          %s406 = scalar_lea.vmem [#allocation7], %s405
          %s407 = smul.addr %s22, 16
          %s408 = sadd.s32 %s24, %s407
          %s409 = smul.addr %s408, 4
          %s410 = scalar_lea.vmem %s3, %s409
          // Predicated region
          $region83: #{_lambda_.3} parent=81 // pred_check
            _
          $region84: #{_lambda_.3} parent=81 // pred_check_branch
            %412 = sbr.rel (0) target = $region86
          $region85: #{_lambda_.3} parent=81 // pred_region
            // Predicated region
            $region87: #{_lambda_.3} parent=85 // pred_check
              _
            $region88: #{_lambda_.3} parent=85 // pred_check_branch
              %414 = sbr.rel target = $region90
            $region89: #{_lambda_.3} parent=85 // pred_region
              // Predicated region
              $region102: #{_lambda_.3} parent=89 // pred_check
                _
              $region103: #{_lambda_.3} parent=89 // pred_check_branch
                %443 = sbr.rel (0) target = $region105
              $region104: #{_lambda_.3} parent=89 // pred_region
                loop: start=0, step=1, limit=1
                $region106: #{_lambda_.3} parent=104 // loop_pre_header
                  _
                $region107: #{_lambda_.3} parent=104 // loop_header
                  %s445 = sphi 0, %s449
                  %p446 = scmp.ge.s32.totalorder %s445, 1
                  %s450 = sphi %s410, %s410
                  %s451 = sphi %s406, %s406
                $region108: #{_lambda_.3} parent=104 // loop_header_branch
                  %448 = sbr.rel (%p446) target = $region112
                $region109: #{_lambda_.3} parent=104 // loop_body
                  _
                $region110: #{_lambda_.3} parent=104 // loop_footer
                  %s449 = sadd.s32 1, %s445
                $region111: #{_lambda_.3} parent=104 // loop_footer_branch
                  %444 = sbr.rel target = $region107
                $region112: #{_lambda_.3} parent=104 // loop_exit
                  _
                loop: start=0, step=1, limit=1
                $region113: #{_lambda_.3} parent=104 // loop_pre_header
                  _
                $region114: #{_lambda_.3} parent=104 // loop_header
                  %s454 = sphi 0, %s458
                  %p455 = scmp.ge.s32.totalorder %s454, 1
                  %s459 = sphi %s410, %s410
                  %s460 = sphi %s406, %s406
                $region115: #{_lambda_.3} parent=104 // loop_header_branch
                  %457 = sbr.rel (%p455) target = $region119
                $region116: #{_lambda_.3} parent=104 // loop_body
                  %v461 = vld [vmem:[%s459] sm:$0xf]
                  %462 = vst [vmem:[%s460] sm:$0xf] %v461
                  %v463 = vld [vmem:[%s459 + $0x8] sm:$0xf]
                  %464 = vst [vmem:[%s460 + $0x4] sm:$0xf] %v463
                  %v465 = vld [vmem:[%s459 + $0x10] sm:$0xf]
                  %466 = vst [vmem:[%s460 + $0x8] sm:$0xf] %v465
                  %v467 = vld [vmem:[%s459 + $0x18] sm:$0xf]
                  %468 = vst [vmem:[%s460 + $0xc] sm:$0xf] %v467
                  %v469 = vld [vmem:[%s459 + $0x20] sm:$0xf]
                  %470 = vst [vmem:[%s460 + $0x10] sm:$0xf] %v469
                  %v471 = vld [vmem:[%s459 + $0x28] sm:$0xf]
                  %472 = vst [vmem:[%s460 + $0x14] sm:$0xf] %v471
                  %v473 = vld [vmem:[%s459 + $0x30] sm:$0xf]
                  %474 = vst [vmem:[%s460 + $0x18] sm:$0xf] %v473
                  %v475 = vld [vmem:[%s459 + $0x38] sm:$0xf]
                  %476 = vst [vmem:[%s460 + $0x1c] sm:$0xf] %v475
                $region117: #{_lambda_.3} parent=104 // loop_footer
                  %s458 = sadd.s32 1, %s454
                $region118: #{_lambda_.3} parent=104 // loop_footer_branch
                  %453 = sbr.rel target = $region114
                $region119: #{_lambda_.3} parent=104 // loop_exit
                  _
              $region105: #{_lambda_.3} parent=89 // pred_fallthru
                _
            $region90: #{_lambda_.3} parent=85 // pred_fallthru
              _
            // Predicated region
            $region91: #{_lambda_.3} parent=85 // pred_check
              _
            $region92: #{_lambda_.3} parent=85 // pred_check_branch
              %416 = sbr.rel (0) target = $region94
            $region93: #{_lambda_.3} parent=85 // pred_region
              loop: start=0, step=1, limit=1
              $region95: #{_lambda_.3} parent=93 // loop_pre_header
                _
              $region96: #{_lambda_.3} parent=93 // loop_header
                %s419 = sphi 0, %s423
                %p420 = scmp.ge.s32.totalorder %s419, 1
                %s424 = sphi %s410, %s410
                %s425 = sphi %s406, %s406
              $region97: #{_lambda_.3} parent=93 // loop_header_branch
                %422 = sbr.rel (%p420) target = $region101
              $region98: #{_lambda_.3} parent=93 // loop_body
                %v426 = vld [vmem:[%s424] sm:$0xf]
                %427 = vst [vmem:[%s425] sm:$0xf] %v426
                %v428 = vld [vmem:[%s424 + $0x8] sm:$0xf]
                %429 = vst [vmem:[%s425 + $0x4] sm:$0xf] %v428
                %v430 = vld [vmem:[%s424 + $0x10] sm:$0xf]
                %431 = vst [vmem:[%s425 + $0x8] sm:$0xf] %v430
                %v432 = vld [vmem:[%s424 + $0x18] sm:$0xf]
                %433 = vst [vmem:[%s425 + $0xc] sm:$0xf] %v432
                %v434 = vld [vmem:[%s424 + $0x20] sm:$0xf]
                %435 = vst [vmem:[%s425 + $0x10] sm:$0xf] %v434
                %v436 = vld [vmem:[%s424 + $0x28] sm:$0xf]
                %437 = vst [vmem:[%s425 + $0x14] sm:$0xf] %v436
                %v438 = vld [vmem:[%s424 + $0x30] sm:$0xf]
                %439 = vst [vmem:[%s425 + $0x18] sm:$0xf] %v438
                %v440 = vld [vmem:[%s424 + $0x38] sm:$0xf]
                %441 = vst [vmem:[%s425 + $0x1c] sm:$0xf] %v440
              $region99: #{_lambda_.3} parent=93 // loop_footer
                %s423 = sadd.s32 1, %s419
              $region100: #{_lambda_.3} parent=93 // loop_footer_branch
                %418 = sbr.rel target = $region96
              $region101: #{_lambda_.3} parent=93 // loop_exit
                _
            $region94: #{_lambda_.3} parent=85 // pred_fallthru
              _
          $region86: #{_lambda_.3} parent=81 // pred_fallthru
            _
          %477 = vnop
        $region82: #{_lambda_.3} parent=31 // pred_fallthru
          _
        // Predicated region
        $region120: #{_lambda_.3} parent=31 // pred_check
          %p478 = pneg %p164
        $region121: #{_lambda_.3} parent=31 // pred_check_branch
          %480 = sbr.rel (%p478) target = $region123
        $region122: #{_lambda_.3} parent=31 // pred_region
          %s481 = smul.u32 16, %s24
          %p482 = scmp.lt.s32.totalorder %s22, 1
          %s483 = scalar_select %p482, %s22, 1
          %p484 = scmp.lt.s32.totalorder %s481, 31
          %s485 = scalar_select %p484, %s481, 31
          %s486 = smul.addr %s483, 32
          %s487 = sadd.s32 %s485, %s486
          %s488 = smul.addr %s487, 4
          %s489 = scalar_lea.vmem %s4, %s488
          %s490 = smul.u32 16, %s24
        $region123: #{_lambda_.3} parent=31 // pred_fallthru
          _
      $region32: #{_lambda_.3} parent=5 // pred_fallthru
        _
      %p491 = scmp.le.s32.totalorder 1, %s15
      %p492 = scmp.lt.s32.totalorder %s15, 9
      %p493 = pnand %p491, %p492
      %p494 = pneg %p493
      // Predicated region
      $region124: #{_lambda_.3} parent=5 // pred_check
        _
      $region125: #{_lambda_.3} parent=5 // pred_check_branch
        %496 = sbr.rel (%p493) target = $region127
      $region126: #{_lambda_.3} parent=5 // pred_region
        %s497 = ssub.s32 %s15, 1
        %s498 = sand.u32 %s49, 1
        %s499 = sand.u32 %s49, 1
        %s500 = smul.addr %s499, 64
        %s501 = scalar_lea.vmem [#allocation6], %s500
        // Predicated region
        $region128: #{_lambda_.3} parent=126 // pred_check
          %p502 = pneg %p62
        $region129: #{_lambda_.3} parent=126 // pred_check_branch
          %504 = sbr.rel (%p502) target = $region131
        $region130: #{_lambda_.3} parent=126 // pred_region
          _
        $region131: #{_lambda_.3} parent=126 // pred_fallthru
          _
        %s505 = sand.u32 %s129, 1
        %s506 = sand.u32 %s129, 1
        %s507 = smul.addr %s506, 32
        %s508 = scalar_lea.vmem [#allocation7], %s507
        // Predicated region
        $region132: #{_lambda_.3} parent=126 // pred_check
          %p509 = pneg %p142
        $region133: #{_lambda_.3} parent=126 // pred_check_branch
          %511 = sbr.rel (%p509) target = $region135
        $region134: #{_lambda_.3} parent=126 // pred_region
          _
        $region135: #{_lambda_.3} parent=126 // pred_fallthru
          _
        %s512 = sand.u32 %s49, 1
        %s513 = sand.u32 %s49, 1
        %s514 = smul.addr %s513, 64
        %s515 = scalar_lea.vmem [#allocation6], %s514
        %p516 = pneg %p62
        %p517 = pneg %p59
        %p518 = scmp.lt.s32.totalorder %s25, 1
        %s519 = scalar_select %p518, %s25, 1
        %s520 = smul.addr %s519, 8
        %s521 = smul.addr %s520, 8
        %s522 = scalar_lea.vmem %s1, %s521
        %p523 = pneg %p88
        %p524 = pneg %p85
        %p525 = scmp.lt.s32.totalorder %s25, 1
        %s526 = scalar_select %p525, %s25, 1
        %s527 = smul.addr %s526, 8
        %s528 = smul.addr %s527, 8
        %s529 = scalar_lea.vmem %s2, %s528
        %p530 = pneg %p114
        %p531 = pneg %p111
        %s532 = sand.u32 %s129, 1
        %s533 = sand.u32 %s129, 1
        %s534 = smul.addr %s533, 32
        %s535 = scalar_lea.vmem [#allocation7], %s534
        %p536 = pneg %p142
        %p537 = pneg %p139
        %s538 = smul.u32 16, %s27
        %p539 = scmp.lt.s32.totalorder %s25, 1
        %s540 = scalar_select %p539, %s25, 1
        %p541 = scmp.lt.s32.totalorder %s538, 31
        %s542 = scalar_select %p541, %s538, 31
        %s543 = smul.addr %s540, 32
        %s544 = sadd.s32 %s542, %s543
        %s545 = smul.addr %s544, 4
        %s546 = scalar_lea.vmem %s4, %s545
        %p547 = pneg %p170
        %p548 = pneg %p167
        %p549 = pneg %p191
        %p550 = pneg %p188
        %p551 = pneg %p212
        %p552 = pneg %p209
        %p553 = pneg %p233
        %p554 = pneg %p230
        %p555 = pneg %p254
        %p556 = pneg %p251
        %p557 = pneg %p282
        %p558 = pneg %p279
        %s559 = sand.u32 %s269, 1
        %s560 = sand.u32 %s269, 1
        %s561 = smul.addr %s560, 64
        %s562 = scalar_lea.vmem [#allocation8], %s561
        %p563 = scmp.lt.s32.totalorder %s25, 1
        %s564 = scalar_select %p563, %s25, 1
        %s565 = smul.addr %s564, 8
        %s566 = smul.addr %s565, 8
        %s567 = scalar_lea.vmem %s1, %s566
        %p568 = scmp.lt.s32.totalorder %s25, 1
        %s569 = scalar_select %p568, %s25, 1
        %s570 = smul.addr %s569, 8
        %s571 = smul.addr %s570, 8
        %s572 = scalar_lea.vmem %s2, %s571
        %s573 = smul.u32 16, %s27
        %p574 = scmp.lt.s32.totalorder %s25, 1
        %s575 = scalar_select %p574, %s25, 1
        %p576 = scmp.lt.s32.totalorder %s573, 31
        %s577 = scalar_select %p576, %s573, 31
        %s578 = smul.addr %s575, 32
        %s579 = sadd.s32 %s577, %s578
        %s580 = smul.addr %s579, 4
        %s581 = scalar_lea.vmem %s4, %s580
        %s582 = smul.u32 16, %s27
        %p584 = scmp.eq.s32.totalorder %s27, 0
        // Predicated region
        $region136: #{_lambda_.3} parent=126 // pred_check
          %p585 = pneg %p584
        $region137: #{_lambda_.3} parent=126 // pred_check_branch
          %587 = sbr.rel (%p585) target = $region139
        $region138: #{_lambda_.3} parent=126 // pred_region
          %v588 = vld [vmem:[%s501] sm:$0xff]
          %v589 = vld [vmem:[%s501 + $0x8] sm:$0xff]
          %v590 = vld [vmem:[%s501 + $0x10] sm:$0xff]
          %v591 = vld [vmem:[%s501 + $0x18] sm:$0xff]
          %v592 = vld [vmem:[%s501 + $0x20] sm:$0xff]
          %v593 = vld [vmem:[%s501 + $0x28] sm:$0xff]
          %v594 = vld [vmem:[%s501 + $0x30] sm:$0xff]
          %v595 = vld [vmem:[%s501 + $0x38] sm:$0xff]
          %v596 = vld [vmem:[%s567] sm:$0xff]
          %v597 = vld [vmem:[%s567 + $0x8] sm:$0xff]
          %v598 = vld [vmem:[%s567 + $0x10] sm:$0xff]
          %v599 = vld [vmem:[%s567 + $0x18] sm:$0xff]
          %v600 = vld [vmem:[%s567 + $0x20] sm:$0xff]
          %v601 = vld [vmem:[%s567 + $0x28] sm:$0xff]
          %v602 = vld [vmem:[%s567 + $0x30] sm:$0xff]
          %v603 = vld [vmem:[%s567 + $0x38] sm:$0xff]
          %605 = vset.pattern.permute.xlu0 0
          %606 = vperm.xlu0 %605, %v596
          %v607 = vpop.permute.xlu0 %606
          %610 = vset.pattern.permute.xlu0 0
          %611 = vperm.xlu0 %610, %v597
          %v612 = vpop.permute.xlu0 %611
          %615 = vset.pattern.permute.xlu0 0
          %616 = vperm.xlu0 %615, %v598
          %v617 = vpop.permute.xlu0 %616
          %620 = vset.pattern.permute.xlu0 0
          %621 = vperm.xlu0 %620, %v599
          %v622 = vpop.permute.xlu0 %621
          %625 = vset.pattern.permute.xlu0 0
          %626 = vperm.xlu0 %625, %v600
          %v627 = vpop.permute.xlu0 %626
          %630 = vset.pattern.permute.xlu0 0
          %631 = vperm.xlu0 %630, %v601
          %v632 = vpop.permute.xlu0 %631
          %635 = vset.pattern.permute.xlu0 0
          %636 = vperm.xlu0 %635, %v602
          %v637 = vpop.permute.xlu0 %636
          %640 = vset.pattern.permute.xlu0 0
          %641 = vperm.xlu0 %640, %v603
          %v642 = vpop.permute.xlu0 %641
          %v644 = vmul.f32 %v588, %v607
          %v645 = vmul.f32 %v589, %v612
          %v646 = vmul.f32 %v590, %v617
          %v647 = vmul.f32 %v591, %v622
          %v648 = vmul.f32 %v592, %v627
          %v649 = vmul.f32 %v593, %v632
          %v650 = vmul.f32 %v594, %v637
          %v651 = vmul.f32 %v595, %v642
          %v652 = vld [vmem:[%s572] sm:$0xff]
          %v653 = vld [vmem:[%s572 + $0x8] sm:$0xff]
          %v654 = vld [vmem:[%s572 + $0x10] sm:$0xff]
          %v655 = vld [vmem:[%s572 + $0x18] sm:$0xff]
          %v656 = vld [vmem:[%s572 + $0x20] sm:$0xff]
          %v657 = vld [vmem:[%s572 + $0x28] sm:$0xff]
          %v658 = vld [vmem:[%s572 + $0x30] sm:$0xff]
          %v659 = vld [vmem:[%s572 + $0x38] sm:$0xff]
          %661 = vset.pattern.permute.xlu0 0
          %662 = vperm.xlu0 %661, %v652
          %v663 = vpop.permute.xlu0 %662
          %666 = vset.pattern.permute.xlu0 0
          %667 = vperm.xlu0 %666, %v653
          %v668 = vpop.permute.xlu0 %667
          %671 = vset.pattern.permute.xlu0 0
          %672 = vperm.xlu0 %671, %v654
          %v673 = vpop.permute.xlu0 %672
          %676 = vset.pattern.permute.xlu0 0
          %677 = vperm.xlu0 %676, %v655
          %v678 = vpop.permute.xlu0 %677
          %681 = vset.pattern.permute.xlu0 0
          %682 = vperm.xlu0 %681, %v656
          %v683 = vpop.permute.xlu0 %682
          %686 = vset.pattern.permute.xlu0 0
          %687 = vperm.xlu0 %686, %v657
          %v688 = vpop.permute.xlu0 %687
          %691 = vset.pattern.permute.xlu0 0
          %692 = vperm.xlu0 %691, %v658
          %v693 = vpop.permute.xlu0 %692
          %696 = vset.pattern.permute.xlu0 0
          %697 = vperm.xlu0 %696, %v659
          %v698 = vpop.permute.xlu0 %697
          %v700 = vadd.f32 %v644, %v663
          %v701 = vadd.f32 %v645, %v668
          %v702 = vadd.f32 %v646, %v673
          %v703 = vadd.f32 %v647, %v678
          %v704 = vadd.f32 %v648, %v683
          %v705 = vadd.f32 %v649, %v688
          %v706 = vadd.f32 %v650, %v693
          %v707 = vadd.f32 %v651, %v698
          %708 = vxpose.xlu0.b32.start [1/16] %v700, 128
          %709 = vxpose.xlu0.b32.cont [2/16] %v701, 128
          %710 = vxpose.xlu0.b32.cont [3/16] %v702, 128
          %711 = vxpose.xlu0.b32.cont [4/16] %v703, 128
          %712 = vxpose.xlu0.b32.cont [5/16] %v704, 128
          %713 = vxpose.xlu0.b32.cont [6/16] %v705, 128
          %714 = vxpose.xlu0.b32.cont [7/16] %v706, 128
          %715 = vxpose.xlu0.b32.cont [8/16] %v707, 128
          %716 = vxpose.xlu0.b32.cont [9/16] 0.0, 128
          %717 = vxpose.xlu0.b32.cont [10/16] 0.0, 128
          %718 = vxpose.xlu0.b32.cont [11/16] 0.0, 128
          %719 = vxpose.xlu0.b32.cont [12/16] 0.0, 128
          %720 = vxpose.xlu0.b32.cont [13/16] 0.0, 128
          %721 = vxpose.xlu0.b32.cont [14/16] 0.0, 128
          %722 = vxpose.xlu0.b32.cont [15/16] 0.0, 128
          %723 = vxpose.xlu0.b32.end [16/16] 0.0, 128
          %v724 = vpop.trf.xlu0
          %v725 = vpop.trf.xlu0
          %v726 = vpop.trf.xlu0
          %v727 = vpop.trf.xlu0
          %v728 = vpop.trf.xlu0
          %v729 = vpop.trf.xlu0
          %v730 = vpop.trf.xlu0
          %v731 = vpop.trf.xlu0
          %v732 = vpop.trf.xlu0
          %v733 = vpop.trf.xlu0
          %v734 = vpop.trf.xlu0
          %v735 = vpop.trf.xlu0
          %v736 = vpop.trf.xlu0
          %v737 = vpop.trf.xlu0
          %v738 = vpop.trf.xlu0
          %v739 = vpop.trf.xlu0
          %v740 = vpack.c.bf16 %v725, %v724
          %v741 = vpack.c.bf16 %v727, %v726
          %v742 = vpack.c.bf16 %v729, %v728
          %v743 = vpack.c.bf16 %v731, %v730
          %v744 = vpack.c.bf16 %v733, %v732
          %v745 = vpack.c.bf16 %v735, %v734
          %v746 = vpack.c.bf16 %v737, %v736
          %v747 = vpack.c.bf16 %v739, %v738
          %v748 = vld [vmem:[%s5] sm:$0xf]
          %v749 = vld [vmem:[%s5 + $0x4] sm:$0xf]
          %v750 = vld [vmem:[%s5 + $0x8] sm:$0xf]
          %v751 = vld [vmem:[%s5 + $0xc] sm:$0xf]
          %v752 = vld [vmem:[%s5 + $0x10] sm:$0xf]
          %v753 = vld [vmem:[%s5 + $0x14] sm:$0xf]
          %v754 = vld [vmem:[%s5 + $0x18] sm:$0xf]
          %v755 = vld [vmem:[%s5 + $0x1c] sm:$0xf]
          %v756 = vld [vmem:[%s6] sm:$0x1]
          %v758 = vlaneseq
          %v759 = vshrl.u32 %v758, 7
          %v760 = vsub.s32 0, %v759
          %v761 = vrot.slane %v756, %v760
          %v771 = vunpack.c.l.b16 %v748
          %v772 = vunpack.c.l.b16 %v749
          %v773 = vunpack.c.l.b16 %v750
          %v774 = vunpack.c.l.b16 %v751
          %v775 = vunpack.c.l.b16 %v752
          %v776 = vunpack.c.l.b16 %v753
          %v777 = vunpack.c.l.b16 %v754
          %v778 = vunpack.c.l.b16 %v755
          %v779 = vpack.c.b16 %v772, %v771
          %v780 = vpack.c.b16 %v774, %v773
          %v781 = vpack.c.b16 %v776, %v775
          %v782 = vpack.c.b16 %v778, %v777
          %vm787 = vcmask 523264
          %v789 = vsel %vm787, %v740, 0
          %v792 = vsel %vm787, %v741, 0
          %v795 = vsel %vm787, %v742, 0
          %v798 = vsel %vm787, %v743, 0
          %v801 = vsel %vm787, %v744, 0
          %v804 = vsel %vm787, %v745, 0
          %v807 = vsel %vm787, %v746, 0
          %v810 = vsel %vm787, %v747, 0
          %812 = vmatprep.subr.bf16.mxu0 0
          %813 = vmatpush1.bf16.msra.mxu0 %v779
          %814 = vmatprep.subr.bf16.mxu0 0
          %815 = vmatpush1.bf16.msra.mxu0 %v780
          %816 = vmatprep.subr.bf16.mxu0 0
          %817 = vmatpush1.bf16.msra.mxu0 %v781
          %818 = vmatprep.subr.bf16.mxu0 0
          %819 = vmatpush1.bf16.msra.mxu0 %v782
          %820 = vmatprep.subr.bf16.mxu0 0
          %821 = vmatpush1.bf16.msra.mxu0 0
          %822 = vmatprep.subr.bf16.mxu0 0
          %823 = vmatpush1.bf16.msra.mxu0 0
          %824 = vmatprep.subr.bf16.mxu0 0
          %825 = vmatpush1.bf16.msra.mxu0 0
          %826 = vmatprep.subr.bf16.mxu0 0
          %827 = vmatpush1.bf16.msra.mxu0 0
          %828 = vmatprep.subr.bf16.mxu0 0
          %829 = vmatpush1.bf16.msra.mxu0 0
          %830 = vmatprep.subr.bf16.mxu0 0
          %831 = vmatpush1.bf16.msra.mxu0 0
          %832 = vmatprep.subr.bf16.mxu0 0
          %833 = vmatpush1.bf16.msra.mxu0 0
          %834 = vmatprep.subr.bf16.mxu0 0
          %835 = vmatpush1.bf16.msra.mxu0 0
          %836 = vmatprep.subr.bf16.mxu0 0
          %837 = vmatpush1.bf16.msra.mxu0 0
          %838 = vmatprep.subr.bf16.mxu0 0
          %839 = vmatpush1.bf16.msra.mxu0 0
          %840 = vmatprep.subr.bf16.mxu0 0
          %841 = vmatpush1.bf16.msra.mxu0 0
          %842 = vmatprep.subr.bf16.mxu0 0
          %843 = vmatpush1.bf16.msra.mxu0 0
          %844 = vmatprep.mubr.bf16.mxu0 0
          %845 = vmatmul.mubr.bf16.gmra.mrb[0].mxu0 %v789
          %v846 = vpop.f32.mrb[0].mxu0
          %v847 = vadd.f32 %v761, %v846
          %v848 = vpop.f32.mrb[0].mxu0
          %v849 = vpop.f32.mrb[0].mxu0
          %v850 = vadd.f32 %v761, %v849
          %v851 = vpop.f32.mrb[0].mxu0
          %852 = vmatprep.mubr.bf16.mxu0 0
          %853 = vmatmul.mubr.bf16.gmra.mrb[0].mxu0 %v792
          %v854 = vpop.f32.mrb[0].mxu0
          %v855 = vadd.f32 %v761, %v854
          %v856 = vpop.f32.mrb[0].mxu0
          %v857 = vpop.f32.mrb[0].mxu0
          %v858 = vadd.f32 %v761, %v857
          %v859 = vpop.f32.mrb[0].mxu0
          %860 = vmatprep.mubr.bf16.mxu0 0
          %861 = vmatmul.mubr.bf16.gmra.mrb[0].mxu0 %v795
          %v862 = vpop.f32.mrb[0].mxu0
          %v863 = vadd.f32 %v761, %v862
          %v864 = vpop.f32.mrb[0].mxu0
          %v865 = vpop.f32.mrb[0].mxu0
          %v866 = vadd.f32 %v761, %v865
          %v867 = vpop.f32.mrb[0].mxu0
          %868 = vmatprep.mubr.bf16.mxu0 0
          %869 = vmatmul.mubr.bf16.gmra.mrb[0].mxu0 %v798
          %v870 = vpop.f32.mrb[0].mxu0
          %v871 = vadd.f32 %v761, %v870
          %v872 = vpop.f32.mrb[0].mxu0
          %v873 = vpop.f32.mrb[0].mxu0
          %v874 = vadd.f32 %v761, %v873
          %v875 = vpop.f32.mrb[0].mxu0
          %876 = vmatprep.mubr.bf16.mxu0 0
          %877 = vmatmul.mubr.bf16.gmra.mrb[0].mxu0 %v801
          %v878 = vpop.f32.mrb[0].mxu0
          %v879 = vadd.f32 %v761, %v878
          %v880 = vpop.f32.mrb[0].mxu0
          %v881 = vpop.f32.mrb[0].mxu0
          %v882 = vadd.f32 %v761, %v881
          %v883 = vpop.f32.mrb[0].mxu0
          %884 = vmatprep.mubr.bf16.mxu0 0
          %885 = vmatmul.mubr.bf16.gmra.mrb[0].mxu0 %v804
          %v886 = vpop.f32.mrb[0].mxu0
          %v887 = vadd.f32 %v761, %v886
          %v888 = vpop.f32.mrb[0].mxu0
          %v889 = vpop.f32.mrb[0].mxu0
          %v890 = vadd.f32 %v761, %v889
          %v891 = vpop.f32.mrb[0].mxu0
          %892 = vmatprep.mubr.bf16.mxu0 0
          %893 = vmatmul.mubr.bf16.gmra.mrb[0].mxu0 %v807
          %v894 = vpop.f32.mrb[0].mxu0
          %v895 = vadd.f32 %v761, %v894
          %v896 = vpop.f32.mrb[0].mxu0
          %v897 = vpop.f32.mrb[0].mxu0
          %v898 = vadd.f32 %v761, %v897
          %v899 = vpop.f32.mrb[0].mxu0
          %900 = vmatprep.mubr.bf16.mxu0 0
          %901 = vmatmul.mubr.bf16.gmra.mrb[0].mxu0 %v810
          %v902 = vpop.f32.mrb[0].mxu0
          %v903 = vadd.f32 %v761, %v902
          %v904 = vpop.f32.mrb[0].mxu0
          %v905 = vpop.f32.mrb[0].mxu0
          %v906 = vadd.f32 %v761, %v905
          %v907 = vpop.f32.mrb[0].mxu0
          %908 = vdwg.mxu0
          %v909 = vpack.c.bf16 %v850, %v847
          %v910 = vpack.c.bf16 %v858, %v855
          %v911 = vpack.c.bf16 %v866, %v863
          %v912 = vpack.c.bf16 %v874, %v871
          %v913 = vpack.c.bf16 %v882, %v879
          %v914 = vpack.c.bf16 %v890, %v887
          %v915 = vpack.c.bf16 %v898, %v895
          %v916 = vpack.c.bf16 %v906, %v903
          %917 = vst.msk [vmem:[#allocation2] sm:$0xff] %vm787, %v909
          %918 = vst.msk [vmem:[#allocation2 + $0x8] sm:$0xff] %vm787, %v910
          %919 = vst.msk [vmem:[#allocation2 + $0x10] sm:$0xff] %vm787, %v911
          %920 = vst.msk [vmem:[#allocation2 + $0x18] sm:$0xff] %vm787, %v912
          %921 = vst.msk [vmem:[#allocation2 + $0x20] sm:$0xff] %vm787, %v913
          %922 = vst.msk [vmem:[#allocation2 + $0x28] sm:$0xff] %vm787, %v914
          %923 = vst.msk [vmem:[#allocation2 + $0x30] sm:$0xff] %vm787, %v915
          %924 = vst.msk [vmem:[#allocation2 + $0x38] sm:$0xff] %vm787, %v916
          %vm925 = vcmask 7168
          %926 = vst.msk [vmem:[#allocation3] sm:$0xff] %vm925, -inf
          %927 = vst.msk [vmem:[#allocation3 + $0x8] sm:$0xff] %vm925, -inf
          %928 = vst.msk [vmem:[#allocation3 + $0x10] sm:$0xff] %vm925, -inf
          %929 = vst.msk [vmem:[#allocation3 + $0x18] sm:$0xff] %vm925, -inf
          %930 = vst.msk [vmem:[#allocation3 + $0x20] sm:$0xff] %vm925, -inf
          %931 = vst.msk [vmem:[#allocation3 + $0x28] sm:$0xff] %vm925, -inf
          %932 = vst.msk [vmem:[#allocation3 + $0x30] sm:$0xff] %vm925, -inf
          %933 = vst.msk [vmem:[#allocation3 + $0x38] sm:$0xff] %vm925, -inf
          %934 = vst.msk [vmem:[#allocation3 + $0x40] sm:$0xff] %vm925, -inf
          %935 = vst.msk [vmem:[#allocation3 + $0x48] sm:$0xff] %vm925, -inf
          %936 = vst.msk [vmem:[#allocation3 + $0x50] sm:$0xff] %vm925, -inf
          %937 = vst.msk [vmem:[#allocation3 + $0x58] sm:$0xff] %vm925, -inf
          %938 = vst.msk [vmem:[#allocation3 + $0x60] sm:$0xff] %vm925, -inf
          %939 = vst.msk [vmem:[#allocation3 + $0x68] sm:$0xff] %vm925, -inf
          %940 = vst.msk [vmem:[#allocation3 + $0x70] sm:$0xff] %vm925, -inf
          %941 = vst.msk [vmem:[#allocation3 + $0x78] sm:$0xff] %vm925, -inf
          %942 = vst.msk [vmem:[#allocation4] sm:$0xff] %vm925, 0.0
          %943 = vst.msk [vmem:[#allocation4 + $0x8] sm:$0xff] %vm925, 0.0
          %944 = vst.msk [vmem:[#allocation4 + $0x10] sm:$0xff] %vm925, 0.0
          %945 = vst.msk [vmem:[#allocation4 + $0x18] sm:$0xff] %vm925, 0.0
          %946 = vst.msk [vmem:[#allocation4 + $0x20] sm:$0xff] %vm925, 0.0
          %947 = vst.msk [vmem:[#allocation4 + $0x28] sm:$0xff] %vm925, 0.0
          %948 = vst.msk [vmem:[#allocation4 + $0x30] sm:$0xff] %vm925, 0.0
          %949 = vst.msk [vmem:[#allocation4 + $0x38] sm:$0xff] %vm925, 0.0
          %950 = vst.msk [vmem:[#allocation4 + $0x40] sm:$0xff] %vm925, 0.0
          %951 = vst.msk [vmem:[#allocation4 + $0x48] sm:$0xff] %vm925, 0.0
          %952 = vst.msk [vmem:[#allocation4 + $0x50] sm:$0xff] %vm925, 0.0
          %953 = vst.msk [vmem:[#allocation4 + $0x58] sm:$0xff] %vm925, 0.0
          %954 = vst.msk [vmem:[#allocation4 + $0x60] sm:$0xff] %vm925, 0.0
          %955 = vst.msk [vmem:[#allocation4 + $0x68] sm:$0xff] %vm925, 0.0
          %956 = vst.msk [vmem:[#allocation4 + $0x70] sm:$0xff] %vm925, 0.0
          %957 = vst.msk [vmem:[#allocation4 + $0x78] sm:$0xff] %vm925, 0.0
          %958 = vst.msk [vmem:[#allocation5] sm:$0xff] %vm787, 0.0
          %959 = vst.msk [vmem:[#allocation5 + $0x8] sm:$0xff] %vm787, 0.0
          %960 = vst.msk [vmem:[#allocation5 + $0x10] sm:$0xff] %vm787, 0.0
          %961 = vst.msk [vmem:[#allocation5 + $0x18] sm:$0xff] %vm787, 0.0
          %962 = vst.msk [vmem:[#allocation5 + $0x20] sm:$0xff] %vm787, 0.0
          %963 = vst.msk [vmem:[#allocation5 + $0x28] sm:$0xff] %vm787, 0.0
          %964 = vst.msk [vmem:[#allocation5 + $0x30] sm:$0xff] %vm787, 0.0
          %965 = vst.msk [vmem:[#allocation5 + $0x38] sm:$0xff] %vm787, 0.0
          %966 = vst.msk [vmem:[#allocation5 + $0x40] sm:$0xff] %vm787, 0.0
          %967 = vst.msk [vmem:[#allocation5 + $0x48] sm:$0xff] %vm787, 0.0
          %968 = vst.msk [vmem:[#allocation5 + $0x50] sm:$0xff] %vm787, 0.0
          %969 = vst.msk [vmem:[#allocation5 + $0x58] sm:$0xff] %vm787, 0.0
          %970 = vst.msk [vmem:[#allocation5 + $0x60] sm:$0xff] %vm787, 0.0
          %971 = vst.msk [vmem:[#allocation5 + $0x68] sm:$0xff] %vm787, 0.0
          %972 = vst.msk [vmem:[#allocation5 + $0x70] sm:$0xff] %vm787, 0.0
          %973 = vst.msk [vmem:[#allocation5 + $0x78] sm:$0xff] %vm787, 0.0
        $region139: #{_lambda_.3} parent=126 // pred_fallthru
          _
        %v974 = vld [vmem:[#allocation2] sm:$0xff]
        %v975 = vld [vmem:[#allocation2 + $0x8] sm:$0xff]
        %v976 = vld [vmem:[#allocation2 + $0x10] sm:$0xff]
        %v977 = vld [vmem:[#allocation2 + $0x18] sm:$0xff]
        %v978 = vld [vmem:[#allocation2 + $0x20] sm:$0xff]
        %v979 = vld [vmem:[#allocation2 + $0x28] sm:$0xff]
        %v980 = vld [vmem:[#allocation2 + $0x30] sm:$0xff]
        %v981 = vld [vmem:[#allocation2 + $0x38] sm:$0xff]
        %v982 = vld [vmem:[%s508] sm:$0xf]
        %v983 = vld [vmem:[%s508 + $0x4] sm:$0xf]
        %v984 = vld [vmem:[%s508 + $0x8] sm:$0xf]
        %v985 = vld [vmem:[%s508 + $0xc] sm:$0xf]
        %v986 = vld [vmem:[%s508 + $0x10] sm:$0xf]
        %v987 = vld [vmem:[%s508 + $0x14] sm:$0xf]
        %v988 = vld [vmem:[%s508 + $0x18] sm:$0xf]
        %v989 = vld [vmem:[%s508 + $0x1c] sm:$0xf]
        %v998 = vunpack.c.l.b16 %v982
        %v999 = vunpack.c.l.b16 %v983
        %v1000 = vunpack.c.l.b16 %v984
        %v1001 = vunpack.c.l.b16 %v985
        %v1002 = vunpack.c.l.b16 %v986
        %v1003 = vunpack.c.l.b16 %v987
        %v1004 = vunpack.c.l.b16 %v988
        %v1005 = vunpack.c.l.b16 %v989
        %v1006 = vpack.c.b16 %v999, %v998
        %v1007 = vpack.c.b16 %v1001, %v1000
        %v1008 = vpack.c.b16 %v1003, %v1002
        %v1009 = vpack.c.b16 %v1005, %v1004
        %vm1014 = vcmask 523264
        %v1016 = vsel %vm1014, %v974, 0
        %v1019 = vsel %vm1014, %v975, 0
        %v1022 = vsel %vm1014, %v976, 0
        %v1025 = vsel %vm1014, %v977, 0
        %v1028 = vsel %vm1014, %v978, 0
        %v1031 = vsel %vm1014, %v979, 0
        %v1034 = vsel %vm1014, %v980, 0
        %v1037 = vsel %vm1014, %v981, 0
        %1039 = vmatprep.subr.bf16.mxu0 0
        %1040 = vmatpush1.bf16.msra.mxu0 %v1006
        %1041 = vmatprep.subr.bf16.mxu0 0
        %1042 = vmatpush1.bf16.msra.mxu0 %v1007
        %1043 = vmatprep.subr.bf16.mxu0 0
        %1044 = vmatpush1.bf16.msra.mxu0 %v1008
        %1045 = vmatprep.subr.bf16.mxu0 0
        %1046 = vmatpush1.bf16.msra.mxu0 %v1009
        %1047 = vmatprep.subr.bf16.mxu0 0
        %1048 = vmatpush1.bf16.msra.mxu0 0
        %1049 = vmatprep.subr.bf16.mxu0 0
        %1050 = vmatpush1.bf16.msra.mxu0 0
        %1051 = vmatprep.subr.bf16.mxu0 0
        %1052 = vmatpush1.bf16.msra.mxu0 0
        %1053 = vmatprep.subr.bf16.mxu0 0
        %1054 = vmatpush1.bf16.msra.mxu0 0
        %1055 = vmatprep.subr.bf16.mxu0 0
        %1056 = vmatpush1.bf16.msra.mxu0 0
        %1057 = vmatprep.subr.bf16.mxu0 0
        %1058 = vmatpush1.bf16.msra.mxu0 0
        %1059 = vmatprep.subr.bf16.mxu0 0
        %1060 = vmatpush1.bf16.msra.mxu0 0
        %1061 = vmatprep.subr.bf16.mxu0 0
        %1062 = vmatpush1.bf16.msra.mxu0 0
        %1063 = vmatprep.subr.bf16.mxu0 0
        %1064 = vmatpush1.bf16.msra.mxu0 0
        %1065 = vmatprep.subr.bf16.mxu0 0
        %1066 = vmatpush1.bf16.msra.mxu0 0
        %1067 = vmatprep.subr.bf16.mxu0 0
        %1068 = vmatpush1.bf16.msra.mxu0 0
        %1069 = vmatprep.subr.bf16.mxu0 0
        %1070 = vmatpush1.bf16.msra.mxu0 0
        %1071 = vmatprep.mubr.bf16.mxu0 0
        %1072 = vmatmul.mubr.bf16.gmra.mrb[0].mxu0 %v1016
        %v1073 = vpop.f32.mrb[0].mxu0
        %v1074 = vadd.f32 0.0, %v1073
        %v1075 = vpop.f32.mrb[0].mxu0
        %v1076 = vpop.f32.mrb[0].mxu0
        %v1077 = vadd.f32 0.0, %v1076
        %v1078 = vpop.f32.mrb[0].mxu0
        %1079 = vmatprep.mubr.bf16.mxu0 0
        %1080 = vmatmul.mubr.bf16.gmra.mrb[0].mxu0 %v1019
        %v1081 = vpop.f32.mrb[0].mxu0
        %v1082 = vadd.f32 0.0, %v1081
        %v1083 = vpop.f32.mrb[0].mxu0
        %v1084 = vpop.f32.mrb[0].mxu0
        %v1085 = vadd.f32 0.0, %v1084
        %v1086 = vpop.f32.mrb[0].mxu0
        %1087 = vmatprep.mubr.bf16.mxu0 0
        %1088 = vmatmul.mubr.bf16.gmra.mrb[0].mxu0 %v1022
        %v1089 = vpop.f32.mrb[0].mxu0
        %v1090 = vadd.f32 0.0, %v1089
        %v1091 = vpop.f32.mrb[0].mxu0
        %v1092 = vpop.f32.mrb[0].mxu0
        %v1093 = vadd.f32 0.0, %v1092
        %v1094 = vpop.f32.mrb[0].mxu0
        %1095 = vmatprep.mubr.bf16.mxu0 0
        %1096 = vmatmul.mubr.bf16.gmra.mrb[0].mxu0 %v1025
        %v1097 = vpop.f32.mrb[0].mxu0
        %v1098 = vadd.f32 0.0, %v1097
        %v1099 = vpop.f32.mrb[0].mxu0
        %v1100 = vpop.f32.mrb[0].mxu0
        %v1101 = vadd.f32 0.0, %v1100
        %v1102 = vpop.f32.mrb[0].mxu0
        %1103 = vmatprep.mubr.bf16.mxu0 0
        %1104 = vmatmul.mubr.bf16.gmra.mrb[0].mxu0 %v1028
        %v1105 = vpop.f32.mrb[0].mxu0
        %v1106 = vadd.f32 0.0, %v1105
        %v1107 = vpop.f32.mrb[0].mxu0
        %v1108 = vpop.f32.mrb[0].mxu0
        %v1109 = vadd.f32 0.0, %v1108
        %v1110 = vpop.f32.mrb[0].mxu0
        %1111 = vmatprep.mubr.bf16.mxu0 0
        %1112 = vmatmul.mubr.bf16.gmra.mrb[0].mxu0 %v1031
        %v1113 = vpop.f32.mrb[0].mxu0
        %v1114 = vadd.f32 0.0, %v1113
        %v1115 = vpop.f32.mrb[0].mxu0
        %v1116 = vpop.f32.mrb[0].mxu0
        %v1117 = vadd.f32 0.0, %v1116
        %v1118 = vpop.f32.mrb[0].mxu0
        %1119 = vmatprep.mubr.bf16.mxu0 0
        %1120 = vmatmul.mubr.bf16.gmra.mrb[0].mxu0 %v1034
        %v1121 = vpop.f32.mrb[0].mxu0
        %v1122 = vadd.f32 0.0, %v1121
        %v1123 = vpop.f32.mrb[0].mxu0
        %v1124 = vpop.f32.mrb[0].mxu0
        %v1125 = vadd.f32 0.0, %v1124
        %v1126 = vpop.f32.mrb[0].mxu0
        %1127 = vmatprep.mubr.bf16.mxu0 0
        %1128 = vmatmul.mubr.bf16.gmra.mrb[0].mxu0 %v1037
        %v1129 = vpop.f32.mrb[0].mxu0
        %v1130 = vadd.f32 0.0, %v1129
        %v1131 = vpop.f32.mrb[0].mxu0
        %v1132 = vpop.f32.mrb[0].mxu0
        %v1133 = vadd.f32 0.0, %v1132
        %v1134 = vpop.f32.mrb[0].mxu0
        %1135 = vdwg.mxu0
        %v1136 = vld [vmem:[#allocation3] sm:$0xff]
        %v1137 = vld [vmem:[#allocation3 + $0x8] sm:$0xff]
        %v1138 = vld [vmem:[#allocation3 + $0x10] sm:$0xff]
        %v1139 = vld [vmem:[#allocation3 + $0x18] sm:$0xff]
        %v1140 = vld [vmem:[#allocation3 + $0x20] sm:$0xff]
        %v1141 = vld [vmem:[#allocation3 + $0x28] sm:$0xff]
        %v1142 = vld [vmem:[#allocation3 + $0x30] sm:$0xff]
        %v1143 = vld [vmem:[#allocation3 + $0x38] sm:$0xff]
        %v1144 = vld [vmem:[#allocation3 + $0x40] sm:$0xff]
        %v1145 = vld [vmem:[#allocation3 + $0x48] sm:$0xff]
        %v1146 = vld [vmem:[#allocation3 + $0x50] sm:$0xff]
        %v1147 = vld [vmem:[#allocation3 + $0x58] sm:$0xff]
        %v1148 = vld [vmem:[#allocation3 + $0x60] sm:$0xff]
        %v1149 = vld [vmem:[#allocation3 + $0x68] sm:$0xff]
        %v1150 = vld [vmem:[#allocation3 + $0x70] sm:$0xff]
        %v1151 = vld [vmem:[#allocation3 + $0x78] sm:$0xff]
        %1152 = vmax.xlane.f32.xlu0 %v1074
        %v1153 = vpop.xlane.xlu0 %1152
        %1154 = vmax.xlane.f32.xlu0 %v1077
        %v1155 = vpop.xlane.xlu0 %1154
        %1156 = vmax.xlane.f32.xlu0 %v1082
        %v1157 = vpop.xlane.xlu0 %1156
        %1158 = vmax.xlane.f32.xlu0 %v1085
        %v1159 = vpop.xlane.xlu0 %1158
        %1160 = vmax.xlane.f32.xlu0 %v1090
        %v1161 = vpop.xlane.xlu0 %1160
        %1162 = vmax.xlane.f32.xlu0 %v1093
        %v1163 = vpop.xlane.xlu0 %1162
        %1164 = vmax.xlane.f32.xlu0 %v1098
        %v1165 = vpop.xlane.xlu0 %1164
        %1166 = vmax.xlane.f32.xlu0 %v1101
        %v1167 = vpop.xlane.xlu0 %1166
        %1168 = vmax.xlane.f32.xlu0 %v1106
        %v1169 = vpop.xlane.xlu0 %1168
        %1170 = vmax.xlane.f32.xlu0 %v1109
        %v1171 = vpop.xlane.xlu0 %1170
        %1172 = vmax.xlane.f32.xlu0 %v1114
        %v1173 = vpop.xlane.xlu0 %1172
        %1174 = vmax.xlane.f32.xlu0 %v1117
        %v1175 = vpop.xlane.xlu0 %1174
        %1176 = vmax.xlane.f32.xlu0 %v1122
        %v1177 = vpop.xlane.xlu0 %1176
        %1178 = vmax.xlane.f32.xlu0 %v1125
        %v1179 = vpop.xlane.xlu0 %1178
        %1180 = vmax.xlane.f32.xlu0 %v1130
        %v1181 = vpop.xlane.xlu0 %1180
        %1182 = vmax.xlane.f32.xlu0 %v1133
        %v1183 = vpop.xlane.xlu0 %1182
        %v1184 = vmax.f32 %v1136, %v1153
        %v1185 = vmax.f32 %v1137, %v1155
        %v1186 = vmax.f32 %v1138, %v1157
        %v1187 = vmax.f32 %v1139, %v1159
        %v1188 = vmax.f32 %v1140, %v1161
        %v1189 = vmax.f32 %v1141, %v1163
        %v1190 = vmax.f32 %v1142, %v1165
        %v1191 = vmax.f32 %v1143, %v1167
        %v1192 = vmax.f32 %v1144, %v1169
        %v1193 = vmax.f32 %v1145, %v1171
        %v1194 = vmax.f32 %v1146, %v1173
        %v1195 = vmax.f32 %v1147, %v1175
        %v1196 = vmax.f32 %v1148, %v1177
        %v1197 = vmax.f32 %v1149, %v1179
        %v1198 = vmax.f32 %v1150, %v1181
        %v1199 = vmax.f32 %v1151, %v1183
        %v1200 = vsub.f32 %v1136, %v1184
        %v1201 = vsub.f32 %v1137, %v1185
        %v1202 = vsub.f32 %v1138, %v1186
        %v1203 = vsub.f32 %v1139, %v1187
        %v1204 = vsub.f32 %v1140, %v1188
        %v1205 = vsub.f32 %v1141, %v1189
        %v1206 = vsub.f32 %v1142, %v1190
        %v1207 = vsub.f32 %v1143, %v1191
        %v1208 = vsub.f32 %v1144, %v1192
        %v1209 = vsub.f32 %v1145, %v1193
        %v1210 = vsub.f32 %v1146, %v1194
        %v1211 = vsub.f32 %v1147, %v1195
        %v1212 = vsub.f32 %v1148, %v1196
        %v1213 = vsub.f32 %v1149, %v1197
        %v1214 = vsub.f32 %v1150, %v1198
        %v1215 = vsub.f32 %v1151, %v1199
        %v1216 = vmul.f32 %v1200, 1.442695
        %v1217 = vpow.pop %v1216
        %v1218 = vmul.f32 %v1201, 1.442695
        %v1219 = vpow.pop %v1218
        %v1220 = vmul.f32 %v1202, 1.442695
        %v1221 = vpow.pop %v1220
        %v1222 = vmul.f32 %v1203, 1.442695
        %v1223 = vpow.pop %v1222
        %v1224 = vmul.f32 %v1204, 1.442695
        %v1225 = vpow.pop %v1224
        %v1226 = vmul.f32 %v1205, 1.442695
        %v1227 = vpow.pop %v1226
        %v1228 = vmul.f32 %v1206, 1.442695
        %v1229 = vpow.pop %v1228
        %v1230 = vmul.f32 %v1207, 1.442695
        %v1231 = vpow.pop %v1230
        %v1232 = vmul.f32 %v1208, 1.442695
        %v1233 = vpow.pop %v1232
        %v1234 = vmul.f32 %v1209, 1.442695
        %v1235 = vpow.pop %v1234
        %v1236 = vmul.f32 %v1210, 1.442695
        %v1237 = vpow.pop %v1236
        %v1238 = vmul.f32 %v1211, 1.442695
        %v1239 = vpow.pop %v1238
        %v1240 = vmul.f32 %v1212, 1.442695
        %v1241 = vpow.pop %v1240
        %v1242 = vmul.f32 %v1213, 1.442695
        %v1243 = vpow.pop %v1242
        %v1244 = vmul.f32 %v1214, 1.442695
        %v1245 = vpow.pop %v1244
        %v1246 = vmul.f32 %v1215, 1.442695
        %v1247 = vpow.pop %v1246
        %1249 = vset.pattern.permute.xlu0 0
        %1250 = vperm.xlu0 %1249, %v1184
        %v1251 = vpop.permute.xlu0 %1250
        %1254 = vset.pattern.permute.xlu0 0
        %1255 = vperm.xlu0 %1254, %v1185
        %v1256 = vpop.permute.xlu0 %1255
        %1259 = vset.pattern.permute.xlu0 0
        %1260 = vperm.xlu0 %1259, %v1186
        %v1261 = vpop.permute.xlu0 %1260
        %1264 = vset.pattern.permute.xlu0 0
        %1265 = vperm.xlu0 %1264, %v1187
        %v1266 = vpop.permute.xlu0 %1265
        %1269 = vset.pattern.permute.xlu0 0
        %1270 = vperm.xlu0 %1269, %v1188
        %v1271 = vpop.permute.xlu0 %1270
        %1274 = vset.pattern.permute.xlu0 0
        %1275 = vperm.xlu0 %1274, %v1189
        %v1276 = vpop.permute.xlu0 %1275
        %1279 = vset.pattern.permute.xlu0 0
        %1280 = vperm.xlu0 %1279, %v1190
        %v1281 = vpop.permute.xlu0 %1280
        %1284 = vset.pattern.permute.xlu0 0
        %1285 = vperm.xlu0 %1284, %v1191
        %v1286 = vpop.permute.xlu0 %1285
        %1289 = vset.pattern.permute.xlu0 0
        %1290 = vperm.xlu0 %1289, %v1192
        %v1291 = vpop.permute.xlu0 %1290
        %1294 = vset.pattern.permute.xlu0 0
        %1295 = vperm.xlu0 %1294, %v1193
        %v1296 = vpop.permute.xlu0 %1295
        %1299 = vset.pattern.permute.xlu0 0
        %1300 = vperm.xlu0 %1299, %v1194
        %v1301 = vpop.permute.xlu0 %1300
        %1304 = vset.pattern.permute.xlu0 0
        %1305 = vperm.xlu0 %1304, %v1195
        %v1306 = vpop.permute.xlu0 %1305
        %1309 = vset.pattern.permute.xlu0 0
        %1310 = vperm.xlu0 %1309, %v1196
        %v1311 = vpop.permute.xlu0 %1310
        %1314 = vset.pattern.permute.xlu0 0
        %1315 = vperm.xlu0 %1314, %v1197
        %v1316 = vpop.permute.xlu0 %1315
        %1319 = vset.pattern.permute.xlu0 0
        %1320 = vperm.xlu0 %1319, %v1198
        %v1321 = vpop.permute.xlu0 %1320
        %1324 = vset.pattern.permute.xlu0 0
        %1325 = vperm.xlu0 %1324, %v1199
        %v1326 = vpop.permute.xlu0 %1325
        %v1328 = vsub.f32 %v1074, %v1251
        %v1329 = vsub.f32 %v1077, %v1256
        %v1330 = vsub.f32 %v1082, %v1261
        %v1331 = vsub.f32 %v1085, %v1266
        %v1332 = vsub.f32 %v1090, %v1271
        %v1333 = vsub.f32 %v1093, %v1276
        %v1334 = vsub.f32 %v1098, %v1281
        %v1335 = vsub.f32 %v1101, %v1286
        %v1336 = vsub.f32 %v1106, %v1291
        %v1337 = vsub.f32 %v1109, %v1296
        %v1338 = vsub.f32 %v1114, %v1301
        %v1339 = vsub.f32 %v1117, %v1306
        %v1340 = vsub.f32 %v1122, %v1311
        %v1341 = vsub.f32 %v1125, %v1316
        %v1342 = vsub.f32 %v1130, %v1321
        %v1343 = vsub.f32 %v1133, %v1326
        %v1344 = vmul.f32 %v1328, 1.442695
        %v1345 = vpow.pop %v1344
        %v1346 = vmul.f32 %v1329, 1.442695
        %v1347 = vpow.pop %v1346
        %v1348 = vmul.f32 %v1330, 1.442695
        %v1349 = vpow.pop %v1348
        %v1350 = vmul.f32 %v1331, 1.442695
        %v1351 = vpow.pop %v1350
        %v1352 = vmul.f32 %v1332, 1.442695
        %v1353 = vpow.pop %v1352
        %v1354 = vmul.f32 %v1333, 1.442695
        %v1355 = vpow.pop %v1354
        %v1356 = vmul.f32 %v1334, 1.442695
        %v1357 = vpow.pop %v1356
        %v1358 = vmul.f32 %v1335, 1.442695
        %v1359 = vpow.pop %v1358
        %v1360 = vmul.f32 %v1336, 1.442695
        %v1361 = vpow.pop %v1360
        %v1362 = vmul.f32 %v1337, 1.442695
        %v1363 = vpow.pop %v1362
        %v1364 = vmul.f32 %v1338, 1.442695
        %v1365 = vpow.pop %v1364
        %v1366 = vmul.f32 %v1339, 1.442695
        %v1367 = vpow.pop %v1366
        %v1368 = vmul.f32 %v1340, 1.442695
        %v1369 = vpow.pop %v1368
        %v1370 = vmul.f32 %v1341, 1.442695
        %v1371 = vpow.pop %v1370
        %v1372 = vmul.f32 %v1342, 1.442695
        %v1373 = vpow.pop %v1372
        %v1374 = vmul.f32 %v1343, 1.442695
        %v1375 = vpow.pop %v1374
        %v1376 = vld [vmem:[#allocation4] sm:$0xff]
        %v1377 = vld [vmem:[#allocation4 + $0x8] sm:$0xff]
        %v1378 = vld [vmem:[#allocation4 + $0x10] sm:$0xff]
        %v1379 = vld [vmem:[#allocation4 + $0x18] sm:$0xff]
        %v1380 = vld [vmem:[#allocation4 + $0x20] sm:$0xff]
        %v1381 = vld [vmem:[#allocation4 + $0x28] sm:$0xff]
        %v1382 = vld [vmem:[#allocation4 + $0x30] sm:$0xff]
        %v1383 = vld [vmem:[#allocation4 + $0x38] sm:$0xff]
        %v1384 = vld [vmem:[#allocation4 + $0x40] sm:$0xff]
        %v1385 = vld [vmem:[#allocation4 + $0x48] sm:$0xff]
        %v1386 = vld [vmem:[#allocation4 + $0x50] sm:$0xff]
        %v1387 = vld [vmem:[#allocation4 + $0x58] sm:$0xff]
        %v1388 = vld [vmem:[#allocation4 + $0x60] sm:$0xff]
        %v1389 = vld [vmem:[#allocation4 + $0x68] sm:$0xff]
        %v1390 = vld [vmem:[#allocation4 + $0x70] sm:$0xff]
        %v1391 = vld [vmem:[#allocation4 + $0x78] sm:$0xff]
        %v1392 = vmul.f32 %v1217, %v1376
        %v1393 = vmul.f32 %v1219, %v1377
        %v1394 = vmul.f32 %v1221, %v1378
        %v1395 = vmul.f32 %v1223, %v1379
        %v1396 = vmul.f32 %v1225, %v1380
        %v1397 = vmul.f32 %v1227, %v1381
        %v1398 = vmul.f32 %v1229, %v1382
        %v1399 = vmul.f32 %v1231, %v1383
        %v1400 = vmul.f32 %v1233, %v1384
        %v1401 = vmul.f32 %v1235, %v1385
        %v1402 = vmul.f32 %v1237, %v1386
        %v1403 = vmul.f32 %v1239, %v1387
        %v1404 = vmul.f32 %v1241, %v1388
        %v1405 = vmul.f32 %v1243, %v1389
        %v1406 = vmul.f32 %v1245, %v1390
        %v1407 = vmul.f32 %v1247, %v1391
        %1408 = vadd.xlane.f32.xlu0 %v1345
        %v1409 = vpop.xlane.xlu0 %1408
        %1410 = vadd.xlane.f32.xlu0 %v1347
        %v1411 = vpop.xlane.xlu0 %1410
        %1412 = vadd.xlane.f32.xlu0 %v1349
        %v1413 = vpop.xlane.xlu0 %1412
        %1414 = vadd.xlane.f32.xlu0 %v1351
        %v1415 = vpop.xlane.xlu0 %1414
        %1416 = vadd.xlane.f32.xlu0 %v1353
        %v1417 = vpop.xlane.xlu0 %1416
        %1418 = vadd.xlane.f32.xlu0 %v1355
        %v1419 = vpop.xlane.xlu0 %1418
        %1420 = vadd.xlane.f32.xlu0 %v1357
        %v1421 = vpop.xlane.xlu0 %1420
        %1422 = vadd.xlane.f32.xlu0 %v1359
        %v1423 = vpop.xlane.xlu0 %1422
        %1424 = vadd.xlane.f32.xlu0 %v1361
        %v1425 = vpop.xlane.xlu0 %1424
        %1426 = vadd.xlane.f32.xlu0 %v1363
        %v1427 = vpop.xlane.xlu0 %1426
        %1428 = vadd.xlane.f32.xlu0 %v1365
        %v1429 = vpop.xlane.xlu0 %1428
        %1430 = vadd.xlane.f32.xlu0 %v1367
        %v1431 = vpop.xlane.xlu0 %1430
        %1432 = vadd.xlane.f32.xlu0 %v1369
        %v1433 = vpop.xlane.xlu0 %1432
        %1434 = vadd.xlane.f32.xlu0 %v1371
        %v1435 = vpop.xlane.xlu0 %1434
        %1436 = vadd.xlane.f32.xlu0 %v1373
        %v1437 = vpop.xlane.xlu0 %1436
        %1438 = vadd.xlane.f32.xlu0 %v1375
        %v1439 = vpop.xlane.xlu0 %1438
        %v1440 = vadd.f32 %v1392, %v1409
        %v1441 = vadd.f32 %v1393, %v1411
        %v1442 = vadd.f32 %v1394, %v1413
        %v1443 = vadd.f32 %v1395, %v1415
        %v1444 = vadd.f32 %v1396, %v1417
        %v1445 = vadd.f32 %v1397, %v1419
        %v1446 = vadd.f32 %v1398, %v1421
        %v1447 = vadd.f32 %v1399, %v1423
        %v1448 = vadd.f32 %v1400, %v1425
        %v1449 = vadd.f32 %v1401, %v1427
        %v1450 = vadd.f32 %v1402, %v1429
        %v1451 = vadd.f32 %v1403, %v1431
        %v1452 = vadd.f32 %v1404, %v1433
        %v1453 = vadd.f32 %v1405, %v1435
        %v1454 = vadd.f32 %v1406, %v1437
        %v1455 = vadd.f32 %v1407, %v1439
        %vm1456 = vcmask 7168
        %1457 = vst.msk [vmem:[#allocation4] sm:$0xff] %vm1456, %v1440
        %1458 = vst.msk [vmem:[#allocation4 + $0x8] sm:$0xff] %vm1456, %v1441
        %1459 = vst.msk [vmem:[#allocation4 + $0x10] sm:$0xff] %vm1456, %v1442
        %1460 = vst.msk [vmem:[#allocation4 + $0x18] sm:$0xff] %vm1456, %v1443
        %1461 = vst.msk [vmem:[#allocation4 + $0x20] sm:$0xff] %vm1456, %v1444
        %1462 = vst.msk [vmem:[#allocation4 + $0x28] sm:$0xff] %vm1456, %v1445
        %1463 = vst.msk [vmem:[#allocation4 + $0x30] sm:$0xff] %vm1456, %v1446
        %1464 = vst.msk [vmem:[#allocation4 + $0x38] sm:$0xff] %vm1456, %v1447
        %1465 = vst.msk [vmem:[#allocation4 + $0x40] sm:$0xff] %vm1456, %v1448
        %1466 = vst.msk [vmem:[#allocation4 + $0x48] sm:$0xff] %vm1456, %v1449
        %1467 = vst.msk [vmem:[#allocation4 + $0x50] sm:$0xff] %vm1456, %v1450
        %1468 = vst.msk [vmem:[#allocation4 + $0x58] sm:$0xff] %vm1456, %v1451
        %1469 = vst.msk [vmem:[#allocation4 + $0x60] sm:$0xff] %vm1456, %v1452
        %1470 = vst.msk [vmem:[#allocation4 + $0x68] sm:$0xff] %vm1456, %v1453
        %1471 = vst.msk [vmem:[#allocation4 + $0x70] sm:$0xff] %vm1456, %v1454
        %1472 = vst.msk [vmem:[#allocation4 + $0x78] sm:$0xff] %vm1456, %v1455
        %v1473 = vld [vmem:[#allocation5] sm:$0xff]
        %v1474 = vld [vmem:[#allocation5 + $0x8] sm:$0xff]
        %v1475 = vld [vmem:[#allocation5 + $0x10] sm:$0xff]
        %v1476 = vld [vmem:[#allocation5 + $0x18] sm:$0xff]
        %v1477 = vld [vmem:[#allocation5 + $0x20] sm:$0xff]
        %v1478 = vld [vmem:[#allocation5 + $0x28] sm:$0xff]
        %v1479 = vld [vmem:[#allocation5 + $0x30] sm:$0xff]
        %v1480 = vld [vmem:[#allocation5 + $0x38] sm:$0xff]
        %v1481 = vld [vmem:[#allocation5 + $0x40] sm:$0xff]
        %v1482 = vld [vmem:[#allocation5 + $0x48] sm:$0xff]
        %v1483 = vld [vmem:[#allocation5 + $0x50] sm:$0xff]
        %v1484 = vld [vmem:[#allocation5 + $0x58] sm:$0xff]
        %v1485 = vld [vmem:[#allocation5 + $0x60] sm:$0xff]
        %v1486 = vld [vmem:[#allocation5 + $0x68] sm:$0xff]
        %v1487 = vld [vmem:[#allocation5 + $0x70] sm:$0xff]
        %v1488 = vld [vmem:[#allocation5 + $0x78] sm:$0xff]
        %1490 = vset.pattern.permute.xlu0 0
        %1491 = vperm.xlu0 %1490, %v1217
        %v1492 = vpop.permute.xlu0 %1491
        %1495 = vset.pattern.permute.xlu0 0
        %1496 = vperm.xlu0 %1495, %v1219
        %v1497 = vpop.permute.xlu0 %1496
        %1500 = vset.pattern.permute.xlu0 0
        %1501 = vperm.xlu0 %1500, %v1221
        %v1502 = vpop.permute.xlu0 %1501
        %1505 = vset.pattern.permute.xlu0 0
        %1506 = vperm.xlu0 %1505, %v1223
        %v1507 = vpop.permute.xlu0 %1506
        %1510 = vset.pattern.permute.xlu0 0
        %1511 = vperm.xlu0 %1510, %v1225
        %v1512 = vpop.permute.xlu0 %1511
        %1515 = vset.pattern.permute.xlu0 0
        %1516 = vperm.xlu0 %1515, %v1227
        %v1517 = vpop.permute.xlu0 %1516
        %1520 = vset.pattern.permute.xlu0 0
        %1521 = vperm.xlu0 %1520, %v1229
        %v1522 = vpop.permute.xlu0 %1521
        %1525 = vset.pattern.permute.xlu0 0
        %1526 = vperm.xlu0 %1525, %v1231
        %v1527 = vpop.permute.xlu0 %1526
        %1530 = vset.pattern.permute.xlu0 0
        %1531 = vperm.xlu0 %1530, %v1233
        %v1532 = vpop.permute.xlu0 %1531
        %1535 = vset.pattern.permute.xlu0 0
        %1536 = vperm.xlu0 %1535, %v1235
        %v1537 = vpop.permute.xlu0 %1536
        %1540 = vset.pattern.permute.xlu0 0
        %1541 = vperm.xlu0 %1540, %v1237
        %v1542 = vpop.permute.xlu0 %1541
        %1545 = vset.pattern.permute.xlu0 0
        %1546 = vperm.xlu0 %1545, %v1239
        %v1547 = vpop.permute.xlu0 %1546
        %1550 = vset.pattern.permute.xlu0 0
        %1551 = vperm.xlu0 %1550, %v1241
        %v1552 = vpop.permute.xlu0 %1551
        %1555 = vset.pattern.permute.xlu0 0
        %1556 = vperm.xlu0 %1555, %v1243
        %v1557 = vpop.permute.xlu0 %1556
        %1560 = vset.pattern.permute.xlu0 0
        %1561 = vperm.xlu0 %1560, %v1245
        %v1562 = vpop.permute.xlu0 %1561
        %1565 = vset.pattern.permute.xlu0 0
        %1566 = vperm.xlu0 %1565, %v1247
        %v1567 = vpop.permute.xlu0 %1566
        %v1569 = vmul.f32 %v1492, %v1473
        %v1570 = vmul.f32 %v1497, %v1474
        %v1571 = vmul.f32 %v1502, %v1475
        %v1572 = vmul.f32 %v1507, %v1476
        %v1573 = vmul.f32 %v1512, %v1477
        %v1574 = vmul.f32 %v1517, %v1478
        %v1575 = vmul.f32 %v1522, %v1479
        %v1576 = vmul.f32 %v1527, %v1480
        %v1577 = vmul.f32 %v1532, %v1481
        %v1578 = vmul.f32 %v1537, %v1482
        %v1579 = vmul.f32 %v1542, %v1483
        %v1580 = vmul.f32 %v1547, %v1484
        %v1581 = vmul.f32 %v1552, %v1485
        %v1582 = vmul.f32 %v1557, %v1486
        %v1583 = vmul.f32 %v1562, %v1487
        %v1584 = vmul.f32 %v1567, %v1488
        %v1585 = vpack.c.bf16 %v1347, %v1345
        %v1586 = vpack.c.bf16 %v1351, %v1349
        %v1587 = vpack.c.bf16 %v1355, %v1353
        %v1588 = vpack.c.bf16 %v1359, %v1357
        %v1589 = vpack.c.bf16 %v1363, %v1361
        %v1590 = vpack.c.bf16 %v1367, %v1365
        %v1591 = vpack.c.bf16 %v1371, %v1369
        %v1592 = vpack.c.bf16 %v1375, %v1373
        %v1593 = vld [vmem:[%s581] sm:$0xf]
        %v1594 = vld [vmem:[%s581 + $0x4] sm:$0xf]
        %v1595 = vld [vmem:[%s581 + $0x8] sm:$0xf]
        %v1596 = vld [vmem:[%s581 + $0xc] sm:$0xf]
        %v1597 = vld [vmem:[%s581 + $0x10] sm:$0xf]
        %v1598 = vld [vmem:[%s581 + $0x14] sm:$0xf]
        %v1599 = vld [vmem:[%s581 + $0x18] sm:$0xf]
        %v1600 = vld [vmem:[%s581 + $0x1c] sm:$0xf]
        %v1601 = vld [vmem:[%s581 + $0x20] sm:$0xf]
        %v1602 = vld [vmem:[%s581 + $0x24] sm:$0xf]
        %v1603 = vld [vmem:[%s581 + $0x28] sm:$0xf]
        %v1604 = vld [vmem:[%s581 + $0x2c] sm:$0xf]
        %v1605 = vld [vmem:[%s581 + $0x30] sm:$0xf]
        %v1606 = vld [vmem:[%s581 + $0x34] sm:$0xf]
        %v1607 = vld [vmem:[%s581 + $0x38] sm:$0xf]
        %v1608 = vld [vmem:[%s581 + $0x3c] sm:$0xf]
        %v1625 = vunpack.c.l.b16 %v1593
        %v1626 = vunpack.c.l.b16 %v1594
        %v1627 = vunpack.c.l.b16 %v1595
        %v1628 = vunpack.c.l.b16 %v1596
        %v1629 = vunpack.c.l.b16 %v1597
        %v1630 = vunpack.c.l.b16 %v1598
        %v1631 = vunpack.c.l.b16 %v1599
        %v1632 = vunpack.c.l.b16 %v1600
        %v1633 = vunpack.c.l.b16 %v1601
        %v1634 = vunpack.c.l.b16 %v1602
        %v1635 = vunpack.c.l.b16 %v1603
        %v1636 = vunpack.c.l.b16 %v1604
        %v1637 = vunpack.c.l.b16 %v1605
        %v1638 = vunpack.c.l.b16 %v1606
        %v1639 = vunpack.c.l.b16 %v1607
        %v1640 = vunpack.c.l.b16 %v1608
        %v1641 = vpack.c.b16 %v1626, %v1625
        %v1642 = vpack.c.b16 %v1628, %v1627
        %v1643 = vpack.c.b16 %v1630, %v1629
        %v1644 = vpack.c.b16 %v1632, %v1631
        %v1645 = vpack.c.b16 %v1634, %v1633
        %v1646 = vpack.c.b16 %v1636, %v1635
        %v1647 = vpack.c.b16 %v1638, %v1637
        %v1648 = vpack.c.b16 %v1640, %v1639
        %1657 = vmatprep.subr.bf16.mxu0 0
        %1658 = vmatpush1.bf16.msra.mxu0 %v1641
        %1659 = vmatprep.subr.bf16.mxu0 0
        %1660 = vmatpush1.bf16.msra.mxu0 %v1642
        %1661 = vmatprep.subr.bf16.mxu0 0
        %1662 = vmatpush1.bf16.msra.mxu0 %v1643
        %1663 = vmatprep.subr.bf16.mxu0 0
        %1664 = vmatpush1.bf16.msra.mxu0 %v1644
        %1665 = vmatprep.subr.bf16.mxu0 0
        %1666 = vmatpush1.bf16.msra.mxu0 %v1645
        %1667 = vmatprep.subr.bf16.mxu0 0
        %1668 = vmatpush1.bf16.msra.mxu0 %v1646
        %1669 = vmatprep.subr.bf16.mxu0 0
        %1670 = vmatpush1.bf16.msra.mxu0 %v1647
        %1671 = vmatprep.subr.bf16.mxu0 0
        %1672 = vmatpush1.bf16.msra.mxu0 %v1648
        %1673 = vmatprep.subr.bf16.mxu0 0
        %1674 = vmatpush1.bf16.msra.mxu0 0
        %1675 = vmatprep.subr.bf16.mxu0 0
        %1676 = vmatpush1.bf16.msra.mxu0 0
        %1677 = vmatprep.subr.bf16.mxu0 0
        %1678 = vmatpush1.bf16.msra.mxu0 0
        %1679 = vmatprep.subr.bf16.mxu0 0
        %1680 = vmatpush1.bf16.msra.mxu0 0
        %1681 = vmatprep.subr.bf16.mxu0 0
        %1682 = vmatpush1.bf16.msra.mxu0 0
        %1683 = vmatprep.subr.bf16.mxu0 0
        %1684 = vmatpush1.bf16.msra.mxu0 0
        %1685 = vmatprep.subr.bf16.mxu0 0
        %1686 = vmatpush1.bf16.msra.mxu0 0
        %1687 = vmatprep.subr.bf16.mxu0 0
        %1688 = vmatpush1.bf16.msra.mxu0 0
        %1689 = vmatprep.mubr.bf16.mxu0 0
        %1690 = vmatmul.mubr.bf16.gmra.mrb[0].mxu0 %v1585
        %v1691 = vpop.f32.mrb[0].mxu0
        %v1692 = vadd.f32 0.0, %v1691
        %v1693 = vpop.f32.mrb[0].mxu0
        %v1694 = vpop.f32.mrb[0].mxu0
        %v1695 = vadd.f32 0.0, %v1694
        %v1696 = vpop.f32.mrb[0].mxu0
        %1697 = vmatprep.mubr.bf16.mxu0 0
        %1698 = vmatmul.mubr.bf16.gmra.mrb[0].mxu0 %v1586
        %v1699 = vpop.f32.mrb[0].mxu0
        %v1700 = vadd.f32 0.0, %v1699
        %v1701 = vpop.f32.mrb[0].mxu0
        %v1702 = vpop.f32.mrb[0].mxu0
        %v1703 = vadd.f32 0.0, %v1702
        %v1704 = vpop.f32.mrb[0].mxu0
        %1705 = vmatprep.mubr.bf16.mxu0 0
        %1706 = vmatmul.mubr.bf16.gmra.mrb[0].mxu0 %v1587
        %v1707 = vpop.f32.mrb[0].mxu0
        %v1708 = vadd.f32 0.0, %v1707
        %v1709 = vpop.f32.mrb[0].mxu0
        %v1710 = vpop.f32.mrb[0].mxu0
        %v1711 = vadd.f32 0.0, %v1710
        %v1712 = vpop.f32.mrb[0].mxu0
        %1713 = vmatprep.mubr.bf16.mxu0 0
        %1714 = vmatmul.mubr.bf16.gmra.mrb[0].mxu0 %v1588
        %v1715 = vpop.f32.mrb[0].mxu0
        %v1716 = vadd.f32 0.0, %v1715
        %v1717 = vpop.f32.mrb[0].mxu0
        %v1718 = vpop.f32.mrb[0].mxu0
        %v1719 = vadd.f32 0.0, %v1718
        %v1720 = vpop.f32.mrb[0].mxu0
        %1721 = vmatprep.mubr.bf16.mxu0 0
        %1722 = vmatmul.mubr.bf16.gmra.mrb[0].mxu0 %v1589
        %v1723 = vpop.f32.mrb[0].mxu0
        %v1724 = vadd.f32 0.0, %v1723
        %v1725 = vpop.f32.mrb[0].mxu0
        %v1726 = vpop.f32.mrb[0].mxu0
        %v1727 = vadd.f32 0.0, %v1726
        %v1728 = vpop.f32.mrb[0].mxu0
        %1729 = vmatprep.mubr.bf16.mxu0 0
        %1730 = vmatmul.mubr.bf16.gmra.mrb[0].mxu0 %v1590
        %v1731 = vpop.f32.mrb[0].mxu0
        %v1732 = vadd.f32 0.0, %v1731
        %v1733 = vpop.f32.mrb[0].mxu0
        %v1734 = vpop.f32.mrb[0].mxu0
        %v1735 = vadd.f32 0.0, %v1734
        %v1736 = vpop.f32.mrb[0].mxu0
        %1737 = vmatprep.mubr.bf16.mxu0 0
        %1738 = vmatmul.mubr.bf16.gmra.mrb[0].mxu0 %v1591
        %v1739 = vpop.f32.mrb[0].mxu0
        %v1740 = vadd.f32 0.0, %v1739
        %v1741 = vpop.f32.mrb[0].mxu0
        %v1742 = vpop.f32.mrb[0].mxu0
        %v1743 = vadd.f32 0.0, %v1742
        %v1744 = vpop.f32.mrb[0].mxu0
        %1745 = vmatprep.mubr.bf16.mxu0 0
        %1746 = vmatmul.mubr.bf16.gmra.mrb[0].mxu0 %v1592
        %v1747 = vpop.f32.mrb[0].mxu0
        %v1748 = vadd.f32 0.0, %v1747
        %v1749 = vpop.f32.mrb[0].mxu0
        %v1750 = vpop.f32.mrb[0].mxu0
        %v1751 = vadd.f32 0.0, %v1750
        %v1752 = vpop.f32.mrb[0].mxu0
        %1753 = vdwg.mxu0
        %v1754 = vadd.f32 %v1569, %v1692
        %v1755 = vadd.f32 %v1570, %v1695
        %v1756 = vadd.f32 %v1571, %v1700
        %v1757 = vadd.f32 %v1572, %v1703
        %v1758 = vadd.f32 %v1573, %v1708
        %v1759 = vadd.f32 %v1574, %v1711
        %v1760 = vadd.f32 %v1575, %v1716
        %v1761 = vadd.f32 %v1576, %v1719
        %v1762 = vadd.f32 %v1577, %v1724
        %v1763 = vadd.f32 %v1578, %v1727
        %v1764 = vadd.f32 %v1579, %v1732
        %v1765 = vadd.f32 %v1580, %v1735
        %v1766 = vadd.f32 %v1581, %v1740
        %v1767 = vadd.f32 %v1582, %v1743
        %v1768 = vadd.f32 %v1583, %v1748
        %v1769 = vadd.f32 %v1584, %v1751
        %1770 = vst.msk [vmem:[#allocation5] sm:$0xff] %vm1014, %v1754
        %1771 = vst.msk [vmem:[#allocation5 + $0x8] sm:$0xff] %vm1014, %v1755
        %1772 = vst.msk [vmem:[#allocation5 + $0x10] sm:$0xff] %vm1014, %v1756
        %1773 = vst.msk [vmem:[#allocation5 + $0x18] sm:$0xff] %vm1014, %v1757
        %1774 = vst.msk [vmem:[#allocation5 + $0x20] sm:$0xff] %vm1014, %v1758
        %1775 = vst.msk [vmem:[#allocation5 + $0x28] sm:$0xff] %vm1014, %v1759
        %1776 = vst.msk [vmem:[#allocation5 + $0x30] sm:$0xff] %vm1014, %v1760
        %1777 = vst.msk [vmem:[#allocation5 + $0x38] sm:$0xff] %vm1014, %v1761
        %1778 = vst.msk [vmem:[#allocation5 + $0x40] sm:$0xff] %vm1014, %v1762
        %1779 = vst.msk [vmem:[#allocation5 + $0x48] sm:$0xff] %vm1014, %v1763
        %1780 = vst.msk [vmem:[#allocation5 + $0x50] sm:$0xff] %vm1014, %v1764
        %1781 = vst.msk [vmem:[#allocation5 + $0x58] sm:$0xff] %vm1014, %v1765
        %1782 = vst.msk [vmem:[#allocation5 + $0x60] sm:$0xff] %vm1014, %v1766
        %1783 = vst.msk [vmem:[#allocation5 + $0x68] sm:$0xff] %vm1014, %v1767
        %1784 = vst.msk [vmem:[#allocation5 + $0x70] sm:$0xff] %vm1014, %v1768
        %1785 = vst.msk [vmem:[#allocation5 + $0x78] sm:$0xff] %vm1014, %v1769
        %1786 = vst.msk [vmem:[#allocation3] sm:$0xff] %vm1456, %v1184
        %1787 = vst.msk [vmem:[#allocation3 + $0x8] sm:$0xff] %vm1456, %v1185
        %1788 = vst.msk [vmem:[#allocation3 + $0x10] sm:$0xff] %vm1456, %v1186
        %1789 = vst.msk [vmem:[#allocation3 + $0x18] sm:$0xff] %vm1456, %v1187
        %1790 = vst.msk [vmem:[#allocation3 + $0x20] sm:$0xff] %vm1456, %v1188
        %1791 = vst.msk [vmem:[#allocation3 + $0x28] sm:$0xff] %vm1456, %v1189
        %1792 = vst.msk [vmem:[#allocation3 + $0x30] sm:$0xff] %vm1456, %v1190
        %1793 = vst.msk [vmem:[#allocation3 + $0x38] sm:$0xff] %vm1456, %v1191
        %1794 = vst.msk [vmem:[#allocation3 + $0x40] sm:$0xff] %vm1456, %v1192
        %1795 = vst.msk [vmem:[#allocation3 + $0x48] sm:$0xff] %vm1456, %v1193
        %1796 = vst.msk [vmem:[#allocation3 + $0x50] sm:$0xff] %vm1456, %v1194
        %1797 = vst.msk [vmem:[#allocation3 + $0x58] sm:$0xff] %vm1456, %v1195
        %1798 = vst.msk [vmem:[#allocation3 + $0x60] sm:$0xff] %vm1456, %v1196
        %1799 = vst.msk [vmem:[#allocation3 + $0x68] sm:$0xff] %vm1456, %v1197
        %1800 = vst.msk [vmem:[#allocation3 + $0x70] sm:$0xff] %vm1456, %v1198
        %1801 = vst.msk [vmem:[#allocation3 + $0x78] sm:$0xff] %vm1456, %v1199
        %p1802 = scmp.eq.s32.totalorder %s27, 1
        // Predicated region
        $region140: #{_lambda_.3} parent=126 // pred_check
          %p1803 = pneg %p1802
        $region141: #{_lambda_.3} parent=126 // pred_check_branch
          %1805 = sbr.rel (%p1803) target = $region143
        $region142: #{_lambda_.3} parent=126 // pred_region
          %v1806 = vld [vmem:[#allocation5] sm:$0xff]
          %v1807 = vld [vmem:[#allocation5 + $0x8] sm:$0xff]
          %v1808 = vld [vmem:[#allocation5 + $0x10] sm:$0xff]
          %v1809 = vld [vmem:[#allocation5 + $0x18] sm:$0xff]
          %v1810 = vld [vmem:[#allocation5 + $0x20] sm:$0xff]
          %v1811 = vld [vmem:[#allocation5 + $0x28] sm:$0xff]
          %v1812 = vld [vmem:[#allocation5 + $0x30] sm:$0xff]
          %v1813 = vld [vmem:[#allocation5 + $0x38] sm:$0xff]
          %v1814 = vld [vmem:[#allocation5 + $0x40] sm:$0xff]
          %v1815 = vld [vmem:[#allocation5 + $0x48] sm:$0xff]
          %v1816 = vld [vmem:[#allocation5 + $0x50] sm:$0xff]
          %v1817 = vld [vmem:[#allocation5 + $0x58] sm:$0xff]
          %v1818 = vld [vmem:[#allocation5 + $0x60] sm:$0xff]
          %v1819 = vld [vmem:[#allocation5 + $0x68] sm:$0xff]
          %v1820 = vld [vmem:[#allocation5 + $0x70] sm:$0xff]
          %v1821 = vld [vmem:[#allocation5 + $0x78] sm:$0xff]
          %v1822 = vld [vmem:[#allocation4] sm:$0xff]
          %v1823 = vld [vmem:[#allocation4 + $0x8] sm:$0xff]
          %v1824 = vld [vmem:[#allocation4 + $0x10] sm:$0xff]
          %v1825 = vld [vmem:[#allocation4 + $0x18] sm:$0xff]
          %v1826 = vld [vmem:[#allocation4 + $0x20] sm:$0xff]
          %v1827 = vld [vmem:[#allocation4 + $0x28] sm:$0xff]
          %v1828 = vld [vmem:[#allocation4 + $0x30] sm:$0xff]
          %v1829 = vld [vmem:[#allocation4 + $0x38] sm:$0xff]
          %v1830 = vld [vmem:[#allocation4 + $0x40] sm:$0xff]
          %v1831 = vld [vmem:[#allocation4 + $0x48] sm:$0xff]
          %v1832 = vld [vmem:[#allocation4 + $0x50] sm:$0xff]
          %v1833 = vld [vmem:[#allocation4 + $0x58] sm:$0xff]
          %v1834 = vld [vmem:[#allocation4 + $0x60] sm:$0xff]
          %v1835 = vld [vmem:[#allocation4 + $0x68] sm:$0xff]
          %v1836 = vld [vmem:[#allocation4 + $0x70] sm:$0xff]
          %v1837 = vld [vmem:[#allocation4 + $0x78] sm:$0xff]
          %v1838 = vrcp.pop %v1822
          %v1839 = vrcp.pop %v1823
          %v1840 = vrcp.pop %v1824
          %v1841 = vrcp.pop %v1825
          %v1842 = vrcp.pop %v1826
          %v1843 = vrcp.pop %v1827
          %v1844 = vrcp.pop %v1828
          %v1845 = vrcp.pop %v1829
          %v1846 = vrcp.pop %v1830
          %v1847 = vrcp.pop %v1831
          %v1848 = vrcp.pop %v1832
          %v1849 = vrcp.pop %v1833
          %v1850 = vrcp.pop %v1834
          %v1851 = vrcp.pop %v1835
          %v1852 = vrcp.pop %v1836
          %v1853 = vrcp.pop %v1837
          %1855 = vset.pattern.permute.xlu0 0
          %1856 = vperm.xlu0 %1855, %v1838
          %v1857 = vpop.permute.xlu0 %1856
          %1860 = vset.pattern.permute.xlu0 0
          %1861 = vperm.xlu0 %1860, %v1839
          %v1862 = vpop.permute.xlu0 %1861
          %1865 = vset.pattern.permute.xlu0 0
          %1866 = vperm.xlu0 %1865, %v1840
          %v1867 = vpop.permute.xlu0 %1866
          %1870 = vset.pattern.permute.xlu0 0
          %1871 = vperm.xlu0 %1870, %v1841
          %v1872 = vpop.permute.xlu0 %1871
          %1875 = vset.pattern.permute.xlu0 0
          %1876 = vperm.xlu0 %1875, %v1842
          %v1877 = vpop.permute.xlu0 %1876
          %1880 = vset.pattern.permute.xlu0 0
          %1881 = vperm.xlu0 %1880, %v1843
          %v1882 = vpop.permute.xlu0 %1881
          %1885 = vset.pattern.permute.xlu0 0
          %1886 = vperm.xlu0 %1885, %v1844
          %v1887 = vpop.permute.xlu0 %1886
          %1890 = vset.pattern.permute.xlu0 0
          %1891 = vperm.xlu0 %1890, %v1845
          %v1892 = vpop.permute.xlu0 %1891
          %1895 = vset.pattern.permute.xlu0 0
          %1896 = vperm.xlu0 %1895, %v1846
          %v1897 = vpop.permute.xlu0 %1896
          %1900 = vset.pattern.permute.xlu0 0
          %1901 = vperm.xlu0 %1900, %v1847
          %v1902 = vpop.permute.xlu0 %1901
          %1905 = vset.pattern.permute.xlu0 0
          %1906 = vperm.xlu0 %1905, %v1848
          %v1907 = vpop.permute.xlu0 %1906
          %1910 = vset.pattern.permute.xlu0 0
          %1911 = vperm.xlu0 %1910, %v1849
          %v1912 = vpop.permute.xlu0 %1911
          %1915 = vset.pattern.permute.xlu0 0
          %1916 = vperm.xlu0 %1915, %v1850
          %v1917 = vpop.permute.xlu0 %1916
          %1920 = vset.pattern.permute.xlu0 0
          %1921 = vperm.xlu0 %1920, %v1851
          %v1922 = vpop.permute.xlu0 %1921
          %1925 = vset.pattern.permute.xlu0 0
          %1926 = vperm.xlu0 %1925, %v1852
          %v1927 = vpop.permute.xlu0 %1926
          %1930 = vset.pattern.permute.xlu0 0
          %1931 = vperm.xlu0 %1930, %v1853
          %v1932 = vpop.permute.xlu0 %1931
          %v1934 = vmul.f32 %v1806, %v1857
          %v1935 = vmul.f32 %v1807, %v1862
          %v1936 = vmul.f32 %v1808, %v1867
          %v1937 = vmul.f32 %v1809, %v1872
          %v1938 = vmul.f32 %v1810, %v1877
          %v1939 = vmul.f32 %v1811, %v1882
          %v1940 = vmul.f32 %v1812, %v1887
          %v1941 = vmul.f32 %v1813, %v1892
          %v1942 = vmul.f32 %v1814, %v1897
          %v1943 = vmul.f32 %v1815, %v1902
          %v1944 = vmul.f32 %v1816, %v1907
          %v1945 = vmul.f32 %v1817, %v1912
          %v1946 = vmul.f32 %v1818, %v1917
          %v1947 = vmul.f32 %v1819, %v1922
          %v1948 = vmul.f32 %v1820, %v1927
          %v1949 = vmul.f32 %v1821, %v1932
          %v1950 = vpack.c.bf16 %v1935, %v1934
          %v1951 = vpack.c.bf16 %v1937, %v1936
          %v1952 = vpack.c.bf16 %v1939, %v1938
          %v1953 = vpack.c.bf16 %v1941, %v1940
          %v1954 = vpack.c.bf16 %v1943, %v1942
          %v1955 = vpack.c.bf16 %v1945, %v1944
          %v1956 = vpack.c.bf16 %v1947, %v1946
          %v1957 = vpack.c.bf16 %v1949, %v1948
          %v1958 = vld [vmem:[%s7] sm:$0xf]
          %v1959 = vld [vmem:[%s7 + $0x4] sm:$0xf]
          %v1960 = vld [vmem:[%s7 + $0x8] sm:$0xf]
          %v1961 = vld [vmem:[%s7 + $0xc] sm:$0xf]
          %v1962 = vld [vmem:[%s7 + $0x10] sm:$0xf]
          %v1963 = vld [vmem:[%s7 + $0x14] sm:$0xf]
          %v1964 = vld [vmem:[%s7 + $0x18] sm:$0xf]
          %v1965 = vld [vmem:[%s7 + $0x1c] sm:$0xf]
          %v1966 = vld [vmem:[%s8] sm:$0x1]
          %v1968 = vlaneseq
          %v1969 = vshrl.u32 %v1968, 7
          %v1970 = vsub.s32 0, %v1969
          %v1971 = vrot.slane %v1966, %v1970
          %v1981 = vunpack.c.l.b16 %v1958
          %v1982 = vunpack.c.l.b16 %v1959
          %v1983 = vunpack.c.l.b16 %v1960
          %v1984 = vunpack.c.l.b16 %v1961
          %v1985 = vunpack.c.l.b16 %v1962
          %v1986 = vunpack.c.l.b16 %v1963
          %v1987 = vunpack.c.l.b16 %v1964
          %v1988 = vunpack.c.l.b16 %v1965
          %v1989 = vpack.c.b16 %v1982, %v1981
          %v1990 = vpack.c.b16 %v1984, %v1983
          %v1991 = vpack.c.b16 %v1986, %v1985
          %v1992 = vpack.c.b16 %v1988, %v1987
          %v1998 = vsel %vm1014, %v1950, 0
          %v2001 = vsel %vm1014, %v1951, 0
          %v2004 = vsel %vm1014, %v1952, 0
          %v2007 = vsel %vm1014, %v1953, 0
          %v2010 = vsel %vm1014, %v1954, 0
          %v2013 = vsel %vm1014, %v1955, 0
          %v2016 = vsel %vm1014, %v1956, 0
          %v2019 = vsel %vm1014, %v1957, 0
          %2021 = vmatprep.subr.bf16.mxu0 0
          %2022 = vmatpush1.bf16.msra.mxu0 %v1989
          %2023 = vmatprep.subr.bf16.mxu0 0
          %2024 = vmatpush1.bf16.msra.mxu0 %v1990
          %2025 = vmatprep.subr.bf16.mxu0 0
          %2026 = vmatpush1.bf16.msra.mxu0 %v1991
          %2027 = vmatprep.subr.bf16.mxu0 0
          %2028 = vmatpush1.bf16.msra.mxu0 %v1992
          %2029 = vmatprep.subr.bf16.mxu0 0
          %2030 = vmatpush1.bf16.msra.mxu0 0
          %2031 = vmatprep.subr.bf16.mxu0 0
          %2032 = vmatpush1.bf16.msra.mxu0 0
          %2033 = vmatprep.subr.bf16.mxu0 0
          %2034 = vmatpush1.bf16.msra.mxu0 0
          %2035 = vmatprep.subr.bf16.mxu0 0
          %2036 = vmatpush1.bf16.msra.mxu0 0
          %2037 = vmatprep.subr.bf16.mxu0 0
          %2038 = vmatpush1.bf16.msra.mxu0 0
          %2039 = vmatprep.subr.bf16.mxu0 0
          %2040 = vmatpush1.bf16.msra.mxu0 0
          %2041 = vmatprep.subr.bf16.mxu0 0
          %2042 = vmatpush1.bf16.msra.mxu0 0
          %2043 = vmatprep.subr.bf16.mxu0 0
          %2044 = vmatpush1.bf16.msra.mxu0 0
          %2045 = vmatprep.subr.bf16.mxu0 0
          %2046 = vmatpush1.bf16.msra.mxu0 0
          %2047 = vmatprep.subr.bf16.mxu0 0
          %2048 = vmatpush1.bf16.msra.mxu0 0
          %2049 = vmatprep.subr.bf16.mxu0 0
          %2050 = vmatpush1.bf16.msra.mxu0 0
          %2051 = vmatprep.subr.bf16.mxu0 0
          %2052 = vmatpush1.bf16.msra.mxu0 0
          %2053 = vmatprep.mubr.bf16.mxu0 0
          %2054 = vmatmul.mubr.bf16.gmra.mrb[0].mxu0 %v1998
          %v2055 = vpop.f32.mrb[0].mxu0
          %v2056 = vadd.f32 %v1971, %v2055
          %v2057 = vpop.f32.mrb[0].mxu0
          %v2058 = vpop.f32.mrb[0].mxu0
          %v2059 = vadd.f32 %v1971, %v2058
          %v2060 = vpop.f32.mrb[0].mxu0
          %2061 = vmatprep.mubr.bf16.mxu0 0
          %2062 = vmatmul.mubr.bf16.gmra.mrb[0].mxu0 %v2001
          %v2063 = vpop.f32.mrb[0].mxu0
          %v2064 = vadd.f32 %v1971, %v2063
          %v2065 = vpop.f32.mrb[0].mxu0
          %v2066 = vpop.f32.mrb[0].mxu0
          %v2067 = vadd.f32 %v1971, %v2066
          %v2068 = vpop.f32.mrb[0].mxu0
          %2069 = vmatprep.mubr.bf16.mxu0 0
          %2070 = vmatmul.mubr.bf16.gmra.mrb[0].mxu0 %v2004
          %v2071 = vpop.f32.mrb[0].mxu0
          %v2072 = vadd.f32 %v1971, %v2071
          %v2073 = vpop.f32.mrb[0].mxu0
          %v2074 = vpop.f32.mrb[0].mxu0
          %v2075 = vadd.f32 %v1971, %v2074
          %v2076 = vpop.f32.mrb[0].mxu0
          %2077 = vmatprep.mubr.bf16.mxu0 0
          %2078 = vmatmul.mubr.bf16.gmra.mrb[0].mxu0 %v2007
          %v2079 = vpop.f32.mrb[0].mxu0
          %v2080 = vadd.f32 %v1971, %v2079
          %v2081 = vpop.f32.mrb[0].mxu0
          %v2082 = vpop.f32.mrb[0].mxu0
          %v2083 = vadd.f32 %v1971, %v2082
          %v2084 = vpop.f32.mrb[0].mxu0
          %2085 = vmatprep.mubr.bf16.mxu0 0
          %2086 = vmatmul.mubr.bf16.gmra.mrb[0].mxu0 %v2010
          %v2087 = vpop.f32.mrb[0].mxu0
          %v2088 = vadd.f32 %v1971, %v2087
          %v2089 = vpop.f32.mrb[0].mxu0
          %v2090 = vpop.f32.mrb[0].mxu0
          %v2091 = vadd.f32 %v1971, %v2090
          %v2092 = vpop.f32.mrb[0].mxu0
          %2093 = vmatprep.mubr.bf16.mxu0 0
          %2094 = vmatmul.mubr.bf16.gmra.mrb[0].mxu0 %v2013
          %v2095 = vpop.f32.mrb[0].mxu0
          %v2096 = vadd.f32 %v1971, %v2095
          %v2097 = vpop.f32.mrb[0].mxu0
          %v2098 = vpop.f32.mrb[0].mxu0
          %v2099 = vadd.f32 %v1971, %v2098
          %v2100 = vpop.f32.mrb[0].mxu0
          %2101 = vmatprep.mubr.bf16.mxu0 0
          %2102 = vmatmul.mubr.bf16.gmra.mrb[0].mxu0 %v2016
          %v2103 = vpop.f32.mrb[0].mxu0
          %v2104 = vadd.f32 %v1971, %v2103
          %v2105 = vpop.f32.mrb[0].mxu0
          %v2106 = vpop.f32.mrb[0].mxu0
          %v2107 = vadd.f32 %v1971, %v2106
          %v2108 = vpop.f32.mrb[0].mxu0
          %2109 = vmatprep.mubr.bf16.mxu0 0
          %2110 = vmatmul.mubr.bf16.gmra.mrb[0].mxu0 %v2019
          %v2111 = vpop.f32.mrb[0].mxu0
          %v2112 = vadd.f32 %v1971, %v2111
          %v2113 = vpop.f32.mrb[0].mxu0
          %v2114 = vpop.f32.mrb[0].mxu0
          %v2115 = vadd.f32 %v1971, %v2114
          %v2116 = vpop.f32.mrb[0].mxu0
          %2117 = vdwg.mxu0
          %2118 = vxpose.xlu0.b32.start [1/16] %v2056, 128
          %2119 = vxpose.xlu0.b32.cont [2/16] %v2059, 128
          %2120 = vxpose.xlu0.b32.cont [3/16] %v2064, 128
          %2121 = vxpose.xlu0.b32.cont [4/16] %v2067, 128
          %2122 = vxpose.xlu0.b32.cont [5/16] %v2072, 128
          %2123 = vxpose.xlu0.b32.cont [6/16] %v2075, 128
          %2124 = vxpose.xlu0.b32.cont [7/16] %v2080, 128
          %2125 = vxpose.xlu0.b32.cont [8/16] %v2083, 128
          %2126 = vxpose.xlu0.b32.cont [9/16] %v2088, 128
          %2127 = vxpose.xlu0.b32.cont [10/16] %v2091, 128
          %2128 = vxpose.xlu0.b32.cont [11/16] %v2096, 128
          %2129 = vxpose.xlu0.b32.cont [12/16] %v2099, 128
          %2130 = vxpose.xlu0.b32.cont [13/16] %v2104, 128
          %2131 = vxpose.xlu0.b32.cont [14/16] %v2107, 128
          %2132 = vxpose.xlu0.b32.cont [15/16] %v2112, 128
          %2133 = vxpose.xlu0.b32.end [16/16] %v2115, 128
          %v2134 = vpop.trf.xlu0
          %v2135 = vpop.trf.xlu0
          %v2136 = vpop.trf.xlu0
          %v2137 = vpop.trf.xlu0
          %v2138 = vpop.trf.xlu0
          %v2139 = vpop.trf.xlu0
          %v2140 = vpop.trf.xlu0
          %v2141 = vpop.trf.xlu0
          %v2142 = vpop.trf.xlu0
          %v2143 = vpop.trf.xlu0
          %v2144 = vpop.trf.xlu0
          %v2145 = vpop.trf.xlu0
          %v2146 = vpop.trf.xlu0
          %v2147 = vpop.trf.xlu0
          %v2148 = vpop.trf.xlu0
          %v2149 = vpop.trf.xlu0
          %v2150 = vld [vmem:[%s501] sm:$0xff]
          %v2151 = vld [vmem:[%s501 + $0x8] sm:$0xff]
          %v2152 = vld [vmem:[%s501 + $0x10] sm:$0xff]
          %v2153 = vld [vmem:[%s501 + $0x18] sm:$0xff]
          %v2154 = vld [vmem:[%s501 + $0x20] sm:$0xff]
          %v2155 = vld [vmem:[%s501 + $0x28] sm:$0xff]
          %v2156 = vld [vmem:[%s501 + $0x30] sm:$0xff]
          %v2157 = vld [vmem:[%s501 + $0x38] sm:$0xff]
          %v2158 = vadd.f32 %v2134, %v2150
          %v2159 = vadd.f32 %v2135, %v2151
          %v2160 = vadd.f32 %v2136, %v2152
          %v2161 = vadd.f32 %v2137, %v2153
          %v2162 = vadd.f32 %v2138, %v2154
          %v2163 = vadd.f32 %v2139, %v2155
          %v2164 = vadd.f32 %v2140, %v2156
          %v2165 = vadd.f32 %v2141, %v2157
          %2166 = vst [vmem:[%s562] sm:$0xff] %v2158
          %2167 = vst [vmem:[%s562 + $0x8] sm:$0xff] %v2159
          %2168 = vst [vmem:[%s562 + $0x10] sm:$0xff] %v2160
          %2169 = vst [vmem:[%s562 + $0x18] sm:$0xff] %v2161
          %2170 = vst [vmem:[%s562 + $0x20] sm:$0xff] %v2162
          %2171 = vst [vmem:[%s562 + $0x28] sm:$0xff] %v2163
          %2172 = vst [vmem:[%s562 + $0x30] sm:$0xff] %v2164
          %2173 = vst [vmem:[%s562 + $0x38] sm:$0xff] %v2165
        $region143: #{_lambda_.3} parent=126 // pred_fallthru
          _
        %s2174 = sand.u32 %s269, 1
        %s2175 = sand.u32 %s269, 1
        %s2176 = smul.addr %s2175, 64
        %s2177 = scalar_lea.vmem [#allocation8], %s2176
        // Predicated region
        $region144: #{_lambda_.3} parent=126 // pred_check
          %p2178 = pneg %p279
        $region145: #{_lambda_.3} parent=126 // pred_check_branch
          %2180 = sbr.rel (%p2178) target = $region147
        $region146: #{_lambda_.3} parent=126 // pred_region
          %s2181 = smul.addr %s25, 16
          %s2182 = sadd.s32 %s26, %s2181
          %s2183 = smul.addr %s2182, 8
          %s2184 = scalar_lea.vmem %s9, %s2183
          // Predicated region
          $region148: #{_lambda_.3} parent=146 // pred_check
            _
          $region149: #{_lambda_.3} parent=146 // pred_check_branch
            %2186 = sbr.rel (0) target = $region151
          $region150: #{_lambda_.3} parent=146 // pred_region
            // Predicated region
            $region152: #{_lambda_.3} parent=150 // pred_check
              _
            $region153: #{_lambda_.3} parent=150 // pred_check_branch
              %2188 = sbr.rel (0) target = $region155
            $region154: #{_lambda_.3} parent=150 // pred_region
              // Predicated region
              $region167: #{_lambda_.3} parent=154 // pred_check
                _
              $region168: #{_lambda_.3} parent=154 // pred_check_branch
                %2217 = sbr.rel (0) target = $region170
              $region169: #{_lambda_.3} parent=154 // pred_region
                loop: start=0, step=1, limit=1
                $region171: #{_lambda_.3} parent=169 // loop_pre_header
                  _
                $region172: #{_lambda_.3} parent=169 // loop_header
                  %s2219 = sphi 0, %s2223
                  %p2220 = scmp.ge.s32.totalorder %s2219, 1
                  %s2224 = sphi %s2177, %s2177
                  %s2225 = sphi %s2184, %s2184
                $region173: #{_lambda_.3} parent=169 // loop_header_branch
                  %2222 = sbr.rel (%p2220) target = $region177
                $region174: #{_lambda_.3} parent=169 // loop_body
                  %v2226 = vld [vmem:[%s2224] sm:$0xff]
                  %2227 = vst [vmem:[%s2225] sm:$0xff] %v2226
                  %v2228 = vld [vmem:[%s2224 + $0x8] sm:$0xff]
                  %2229 = vst [vmem:[%s2225 + $0x10] sm:$0xff] %v2228
                  %v2230 = vld [vmem:[%s2224 + $0x10] sm:$0xff]
                  %2231 = vst [vmem:[%s2225 + $0x20] sm:$0xff] %v2230
                  %v2232 = vld [vmem:[%s2224 + $0x18] sm:$0xff]
                  %2233 = vst [vmem:[%s2225 + $0x30] sm:$0xff] %v2232
                  %v2234 = vld [vmem:[%s2224 + $0x20] sm:$0xff]
                  %2235 = vst [vmem:[%s2225 + $0x40] sm:$0xff] %v2234
                  %v2236 = vld [vmem:[%s2224 + $0x28] sm:$0xff]
                  %2237 = vst [vmem:[%s2225 + $0x50] sm:$0xff] %v2236
                  %v2238 = vld [vmem:[%s2224 + $0x30] sm:$0xff]
                  %2239 = vst [vmem:[%s2225 + $0x60] sm:$0xff] %v2238
                  %v2240 = vld [vmem:[%s2224 + $0x38] sm:$0xff]
                  %2241 = vst [vmem:[%s2225 + $0x70] sm:$0xff] %v2240
                $region175: #{_lambda_.3} parent=169 // loop_footer
                  %s2223 = sadd.s32 1, %s2219
                $region176: #{_lambda_.3} parent=169 // loop_footer_branch
                  %2218 = sbr.rel target = $region172
                $region177: #{_lambda_.3} parent=169 // loop_exit
                  _
              $region170: #{_lambda_.3} parent=154 // pred_fallthru
                _
              // Predicated region
              $region178: #{_lambda_.3} parent=154 // pred_check
                _
              $region179: #{_lambda_.3} parent=154 // pred_check_branch
                %2243 = sbr.rel target = $region181
              $region180: #{_lambda_.3} parent=154 // pred_region
                _
              $region181: #{_lambda_.3} parent=154 // pred_fallthru
                _
            $region155: #{_lambda_.3} parent=150 // pred_fallthru
              _
            // Predicated region
            $region156: #{_lambda_.3} parent=150 // pred_check
              _
            $region157: #{_lambda_.3} parent=150 // pred_check_branch
              %2190 = sbr.rel target = $region159
            $region158: #{_lambda_.3} parent=150 // pred_region
              loop: start=0, step=1, limit=1
              $region160: #{_lambda_.3} parent=158 // loop_pre_header
                _
              $region161: #{_lambda_.3} parent=158 // loop_header
                %s2193 = sphi 0, %s2197
                %p2194 = scmp.ge.s32.totalorder %s2193, 1
                %s2198 = sphi %s2177, %s2177
                %s2199 = sphi %s2184, %s2184
              $region162: #{_lambda_.3} parent=158 // loop_header_branch
                %2196 = sbr.rel (%p2194) target = $region166
              $region163: #{_lambda_.3} parent=158 // loop_body
                %v2200 = vld [vmem:[%s2198] sm:$0xff]
                %2201 = vst [vmem:[%s2199] sm:$0xff] %v2200
                %v2202 = vld [vmem:[%s2198 + $0x8] sm:$0xff]
                %2203 = vst [vmem:[%s2199 + $0x10] sm:$0xff] %v2202
                %v2204 = vld [vmem:[%s2198 + $0x10] sm:$0xff]
                %2205 = vst [vmem:[%s2199 + $0x20] sm:$0xff] %v2204
                %v2206 = vld [vmem:[%s2198 + $0x18] sm:$0xff]
                %2207 = vst [vmem:[%s2199 + $0x30] sm:$0xff] %v2206
                %v2208 = vld [vmem:[%s2198 + $0x20] sm:$0xff]
                %2209 = vst [vmem:[%s2199 + $0x40] sm:$0xff] %v2208
                %v2210 = vld [vmem:[%s2198 + $0x28] sm:$0xff]
                %2211 = vst [vmem:[%s2199 + $0x50] sm:$0xff] %v2210
                %v2212 = vld [vmem:[%s2198 + $0x30] sm:$0xff]
                %2213 = vst [vmem:[%s2199 + $0x60] sm:$0xff] %v2212
                %v2214 = vld [vmem:[%s2198 + $0x38] sm:$0xff]
                %2215 = vst [vmem:[%s2199 + $0x70] sm:$0xff] %v2214
              $region164: #{_lambda_.3} parent=158 // loop_footer
                %s2197 = sadd.s32 1, %s2193
              $region165: #{_lambda_.3} parent=158 // loop_footer_branch
                %2192 = sbr.rel target = $region161
              $region166: #{_lambda_.3} parent=158 // loop_exit
                _
            $region159: #{_lambda_.3} parent=150 // pred_fallthru
              _
          $region151: #{_lambda_.3} parent=146 // pred_fallthru
            _
          %2244 = vnop
        $region147: #{_lambda_.3} parent=126 // pred_fallthru
          _
      $region127: #{_lambda_.3} parent=5 // pred_fallthru
        _
      %p2245 = scmp.le.s32.totalorder 2, %s15
      // Predicated region
      $region182: #{_lambda_.3} parent=5 // pred_check
        %p2246 = pneg %p2245
      $region183: #{_lambda_.3} parent=5 // pred_check_branch
        %2248 = sbr.rel (%p2246) target = $region185
      $region184: #{_lambda_.3} parent=5 // pred_region
        %s2249 = ssub.s32 %s15, 2
        // Predicated region
        $region186: #{_lambda_.3} parent=184 // pred_check
          %p2250 = pneg %p285
        $region187: #{_lambda_.3} parent=184 // pred_check_branch
          %2252 = sbr.rel (%p2250) target = $region189
        $region188: #{_lambda_.3} parent=184 // pred_region
          %s2253 = sand.u32 %s270, 1
          %s2254 = sand.u32 %s270, 1
          %s2255 = smul.addr %s2254, 64
          %s2256 = scalar_lea.vmem [#allocation8], %s2255
        $region189: #{_lambda_.3} parent=184 // pred_fallthru
          _
      $region185: #{_lambda_.3} parent=5 // pred_fallthru
        _
    $region6: #{_lambda_.3} parent=1 // loop_footer
      %s19 = sadd.s32 1, %s15
    $region7: #{_lambda_.3} parent=1 // loop_footer_branch
      %14 = sbr.rel target = $region3
    $region8: #{_lambda_.3} parent=1 // loop_exit
      _

</llo_original>
